<compile_context>
chip_gen: v7x
topology: tpu7x:2x2x1
jax: 0.10.0
libtpu: 0.0.40
codegen_flags: <defaults>
</compile_context>

<pallas_src>
import jax
import jax.numpy as jnp
from jax.experimental import pallas as pl
from jax.experimental.pallas import tpu as pltpu

# Left zero-halo width inside the padded VMEM scratches.  8 keeps the interior
# store sublane-aligned for f32; column (_LPAD - 1) is the conv's left zero
# pad and column (_LPAD + W) the right zero pad.
_LPAD = 8


def _im2col_3x3(src_ref, H, W):
    """Build the (H*W, 9*C) im2col patch of a 3x3 / stride-1 conv (bf16).

    src_ref: zero-haloed (H+2, W+2*_LPAD, C) f32 VMEM scratch whose valid
    pixels live at rows [1, H] and columns [_LPAD, _LPAD + W).
    """
    C = src_ref.shape[2]
    taps = []
    for kh in range(3):
        for kw in range(3):
            win = src_ref[kh:kh + H, _LPAD - 1 + kw:_LPAD - 1 + kw + W, :]
            taps.append(win.reshape(H * W, C))
    # Tap order (kh, kw, ci) matches the HWIO weight reshape (9*C, Cout).
    return jnp.concatenate(taps, axis=-1).astype(jnp.bfloat16)


def _fused_conv_block_kernel(x_ref, w1_ref, s1_ref, b1_ref,
                             w2_ref, s2_ref, b2_ref,
                             o_ref, xpad_ref, midpad_ref):
    """conv3x3+BN+ReLU -> conv3x3+BN+ReLU for one batch element per grid step.

    x_ref:            (1, H, W, Cin)      f32 input tile
    w1_ref / w2_ref:  (9*Cin, Cmid) / (9*Cmid, Cout)  bf16 im2col weights
    s*_ref / b*_ref:  (1, C)              f32 folded-BN scale / bias
    o_ref:            (1, H, W, Cout)     f32 output tile
    xpad_ref:         (H+2, W+2*_LPAD, Cin)  f32 zero-haloed input staging
    midpad_ref:       (H+2, W+2*_LPAD, Cmid) f32 zero-haloed intermediate
    """
    H, W, Cout = o_ref.shape[1], o_ref.shape[2], o_ref.shape[3]
    Cmid = w1_ref.shape[1]

    # Stage the input with a zero halo (SAME padding done in-kernel).
    xpad_ref[...] = jnp.zeros_like(xpad_ref)
    xpad_ref[1:H + 1, _LPAD:_LPAD + W, :] = x_ref[0]

    # Conv1: single K=9*Cin bf16 MXU matmul; BN affine + ReLU in f32 vregs.
    p1 = _im2col_3x3(xpad_ref, H, W)
    y1 = jnp.dot(p1, w1_ref[...], preferred_element_type=jnp.float32)
    y1 = jnp.maximum(y1 * s1_ref[...] + b1_ref[...], 0.0)

    # Keep the intermediate in VMEM (with zero halo) -> no HBM round trip.
    midpad_ref[...] = jnp.zeros_like(midpad_ref)
    midpad_ref[1:H + 1, _LPAD:_LPAD + W, :] = y1.reshape(H, W, Cmid)

    # Conv2: single K=9*Cmid bf16 MXU matmul; BN affine + ReLU in f32 vregs.
    p2 = _im2col_3x3(midpad_ref, H, W)
    y2 = jnp.dot(p2, w2_ref[...], preferred_element_type=jnp.float32)
    y2 = jnp.maximum(y2 * s2_ref[...] + b2_ref[...], 0.0)

    o_ref[...] = y2.reshape(1, H, W, Cout).astype(o_ref.dtype)


def basic_conv_block_pallas(x_nhwc, w1, s1, b1, w2, s2, b2):
    """Fused BasicConvBlock forward (NHWC in / NHWC out) via one pallas_call."""
    N, H, W, Cin = x_nhwc.shape
    Cmid = w1.shape[-1]
    Cout = w2.shape[-1]

    # HWIO weights -> (9*C, Cout) matching the im2col tap order; bf16 for MXU.
    w1f = w1.reshape(9 * Cin, Cmid).astype(jnp.bfloat16)
    w2f = w2.reshape(9 * Cmid, Cout).astype(jnp.bfloat16)
    s1r, b1r = s1.reshape(1, Cmid), b1.reshape(1, Cmid)
    s2r, b2r = s2.reshape(1, Cout), b2.reshape(1, Cout)

    flops = 2 * N * H * W * 9 * (Cin * Cmid + Cmid * Cout)
    bytes_accessed = (x_nhwc.size * 4 + w1f.size * 2 + w2f.size * 2
                      + 4 * (s1r.size + b1r.size + s2r.size + b2r.size)
                      + N * H * W * Cout * 4)

    return pl.pallas_call(
        _fused_conv_block_kernel,
        out_shape=jax.ShapeDtypeStruct((N, H, W, Cout), jnp.float32),
        grid_spec=pltpu.PrefetchScalarGridSpec(
            num_scalar_prefetch=0,
            grid=(N,),
            in_specs=[
                pl.BlockSpec((1, H, W, Cin), lambda n: (n, 0, 0, 0)),
                pl.BlockSpec((9 * Cin, Cmid), lambda n: (0, 0)),
                pl.BlockSpec((1, Cmid), lambda n: (0, 0)),
                pl.BlockSpec((1, Cmid), lambda n: (0, 0)),
                pl.BlockSpec((9 * Cmid, Cout), lambda n: (0, 0)),
                pl.BlockSpec((1, Cout), lambda n: (0, 0)),
                pl.BlockSpec((1, Cout), lambda n: (0, 0)),
            ],
            out_specs=pl.BlockSpec((1, H, W, Cout), lambda n: (n, 0, 0, 0)),
            scratch_shapes=[
                pltpu.VMEM((H + 2, W + 2 * _LPAD, Cin), jnp.float32),
                pltpu.VMEM((H + 2, W + 2 * _LPAD, Cmid), jnp.float32),
            ],
        ),
        compiler_params=pltpu.CompilerParams(
            dimension_semantics=("parallel",),
            vmem_limit_bytes=32 * 1024 * 1024),
        cost_estimate=pl.CostEstimate(
            flops=flops, transcendentals=0, bytes_accessed=bytes_accessed),
    )(x_nhwc, w1f, s1r, b1r, w2f, s2r, b2r)


def fold_bn(gamma, beta, running_mean, running_var, eps=1e-5):
    scale = gamma / jnp.sqrt(running_var + eps)
    bias = beta - running_mean * scale
    return scale, bias


def basic_conv_block(x_nchw, params):
    """BasicConvBlock forward (num_convs=2, stride=1, dilation=1), NCHW I/O."""
    assert len(params) == 2, "fused kernel implements num_convs=2"
    (w1, s1, b1), (w2, s2, b2) = params
    x = jnp.transpose(x_nchw, (0, 2, 3, 1))           # NCHW -> NHWC
    y = basic_conv_block_pallas(x, w1, s1, b1, w2, s2, b2)
    return jnp.transpose(y, (0, 3, 1, 2))             # NHWC -> NCHW


def _reference(x_nchw, params):
    """Pure-JAX reference mirroring the kernel's bf16-operand / f32-acc math."""
    x = jnp.transpose(x_nchw, (0, 2, 3, 1))
    for (w, scale, bias) in params:
        y = jax.lax.conv_general_dilated(
            x.astype(jnp.bfloat16), w.astype(jnp.bfloat16),
            window_strides=(1, 1), padding="SAME",
            dimension_numbers=("NHWC", "HWIO", "NHWC"),
            preferred_element_type=jnp.float32)
        y = y * scale[None, None, None, :] + bias[None, None, None, :]
        x = jnp.maximum(y, 0.0)
    return jnp.transpose(x, (0, 3, 1, 2))


if __name__ == "__main__":
    key = jax.random.PRNGKey(0)
    N, Cin, Cout, H, W = 2, 4, 8, 16, 16

    k_x, k_w0, k_w1, k_g0, k_b0, k_g1, k_b1 = jax.random.split(key, 7)
    x = jax.random.normal(k_x, (N, Cin, H, W), dtype=jnp.float32)

    # Deterministic synthetic parameters (HWIO conv weights for NHWC compute).
    wc1 = jax.random.normal(k_w0, (3, 3, Cin, Cout), dtype=jnp.float32) * 0.1
    wc2 = jax.random.normal(k_w1, (3, 3, Cout, Cout), dtype=jnp.float32) * 0.1

    # BatchNorm in eval mode (running_mean=0, running_var=1).
    gamma0 = 1.0 + 0.1 * jax.random.normal(k_g0, (Cout,), jnp.float32)
    beta0 = 0.1 * jax.random.normal(k_b0, (Cout,), jnp.float32)
    gamma1 = 1.0 + 0.1 * jax.random.normal(k_g1, (Cout,), jnp.float32)
    beta1 = 0.1 * jax.random.normal(k_b1, (Cout,), jnp.float32)
    rmean = jnp.zeros((Cout,), jnp.float32)
    rvar = jnp.ones((Cout,), jnp.float32)

    s0, b0 = fold_bn(gamma0, beta0, rmean, rvar)
    s1, b1 = fold_bn(gamma1, beta1, rmean, rvar)
    params = [(wc1, s0, b0), (wc2, s1, b1)]

    out = jax.block_until_ready(basic_conv_block(x, params))
    ref = jax.block_until_ready(_reference(x, params))

    assert out.shape == (N, Cout, H, W), out.shape
    max_err = float(jnp.max(jnp.abs(out - ref)))
    assert max_err < 2e-3, max_err

    print("KERNEL_OK")
</pallas_src>

<mosaic_0001>
module attributes {stable_mosaic.version = 11 : i64} {
  func.func @_fused_conv_block_kernel(%arg0: i32, %arg1: memref<1x16x16x4xf32, #tpu.memory_space<vmem>>, %arg2: memref<36x8xbf16, #tpu.memory_space<vmem>>, %arg3: memref<1x8xf32, #tpu.memory_space<vmem>>, %arg4: memref<1x8xf32, #tpu.memory_space<vmem>>, %arg5: memref<72x8xbf16, #tpu.memory_space<vmem>>, %arg6: memref<1x8xf32, #tpu.memory_space<vmem>>, %arg7: memref<1x8xf32, #tpu.memory_space<vmem>>, %arg8: memref<1x16x16x8xf32, #tpu.memory_space<vmem>>, %arg9: memref<18x32x4xf32, #tpu.memory_space<vmem>>, %arg10: memref<18x32x8xf32, #tpu.memory_space<vmem>>) attributes {dimension_semantics = [#tpu.dimension_semantics<parallel>], iteration_bounds = array<i64: 2>, scalar_prefetch = 0 : i64, scratch_operands = 2 : i64, tpu.core_type = #tpu.core_type<tc>, window_params = [{transform_indices = @transform_0, window_bounds = array<i64: 1, 16, 16, 4>}, {pipeline_mode = #tpu.pipeline_mode<synchronous>, transform_indices = @transform_1, window_bounds = array<i64: 36, 8>}, {pipeline_mode = #tpu.pipeline_mode<synchronous>, transform_indices = @transform_2, window_bounds = array<i64: 1, 8>}, {pipeline_mode = #tpu.pipeline_mode<synchronous>, transform_indices = @transform_3, window_bounds = array<i64: 1, 8>}, {pipeline_mode = #tpu.pipeline_mode<synchronous>, transform_indices = @transform_4, window_bounds = array<i64: 72, 8>}, {pipeline_mode = #tpu.pipeline_mode<synchronous>, transform_indices = @transform_5, window_bounds = array<i64: 1, 8>}, {pipeline_mode = #tpu.pipeline_mode<synchronous>, transform_indices = @transform_6, window_bounds = array<i64: 1, 8>}, {transform_indices = @transform_7, window_bounds = array<i64: 1, 16, 16, 8>}]} {
    %cst = arith.constant 0.000000e+00 : f32
    %0 = vector.broadcast %cst : f32 to vector<18x32x4xf32>
    %c0 = arith.constant 0 : index
    %c0_0 = arith.constant 0 : index
    %c0_1 = arith.constant 0 : index
    %1 = vector.load %arg9[%c0, %c0_0, %c0_1] : memref<18x32x4xf32, #tpu.memory_space<vmem>>, vector<18x32x4xf32>
    tpu.vector_store %arg9[%c0, %c0_0, %c0_1], %0 {strides = array<i32>} : memref<18x32x4xf32, #tpu.memory_space<vmem>>, vector<18x32x4xf32>,
    %c0_2 = arith.constant 0 : index
    %c0_3 = arith.constant 0 : index
    %c0_4 = arith.constant 0 : index
    %c0_5 = arith.constant 0 : index
    %2 = vector.load %arg1[%c0_2, %c0_3, %c0_4, %c0_5] : memref<1x16x16x4xf32, #tpu.memory_space<vmem>>, vector<1x16x16x4xf32>
    %3 = vector.shape_cast %2 : vector<1x16x16x4xf32> to vector<16x16x4xf32>
    %c1 = arith.constant 1 : index
    %c8 = arith.constant 8 : index
    %c0_6 = arith.constant 0 : index
    %4 = vector.load %arg9[%c1, %c8, %c0_6] : memref<18x32x4xf32, #tpu.memory_space<vmem>>, vector<16x16x4xf32>
    tpu.vector_store %arg9[%c1, %c8, %c0_6], %3 {strides = array<i32>} : memref<18x32x4xf32, #tpu.memory_space<vmem>>, vector<16x16x4xf32>,
    %c0_7 = arith.constant 0 : index
    %c7 = arith.constant 7 : index
    %c0_8 = arith.constant 0 : index
    %5 = vector.load %arg9[%c0_7, %c7, %c0_8] : memref<18x32x4xf32, #tpu.memory_space<vmem>>, vector<16x16x4xf32>
    %6 = vector.shape_cast %5 : vector<16x16x4xf32> to vector<256x4xf32>
    %c0_9 = arith.constant 0 : index
    %c8_10 = arith.constant 8 : index
    %c0_11 = arith.constant 0 : index
    %7 = vector.load %arg9[%c0_9, %c8_10, %c0_11] : memref<18x32x4xf32, #tpu.memory_space<vmem>>, vector<16x16x4xf32>
    %8 = vector.shape_cast %7 : vector<16x16x4xf32> to vector<256x4xf32>
    %c0_12 = arith.constant 0 : index
    %c9 = arith.constant 9 : index
    %c0_13 = arith.constant 0 : index
    %9 = vector.load %arg9[%c0_12, %c9, %c0_13] : memref<18x32x4xf32, #tpu.memory_space<vmem>>, vector<16x16x4xf32>
    %10 = vector.shape_cast %9 : vector<16x16x4xf32> to vector<256x4xf32>
    %c1_14 = arith.constant 1 : index
    %c7_15 = arith.constant 7 : index
    %c0_16 = arith.constant 0 : index
    %11 = vector.load %arg9[%c1_14, %c7_15, %c0_16] : memref<18x32x4xf32, #tpu.memory_space<vmem>>, vector<16x16x4xf32>
    %12 = vector.shape_cast %11 : vector<16x16x4xf32> to vector<256x4xf32>
    %c1_17 = arith.constant 1 : index
    %c8_18 = arith.constant 8 : index
    %c0_19 = arith.constant 0 : index
    %13 = vector.load %arg9[%c1_17, %c8_18, %c0_19] : memref<18x32x4xf32, #tpu.memory_space<vmem>>, vector<16x16x4xf32>
    %14 = vector.shape_cast %13 : vector<16x16x4xf32> to vector<256x4xf32>
    %c1_20 = arith.constant 1 : index
    %c9_21 = arith.constant 9 : index
    %c0_22 = arith.constant 0 : index
    %15 = vector.load %arg9[%c1_20, %c9_21, %c0_22] : memref<18x32x4xf32, #tpu.memory_space<vmem>>, vector<16x16x4xf32>
    %16 = vector.shape_cast %15 : vector<16x16x4xf32> to vector<256x4xf32>
    %c2 = arith.constant 2 : index
    %c7_23 = arith.constant 7 : index
    %c0_24 = arith.constant 0 : index
    %17 = vector.load %arg9[%c2, %c7_23, %c0_24] : memref<18x32x4xf32, #tpu.memory_space<vmem>>, vector<16x16x4xf32>
    %18 = vector.shape_cast %17 : vector<16x16x4xf32> to vector<256x4xf32>
    %c2_25 = arith.constant 2 : index
    %c8_26 = arith.constant 8 : index
    %c0_27 = arith.constant 0 : index
    %19 = vector.load %arg9[%c2_25, %c8_26, %c0_27] : memref<18x32x4xf32, #tpu.memory_space<vmem>>, vector<16x16x4xf32>
    %20 = vector.shape_cast %19 : vector<16x16x4xf32> to vector<256x4xf32>
    %c2_28 = arith.constant 2 : index
    %c9_29 = arith.constant 9 : index
    %c0_30 = arith.constant 0 : index
    %21 = vector.load %arg9[%c2_28, %c9_29, %c0_30] : memref<18x32x4xf32, #tpu.memory_space<vmem>>, vector<16x16x4xf32>
    %22 = vector.shape_cast %21 : vector<16x16x4xf32> to vector<256x4xf32>
    %23 = tpu.concatenate %6, %8, %10, %12, %14, %16, %18, %20, %22 in 1 : vector<256x4xf32>, vector<256x4xf32>, vector<256x4xf32>, vector<256x4xf32>, vector<256x4xf32>, vector<256x4xf32>, vector<256x4xf32>, vector<256x4xf32>, vector<256x4xf32> -> vector<256x36xf32>
    %24 = arith.truncf %23 : vector<256x36xf32> to vector<256x36xbf16>
    %c0_31 = arith.constant 0 : index
    %c0_32 = arith.constant 0 : index
    %25 = vector.load %arg2[%c0_31, %c0_32] : memref<36x8xbf16, #tpu.memory_space<vmem>>, vector<36x8xbf16>
    %cst_33 = arith.constant dense<0.000000e+00> : vector<256x8xf32>
    %26 = tpu.matmul %24, %25, %cst_33 {dimension_numbers = #tpu.dot_dimension_numbers<[1], [0], [0], [1], [0, 0, 1, 1], [], []>} : vector<256x36xbf16>, vector<36x8xbf16>, vector<256x8xf32> -> vector<256x8xf32>
    %c0_34 = arith.constant 0 : index
    %c0_35 = arith.constant 0 : index
    %27 = vector.load %arg3[%c0_34, %c0_35] : memref<1x8xf32, #tpu.memory_space<vmem>>, vector<1x8xf32>
    %28 = vector.broadcast %27 : vector<1x8xf32> to vector<256x8xf32>
    %29 = arith.mulf %26, %28 : vector<256x8xf32>
    %c0_36 = arith.constant 0 : index
    %c0_37 = arith.constant 0 : index
    %30 = vector.load %arg4[%c0_36, %c0_37] : memref<1x8xf32, #tpu.memory_space<vmem>>, vector<1x8xf32>
    %31 = vector.broadcast %30 : vector<1x8xf32> to vector<256x8xf32>
    %32 = arith.addf %29, %31 : vector<256x8xf32>
    %cst_38 = arith.constant 0.000000e+00 : f32
    %33 = vector.broadcast %cst_38 : f32 to vector<256x8xf32>
    %34 = arith.maximumf %32, %33 : vector<256x8xf32>
    %cst_39 = arith.constant 0.000000e+00 : f32
    %35 = vector.broadcast %cst_39 : f32 to vector<18x32x8xf32>
    %c0_40 = arith.constant 0 : index
    %c0_41 = arith.constant 0 : index
    %c0_42 = arith.constant 0 : index
    %36 = vector.load %arg10[%c0_40, %c0_41, %c0_42] : memref<18x32x8xf32, #tpu.memory_space<vmem>>, vector<18x32x8xf32>
    tpu.vector_store %arg10[%c0_40, %c0_41, %c0_42], %35 {strides = array<i32>} : memref<18x32x8xf32, #tpu.memory_space<vmem>>, vector<18x32x8xf32>,
    %37 = vector.shape_cast %34 : vector<256x8xf32> to vector<16x16x8xf32>
    %c1_43 = arith.constant 1 : index
    %c8_44 = arith.constant 8 : index
    %c0_45 = arith.constant 0 : index
    %38 = vector.load %arg10[%c1_43, %c8_44, %c0_45] : memref<18x32x8xf32, #tpu.memory_space<vmem>>, vector<16x16x8xf32>
    tpu.vector_store %arg10[%c1_43, %c8_44, %c0_45], %37 {strides = array<i32>} : memref<18x32x8xf32, #tpu.memory_space<vmem>>, vector<16x16x8xf32>,
    %c0_46 = arith.constant 0 : index
    %c7_47 = arith.constant 7 : index
    %c0_48 = arith.constant 0 : index
    %39 = vector.load %arg10[%c0_46, %c7_47, %c0_48] : memref<18x32x8xf32, #tpu.memory_space<vmem>>, vector<16x16x8xf32>
    %40 = vector.shape_cast %39 : vector<16x16x8xf32> to vector<256x8xf32>
    %c0_49 = arith.constant 0 : index
    %c8_50 = arith.constant 8 : index
    %c0_51 = arith.constant 0 : index
    %41 = vector.load %arg10[%c0_49, %c8_50, %c0_51] : memref<18x32x8xf32, #tpu.memory_space<vmem>>, vector<16x16x8xf32>
    %42 = vector.shape_cast %41 : vector<16x16x8xf32> to vector<256x8xf32>
    %c0_52 = arith.constant 0 : index
    %c9_53 = arith.constant 9 : index
    %c0_54 = arith.constant 0 : index
    %43 = vector.load %arg10[%c0_52, %c9_53, %c0_54] : memref<18x32x8xf32, #tpu.memory_space<vmem>>, vector<16x16x8xf32>
    %44 = vector.shape_cast %43 : vector<16x16x8xf32> to vector<256x8xf32>
    %c1_55 = arith.constant 1 : index
    %c7_56 = arith.constant 7 : index
    %c0_57 = arith.constant 0 : index
    %45 = vector.load %arg10[%c1_55, %c7_56, %c0_57] : memref<18x32x8xf32, #tpu.memory_space<vmem>>, vector<16x16x8xf32>
    %46 = vector.shape_cast %45 : vector<16x16x8xf32> to vector<256x8xf32>
    %c1_58 = arith.constant 1 : index
    %c8_59 = arith.constant 8 : index
    %c0_60 = arith.constant 0 : index
    %47 = vector.load %arg10[%c1_58, %c8_59, %c0_60] : memref<18x32x8xf32, #tpu.memory_space<vmem>>, vector<16x16x8xf32>
    %48 = vector.shape_cast %47 : vector<16x16x8xf32> to vector<256x8xf32>
    %c1_61 = arith.constant 1 : index
    %c9_62 = arith.constant 9 : index
    %c0_63 = arith.constant 0 : index
    %49 = vector.load %arg10[%c1_61, %c9_62, %c0_63] : memref<18x32x8xf32, #tpu.memory_space<vmem>>, vector<16x16x8xf32>
    %50 = vector.shape_cast %49 : vector<16x16x8xf32> to vector<256x8xf32>
    %c2_64 = arith.constant 2 : index
    %c7_65 = arith.constant 7 : index
    %c0_66 = arith.constant 0 : index
    %51 = vector.load %arg10[%c2_64, %c7_65, %c0_66] : memref<18x32x8xf32, #tpu.memory_space<vmem>>, vector<16x16x8xf32>
    %52 = vector.shape_cast %51 : vector<16x16x8xf32> to vector<256x8xf32>
    %c2_67 = arith.constant 2 : index
    %c8_68 = arith.constant 8 : index
    %c0_69 = arith.constant 0 : index
    %53 = vector.load %arg10[%c2_67, %c8_68, %c0_69] : memref<18x32x8xf32, #tpu.memory_space<vmem>>, vector<16x16x8xf32>
    %54 = vector.shape_cast %53 : vector<16x16x8xf32> to vector<256x8xf32>
    %c2_70 = arith.constant 2 : index
    %c9_71 = arith.constant 9 : index
    %c0_72 = arith.constant 0 : index
    %55 = vector.load %arg10[%c2_70, %c9_71, %c0_72] : memref<18x32x8xf32, #tpu.memory_space<vmem>>, vector<16x16x8xf32>
    %56 = vector.shape_cast %55 : vector<16x16x8xf32> to vector<256x8xf32>
    %57 = tpu.concatenate %40, %42, %44, %46, %48, %50, %52, %54, %56 in 1 : vector<256x8xf32>, vector<256x8xf32>, vector<256x8xf32>, vector<256x8xf32>, vector<256x8xf32>, vector<256x8xf32>, vector<256x8xf32>, vector<256x8xf32>, vector<256x8xf32> -> vector<256x72xf32>
    %58 = arith.truncf %57 : vector<256x72xf32> to vector<256x72xbf16>
    %c0_73 = arith.constant 0 : index
    %c0_74 = arith.constant 0 : index
    %59 = vector.load %arg5[%c0_73, %c0_74] : memref<72x8xbf16, #tpu.memory_space<vmem>>, vector<72x8xbf16>
    %cst_75 = arith.constant dense<0.000000e+00> : vector<256x8xf32>
    %60 = tpu.matmul %58, %59, %cst_75 {dimension_numbers = #tpu.dot_dimension_numbers<[1], [0], [0], [1], [0, 0, 1, 1], [], []>} : vector<256x72xbf16>, vector<72x8xbf16>, vector<256x8xf32> -> vector<256x8xf32>
    %c0_76 = arith.constant 0 : index
    %c0_77 = arith.constant 0 : index
    %61 = vector.load %arg6[%c0_76, %c0_77] : memref<1x8xf32, #tpu.memory_space<vmem>>, vector<1x8xf32>
    %62 = vector.broadcast %61 : vector<1x8xf32> to vector<256x8xf32>
    %63 = arith.mulf %60, %62 : vector<256x8xf32>
    %c0_78 = arith.constant 0 : index
    %c0_79 = arith.constant 0 : index
    %64 = vector.load %arg7[%c0_78, %c0_79] : memref<1x8xf32, #tpu.memory_space<vmem>>, vector<1x8xf32>
    %65 = vector.broadcast %64 : vector<1x8xf32> to vector<256x8xf32>
    %66 = arith.addf %63, %65 : vector<256x8xf32>
    %cst_80 = arith.constant 0.000000e+00 : f32
    %67 = vector.broadcast %cst_80 : f32 to vector<256x8xf32>
    %68 = arith.maximumf %66, %67 : vector<256x8xf32>
    %69 = vector.shape_cast %68 : vector<256x8xf32> to vector<1x16x16x8xf32>
    %c0_81 = arith.constant 0 : index
    %c0_82 = arith.constant 0 : index
    %c0_83 = arith.constant 0 : index
    %c0_84 = arith.constant 0 : index
    %70 = vector.load %arg8[%c0_81, %c0_82, %c0_83, %c0_84] : memref<1x16x16x8xf32, #tpu.memory_space<vmem>>, vector<1x16x16x8xf32>
    tpu.vector_store %arg8[%c0_81, %c0_82, %c0_83, %c0_84], %69 {strides = array<i32>} : memref<1x16x16x8xf32, #tpu.memory_space<vmem>>, vector<1x16x16x8xf32>,
    return
  }
  func.func @transform_0(%arg0: i32) -> (i32, i32, i32, i32) {
    %c0_i32 = arith.constant 0 : i32
    %c0_i32_0 = arith.constant 0 : i32
    %c0_i32_1 = arith.constant 0 : i32
    %c0_i32_2 = arith.constant 0 : i32
    return %arg0, %c0_i32, %c0_i32_0, %c0_i32_1 : i32, i32, i32, i32
  }
  func.func @transform_1(%arg0: i32) -> (i32, i32) {
    %c0_i32 = arith.constant 0 : i32
    %c0_i32_0 = arith.constant 0 : i32
    %c0_i32_1 = arith.constant 0 : i32
    return %c0_i32, %c0_i32_0 : i32, i32
  }
  func.func @transform_2(%arg0: i32) -> (i32, i32) {
    %c0_i32 = arith.constant 0 : i32
    %c0_i32_0 = arith.constant 0 : i32
    %c0_i32_1 = arith.constant 0 : i32
    return %c0_i32, %c0_i32_0 : i32, i32
  }
  func.func @transform_3(%arg0: i32) -> (i32, i32) {
    %c0_i32 = arith.constant 0 : i32
    %c0_i32_0 = arith.constant 0 : i32
    %c0_i32_1 = arith.constant 0 : i32
    return %c0_i32, %c0_i32_0 : i32, i32
  }
  func.func @transform_4(%arg0: i32) -> (i32, i32) {
    %c0_i32 = arith.constant 0 : i32
    %c0_i32_0 = arith.constant 0 : i32
    %c0_i32_1 = arith.constant 0 : i32
    return %c0_i32, %c0_i32_0 : i32, i32
  }
  func.func @transform_5(%arg0: i32) -> (i32, i32) {
    %c0_i32 = arith.constant 0 : i32
    %c0_i32_0 = arith.constant 0 : i32
    %c0_i32_1 = arith.constant 0 : i32
    return %c0_i32, %c0_i32_0 : i32, i32
  }
  func.func @transform_6(%arg0: i32) -> (i32, i32) {
    %c0_i32 = arith.constant 0 : i32
    %c0_i32_0 = arith.constant 0 : i32
    %c0_i32_1 = arith.constant 0 : i32
    return %c0_i32, %c0_i32_0 : i32, i32
  }
  func.func @transform_7(%arg0: i32) -> (i32, i32, i32, i32) {
    %c0_i32 = arith.constant 0 : i32
    %c0_i32_0 = arith.constant 0 : i32
    %c0_i32_1 = arith.constant 0 : i32
    %c0_i32_2 = arith.constant 0 : i32
    return %arg0, %c0_i32, %c0_i32_0, %c0_i32_1 : i32, i32, i32, i32
  }
}

</mosaic_0001>

<llo_original>
// kernel: tpu_custom_call.1
$region0: #{tpu_custom_call.1}
  #allocation0 [shape = 'u32[]', space=smem, size = 0x4, offset = 0x4, fixed_abs, tag = 'smem constant byte address 0x4 - core index']
  #allocation1 [shape = 'u32[144,128]{1,0:T(1,128)}', space=vmem, size = 0x12000, scoped, tag = 'internal scratch']
  #allocation2 [shape = 'f32[18,32,4]{2,1,0:T(8,128)}', space=vmem, size = 0x48000, scoped, tag = 'scratch operand']
  #allocation3 [shape = 'f32[18,32,8]{2,1,0:T(8,128)}', space=vmem, size = 0x48000, scoped, tag = 'scratch operand']
  %s0 = inlined_call_operand.vmem [shape: f32[2,16,16,4], index: 0, kind: input, shape index: {}]
  %s1 = inlined_call_operand.vmem [shape: bf16[36,8], index: 1, kind: input, shape index: {}]
  %s2 = inlined_call_operand.vmem [shape: f32[1,8], index: 2, kind: input, shape index: {}]
  %s3 = inlined_call_operand.vmem [shape: f32[1,8], index: 3, kind: input, shape index: {}]
  %s4 = inlined_call_operand.vmem [shape: bf16[72,8], index: 4, kind: input, shape index: {}]
  %s5 = inlined_call_operand.vmem [shape: f32[1,8], index: 5, kind: input, shape index: {}]
  %s6 = inlined_call_operand.vmem [shape: f32[1,8], index: 6, kind: input, shape index: {}]
  %s7 = inlined_call_operand.vmem [shape: f32[2,16,16,8], index: 7, kind: output, shape index: {}]
  %s8 = sld [smem:[#allocation0]]
  $region61: #{tpu_custom_call.1} parent=0
    _
  %s10 = ssub.s32 1, %s8
  %s11 = scalar_select 0, %s10, %s8
  loop: start=0, step=1, limit=4
  $region2: #{tpu_custom_call.1} parent=0 // loop_pre_header
    _
  $region3: #{tpu_custom_call.1} parent=0 // loop_header
    %s13 = sphi 0, %s17
    %p14 = scmp.ge.s32.totalorder %s13, 4
    %s23 = sphi 0, %s25
    %s26 = sphi 0, %s23
    %s27 = sphi 0, %s26
    %s43 = sphi 0, %s27
    %s47 = sphi 0, %s47
    %s49 = sphi 0, %s47
    %s50 = sphi 0, %s49
    %s64 = sphi 0, %s50
    %s68 = sphi 0, %s68
    %s70 = sphi 0, %s68
    %s71 = sphi 0, %s70
    %s85 = sphi 0, %s71
    %s89 = sphi 0, %s89
    %s91 = sphi 0, %s89
    %s92 = sphi 0, %s91
    %s106 = sphi 0, %s92
    %s110 = sphi 0, %s110
    %s112 = sphi 0, %s110
    %s113 = sphi 0, %s112
    %s127 = sphi 0, %s113
    %s131 = sphi 0, %s131
    %s133 = sphi 0, %s131
    %s134 = sphi 0, %s133
    %s148 = sphi 0, %s134
    %s152 = sphi 0, %s152
    %s154 = sphi 0, %s152
    %s155 = sphi 0, %s154
    %s169 = sphi 0, %s155
    %s175 = sphi 0, %s177
    %s178 = sphi 0, %s175
    %s179 = sphi 0, %s178
    %s195 = sphi 0, %s179
  $region4: #{tpu_custom_call.1} parent=0 // loop_header_branch
    %16 = sbr.rel (%p14) target = $region8
  $region5: #{tpu_custom_call.1} parent=0 // loop_body
    %s18 = ssub.s32 %s13, 1
    %s19 = ssub.s32 %s13, 2
    %s20 = sadd.s32 %s13, 1
    %s21 = ssub.s32 %s13, %s20
    %p22 = scmp.eq.s32.totalorder %s21, 0
    %s24 = sadd.s32 %s23, 1
    %s25 = scalar_select %p22, %s23, %s24
    %p28 = pneg %p22
    %p29 = scmp.eq.s32.totalorder %s13, 1
    %p30 = por %p28, %p29
    %p31 = scmp.ne.s32.totalorder %s23, %s26
    %p32 = scmp.eq.s32.totalorder %s13, 0
    %p33 = por %p31, %p32
    %p34 = scmp.ne.s32.totalorder %s23, %s26
    %p35 = scmp.eq.s32.totalorder %s18, 1
    %p36 = por %p34, %p35
    %p37 = scmp.ne.s32.totalorder %s26, %s27
    %p38 = scmp.eq.s32.totalorder %s18, 0
    %p39 = por %p37, %p38
    %p40 = scmp.ne.s32.totalorder %s26, %s27
    %p41 = scmp.eq.s32.totalorder %s19, 1
    %p42 = por %p40, %p41
    %p44 = scmp.ne.s32.totalorder %s27, %s43
    %p45 = scmp.eq.s32.totalorder %s19, 0
    %p46 = por %p44, %p45
    %s48 = sadd.s32 %s47, 1
    %p51 = scmp.eq.s32.totalorder %s13, 1
    %p52 = scmp.ne.s32.totalorder %s47, %s49
    %p53 = scmp.eq.s32.totalorder %s13, 0
    %p54 = por %p52, %p53
    %p55 = scmp.ne.s32.totalorder %s47, %s49
    %p56 = scmp.eq.s32.totalorder %s18, 1
    %p57 = por %p55, %p56
    %p58 = scmp.ne.s32.totalorder %s49, %s50
    %p59 = scmp.eq.s32.totalorder %s18, 0
    %p60 = por %p58, %p59
    %p61 = scmp.ne.s32.totalorder %s49, %s50
    %p62 = scmp.eq.s32.totalorder %s19, 1
    %p63 = por %p61, %p62
    %p65 = scmp.ne.s32.totalorder %s50, %s64
    %p66 = scmp.eq.s32.totalorder %s19, 0
    %p67 = por %p65, %p66
    %s69 = sadd.s32 %s68, 1
    %p72 = scmp.eq.s32.totalorder %s13, 1
    %p73 = scmp.ne.s32.totalorder %s68, %s70
    %p74 = scmp.eq.s32.totalorder %s13, 0
    %p75 = por %p73, %p74
    %p76 = scmp.ne.s32.totalorder %s68, %s70
    %p77 = scmp.eq.s32.totalorder %s18, 1
    %p78 = por %p76, %p77
    %p79 = scmp.ne.s32.totalorder %s70, %s71
    %p80 = scmp.eq.s32.totalorder %s18, 0
    %p81 = por %p79, %p80
    %p82 = scmp.ne.s32.totalorder %s70, %s71
    %p83 = scmp.eq.s32.totalorder %s19, 1
    %p84 = por %p82, %p83
    %p86 = scmp.ne.s32.totalorder %s71, %s85
    %p87 = scmp.eq.s32.totalorder %s19, 0
    %p88 = por %p86, %p87
    %s90 = sadd.s32 %s89, 1
    %p93 = scmp.eq.s32.totalorder %s13, 1
    %p94 = scmp.ne.s32.totalorder %s89, %s91
    %p95 = scmp.eq.s32.totalorder %s13, 0
    %p96 = por %p94, %p95
    %p97 = scmp.ne.s32.totalorder %s89, %s91
    %p98 = scmp.eq.s32.totalorder %s18, 1
    %p99 = por %p97, %p98
    %p100 = scmp.ne.s32.totalorder %s91, %s92
    %p101 = scmp.eq.s32.totalorder %s18, 0
    %p102 = por %p100, %p101
    %p103 = scmp.ne.s32.totalorder %s91, %s92
    %p104 = scmp.eq.s32.totalorder %s19, 1
    %p105 = por %p103, %p104
    %p107 = scmp.ne.s32.totalorder %s92, %s106
    %p108 = scmp.eq.s32.totalorder %s19, 0
    %p109 = por %p107, %p108
    %s111 = sadd.s32 %s110, 1
    %p114 = scmp.eq.s32.totalorder %s13, 1
    %p115 = scmp.ne.s32.totalorder %s110, %s112
    %p116 = scmp.eq.s32.totalorder %s13, 0
    %p117 = por %p115, %p116
    %p118 = scmp.ne.s32.totalorder %s110, %s112
    %p119 = scmp.eq.s32.totalorder %s18, 1
    %p120 = por %p118, %p119
    %p121 = scmp.ne.s32.totalorder %s112, %s113
    %p122 = scmp.eq.s32.totalorder %s18, 0
    %p123 = por %p121, %p122
    %p124 = scmp.ne.s32.totalorder %s112, %s113
    %p125 = scmp.eq.s32.totalorder %s19, 1
    %p126 = por %p124, %p125
    %p128 = scmp.ne.s32.totalorder %s113, %s127
    %p129 = scmp.eq.s32.totalorder %s19, 0
    %p130 = por %p128, %p129
    %s132 = sadd.s32 %s131, 1
    %p135 = scmp.eq.s32.totalorder %s13, 1
    %p136 = scmp.ne.s32.totalorder %s131, %s133
    %p137 = scmp.eq.s32.totalorder %s13, 0
    %p138 = por %p136, %p137
    %p139 = scmp.ne.s32.totalorder %s131, %s133
    %p140 = scmp.eq.s32.totalorder %s18, 1
    %p141 = por %p139, %p140
    %p142 = scmp.ne.s32.totalorder %s133, %s134
    %p143 = scmp.eq.s32.totalorder %s18, 0
    %p144 = por %p142, %p143
    %p145 = scmp.ne.s32.totalorder %s133, %s134
    %p146 = scmp.eq.s32.totalorder %s19, 1
    %p147 = por %p145, %p146
    %p149 = scmp.ne.s32.totalorder %s134, %s148
    %p150 = scmp.eq.s32.totalorder %s19, 0
    %p151 = por %p149, %p150
    %s153 = sadd.s32 %s152, 1
    %p156 = scmp.eq.s32.totalorder %s13, 1
    %p157 = scmp.ne.s32.totalorder %s152, %s154
    %p158 = scmp.eq.s32.totalorder %s13, 0
    %p159 = por %p157, %p158
    %p160 = scmp.ne.s32.totalorder %s152, %s154
    %p161 = scmp.eq.s32.totalorder %s18, 1
    %p162 = por %p160, %p161
    %p163 = scmp.ne.s32.totalorder %s154, %s155
    %p164 = scmp.eq.s32.totalorder %s18, 0
    %p165 = por %p163, %p164
    %p166 = scmp.ne.s32.totalorder %s154, %s155
    %p167 = scmp.eq.s32.totalorder %s19, 1
    %p168 = por %p166, %p167
    %p170 = scmp.ne.s32.totalorder %s155, %s169
    %p171 = scmp.eq.s32.totalorder %s19, 0
    %p172 = por %p170, %p171
    %s173 = ssub.s32 %s13, %s20
    %p174 = scmp.eq.s32.totalorder %s173, 0
    %s176 = sadd.s32 %s175, 1
    %s177 = scalar_select %p174, %s175, %s176
    %p180 = pneg %p174
    %p181 = scmp.eq.s32.totalorder %s13, 1
    %p182 = por %p180, %p181
    %p183 = scmp.ne.s32.totalorder %s175, %s178
    %p184 = scmp.eq.s32.totalorder %s13, 0
    %p185 = por %p183, %p184
    %p186 = scmp.ne.s32.totalorder %s175, %s178
    %p187 = scmp.eq.s32.totalorder %s18, 1
    %p188 = por %p186, %p187
    %p189 = scmp.ne.s32.totalorder %s178, %s179
    %p190 = scmp.eq.s32.totalorder %s18, 0
    %p191 = por %p189, %p190
    %p192 = scmp.ne.s32.totalorder %s178, %s179
    %p193 = scmp.eq.s32.totalorder %s19, 1
    %p194 = por %p192, %p193
    %p196 = scmp.ne.s32.totalorder %s179, %s195
    %p197 = scmp.eq.s32.totalorder %s19, 0
    %p198 = por %p196, %p197
    %p199 = scmp.le.s32.totalorder 1, %s13
    %p200 = scmp.lt.s32.totalorder %s13, 3
    %p201 = pnand %p199, %p200
    %p202 = pneg %p201
    // Predicated region
    $region9: #{tpu_custom_call.1} parent=5 // pred_check
      _
    $region10: #{tpu_custom_call.1} parent=5 // pred_check_branch
      %204 = sbr.rel (%p201) target = $region12
    $region11: #{tpu_custom_call.1} parent=5 // pred_region
      %s205 = ssub.s32 %s13, 1
      // Predicated region
      $region13: #{tpu_custom_call.1} parent=11 // pred_check
        %p206 = pneg %p60
      $region14: #{tpu_custom_call.1} parent=11 // pred_check_branch
        %208 = sbr.rel (%p206) target = $region16
      $region15: #{tpu_custom_call.1} parent=11 // pred_region
        _
      $region16: #{tpu_custom_call.1} parent=11 // pred_fallthru
        _
      // Predicated region
      $region17: #{tpu_custom_call.1} parent=11 // pred_check
        %p209 = pneg %p81
      $region18: #{tpu_custom_call.1} parent=11 // pred_check_branch
        %211 = sbr.rel (%p209) target = $region20
      $region19: #{tpu_custom_call.1} parent=11 // pred_region
        _
      $region20: #{tpu_custom_call.1} parent=11 // pred_fallthru
        _
      // Predicated region
      $region21: #{tpu_custom_call.1} parent=11 // pred_check
        %p212 = pneg %p102
      $region22: #{tpu_custom_call.1} parent=11 // pred_check_branch
        %214 = sbr.rel (%p212) target = $region24
      $region23: #{tpu_custom_call.1} parent=11 // pred_region
        _
      $region24: #{tpu_custom_call.1} parent=11 // pred_fallthru
        _
      // Predicated region
      $region25: #{tpu_custom_call.1} parent=11 // pred_check
        %p215 = pneg %p123
      $region26: #{tpu_custom_call.1} parent=11 // pred_check_branch
        %217 = sbr.rel (%p215) target = $region28
      $region27: #{tpu_custom_call.1} parent=11 // pred_region
        _
      $region28: #{tpu_custom_call.1} parent=11 // pred_fallthru
        _
      // Predicated region
      $region29: #{tpu_custom_call.1} parent=11 // pred_check
        %p218 = pneg %p144
      $region30: #{tpu_custom_call.1} parent=11 // pred_check_branch
        %220 = sbr.rel (%p218) target = $region32
      $region31: #{tpu_custom_call.1} parent=11 // pred_region
        _
      $region32: #{tpu_custom_call.1} parent=11 // pred_fallthru
        _
      // Predicated region
      $region33: #{tpu_custom_call.1} parent=11 // pred_check
        %p221 = pneg %p165
      $region34: #{tpu_custom_call.1} parent=11 // pred_check_branch
        %223 = sbr.rel (%p221) target = $region36
      $region35: #{tpu_custom_call.1} parent=11 // pred_region
        _
      $region36: #{tpu_custom_call.1} parent=11 // pred_fallthru
        _
    $region12: #{tpu_custom_call.1} parent=5 // pred_fallthru
      _
    %p224 = scmp.lt.s32.totalorder %s13, 2
    // Predicated region
    $region37: #{tpu_custom_call.1} parent=5 // pred_check
      %p225 = pneg %p224
    $region38: #{tpu_custom_call.1} parent=5 // pred_check_branch
      %227 = sbr.rel (%p225) target = $region40
    $region39: #{tpu_custom_call.1} parent=5 // pred_region
      // Predicated region
      $region41: #{tpu_custom_call.1} parent=39 // pred_check
        %p228 = pneg %p33
      $region42: #{tpu_custom_call.1} parent=39 // pred_check_branch
        %230 = sbr.rel (%p228) target = $region44
      $region43: #{tpu_custom_call.1} parent=39 // pred_region
        %p231 = scmp.lt.s32.totalorder %s13, 1
        %s232 = scalar_select %p231, %s13, 1
        %s233 = smul.addr %s232, 32
        %s234 = smul.addr %s233, 8
        %s235 = scalar_lea.vmem %s0, %s234
      $region44: #{tpu_custom_call.1} parent=39 // pred_fallthru
        _
    $region40: #{tpu_custom_call.1} parent=5 // pred_fallthru
      _
    %p236 = scmp.le.s32.totalorder 1, %s13
    %p237 = scmp.lt.s32.totalorder %s13, 3
    %p238 = pnand %p236, %p237
    %p239 = pneg %p238
    // Predicated region
    $region45: #{tpu_custom_call.1} parent=5 // pred_check
      _
    $region46: #{tpu_custom_call.1} parent=5 // pred_check_branch
      %241 = sbr.rel (%p238) target = $region48
    $region47: #{tpu_custom_call.1} parent=5 // pred_region
      %s242 = ssub.s32 %s13, 1
      %p243 = scmp.lt.s32.totalorder %s18, 1
      %s244 = scalar_select %p243, %s18, 1
      %s245 = smul.addr %s244, 32
      %s246 = smul.addr %s245, 8
      %s247 = scalar_lea.vmem %s0, %s246
      %p248 = pneg %p39
      %p249 = pneg %p36
      %p250 = pneg %p60
      %p251 = pneg %p57
      %p252 = pneg %p81
      %p253 = pneg %p78
      %p254 = pneg %p102
      %p255 = pneg %p99
      %p256 = pneg %p123
      %p257 = pneg %p120
      %p258 = pneg %p144
      %p259 = pneg %p141
      %p260 = pneg %p165
      %p261 = pneg %p162
      %p262 = pneg %p191
      %p263 = pneg %p188
      %p264 = scmp.lt.s32.totalorder %s18, 1
      %s265 = scalar_select %p264, %s18, 1
      %s266 = smul.addr %s265, 32
      %s267 = smul.addr %s266, 8
      %s268 = scalar_lea.vmem %s7, %s267
      %p269 = scmp.lt.s32.totalorder %s18, 1
      %s270 = scalar_select %p269, %s18, 1
      %s271 = smul.addr %s270, 32
      %s272 = smul.addr %s271, 8
      %s273 = scalar_lea.vmem %s0, %s272
      %p274 = scmp.lt.s32.totalorder %s18, 1
      %s275 = scalar_select %p274, %s18, 1
      %s276 = smul.addr %s275, 32
      %s277 = smul.addr %s276, 8
      %s278 = scalar_lea.vmem %s7, %s277
      %vm280 = vcmask 31744
      %281 = vst.msk [vmem:[#allocation2] sm:$0xff] %vm280, 0.0
      %282 = vst.msk [vmem:[#allocation2 + $0x8] sm:$0xff] %vm280, 0.0
      %283 = vst.msk [vmem:[#allocation2 + $0x10] sm:$0xff] %vm280, 0.0
      %284 = vst.msk [vmem:[#allocation2 + $0x18] sm:$0xff] %vm280, 0.0
      %285 = vst.msk [vmem:[#allocation2 + $0x20] sm:$0xff] %vm280, 0.0
      %286 = vst.msk [vmem:[#allocation2 + $0x28] sm:$0xff] %vm280, 0.0
      %287 = vst.msk [vmem:[#allocation2 + $0x30] sm:$0xff] %vm280, 0.0
      %288 = vst.msk [vmem:[#allocation2 + $0x38] sm:$0xff] %vm280, 0.0
      %289 = vst.msk [vmem:[#allocation2 + $0x40] sm:$0xff] %vm280, 0.0
      %290 = vst.msk [vmem:[#allocation2 + $0x48] sm:$0xff] %vm280, 0.0
      %291 = vst.msk [vmem:[#allocation2 + $0x50] sm:$0xff] %vm280, 0.0
      %292 = vst.msk [vmem:[#allocation2 + $0x58] sm:$0xff] %vm280, 0.0
      %293 = vst.msk [vmem:[#allocation2 + $0x60] sm:$0xff] %vm280, 0.0
      %294 = vst.msk [vmem:[#allocation2 + $0x68] sm:$0xff] %vm280, 0.0
      %295 = vst.msk [vmem:[#allocation2 + $0x70] sm:$0xff] %vm280, 0.0
      %296 = vst.msk [vmem:[#allocation2 + $0x78] sm:$0xff] %vm280, 0.0
      %297 = vst.msk [vmem:[#allocation2 + $0x80] sm:$0xff] %vm280, 0.0
      %298 = vst.msk [vmem:[#allocation2 + $0x88] sm:$0xff] %vm280, 0.0
      %299 = vst.msk [vmem:[#allocation2 + $0x90] sm:$0xff] %vm280, 0.0
      %300 = vst.msk [vmem:[#allocation2 + $0x98] sm:$0xff] %vm280, 0.0
      %301 = vst.msk [vmem:[#allocation2 + $0xa0] sm:$0xff] %vm280, 0.0
      %302 = vst.msk [vmem:[#allocation2 + $0xa8] sm:$0xff] %vm280, 0.0
      %303 = vst.msk [vmem:[#allocation2 + $0xb0] sm:$0xff] %vm280, 0.0
      %304 = vst.msk [vmem:[#allocation2 + $0xb8] sm:$0xff] %vm280, 0.0
      %305 = vst.msk [vmem:[#allocation2 + $0xc0] sm:$0xff] %vm280, 0.0
      %306 = vst.msk [vmem:[#allocation2 + $0xc8] sm:$0xff] %vm280, 0.0
      %307 = vst.msk [vmem:[#allocation2 + $0xd0] sm:$0xff] %vm280, 0.0
      %308 = vst.msk [vmem:[#allocation2 + $0xd8] sm:$0xff] %vm280, 0.0
      %309 = vst.msk [vmem:[#allocation2 + $0xe0] sm:$0xff] %vm280, 0.0
      %310 = vst.msk [vmem:[#allocation2 + $0xe8] sm:$0xff] %vm280, 0.0
      %311 = vst.msk [vmem:[#allocation2 + $0xf0] sm:$0xff] %vm280, 0.0
      %312 = vst.msk [vmem:[#allocation2 + $0xf8] sm:$0xff] %vm280, 0.0
      %313 = vst.msk [vmem:[#allocation2 + $0x100] sm:$0xff] %vm280, 0.0
      %314 = vst.msk [vmem:[#allocation2 + $0x108] sm:$0xff] %vm280, 0.0
      %315 = vst.msk [vmem:[#allocation2 + $0x110] sm:$0xff] %vm280, 0.0
      %316 = vst.msk [vmem:[#allocation2 + $0x118] sm:$0xff] %vm280, 0.0
      %317 = vst.msk [vmem:[#allocation2 + $0x120] sm:$0xff] %vm280, 0.0
      %318 = vst.msk [vmem:[#allocation2 + $0x128] sm:$0xff] %vm280, 0.0
      %319 = vst.msk [vmem:[#allocation2 + $0x130] sm:$0xff] %vm280, 0.0
      %320 = vst.msk [vmem:[#allocation2 + $0x138] sm:$0xff] %vm280, 0.0
      %321 = vst.msk [vmem:[#allocation2 + $0x140] sm:$0xff] %vm280, 0.0
      %322 = vst.msk [vmem:[#allocation2 + $0x148] sm:$0xff] %vm280, 0.0
      %323 = vst.msk [vmem:[#allocation2 + $0x150] sm:$0xff] %vm280, 0.0
      %324 = vst.msk [vmem:[#allocation2 + $0x158] sm:$0xff] %vm280, 0.0
      %325 = vst.msk [vmem:[#allocation2 + $0x160] sm:$0xff] %vm280, 0.0
      %326 = vst.msk [vmem:[#allocation2 + $0x168] sm:$0xff] %vm280, 0.0
      %327 = vst.msk [vmem:[#allocation2 + $0x170] sm:$0xff] %vm280, 0.0
      %328 = vst.msk [vmem:[#allocation2 + $0x178] sm:$0xff] %vm280, 0.0
      %329 = vst.msk [vmem:[#allocation2 + $0x180] sm:$0xff] %vm280, 0.0
      %330 = vst.msk [vmem:[#allocation2 + $0x188] sm:$0xff] %vm280, 0.0
      %331 = vst.msk [vmem:[#allocation2 + $0x190] sm:$0xff] %vm280, 0.0
      %332 = vst.msk [vmem:[#allocation2 + $0x198] sm:$0xff] %vm280, 0.0
      %333 = vst.msk [vmem:[#allocation2 + $0x1a0] sm:$0xff] %vm280, 0.0
      %334 = vst.msk [vmem:[#allocation2 + $0x1a8] sm:$0xff] %vm280, 0.0
      %335 = vst.msk [vmem:[#allocation2 + $0x1b0] sm:$0xff] %vm280, 0.0
      %336 = vst.msk [vmem:[#allocation2 + $0x1b8] sm:$0xff] %vm280, 0.0
      %337 = vst.msk [vmem:[#allocation2 + $0x1c0] sm:$0xff] %vm280, 0.0
      %338 = vst.msk [vmem:[#allocation2 + $0x1c8] sm:$0xff] %vm280, 0.0
      %339 = vst.msk [vmem:[#allocation2 + $0x1d0] sm:$0xff] %vm280, 0.0
      %340 = vst.msk [vmem:[#allocation2 + $0x1d8] sm:$0xff] %vm280, 0.0
      %341 = vst.msk [vmem:[#allocation2 + $0x1e0] sm:$0xff] %vm280, 0.0
      %342 = vst.msk [vmem:[#allocation2 + $0x1e8] sm:$0xff] %vm280, 0.0
      %343 = vst.msk [vmem:[#allocation2 + $0x1f0] sm:$0xff] %vm280, 0.0
      %344 = vst.msk [vmem:[#allocation2 + $0x1f8] sm:$0xff] %vm280, 0.0
      %345 = vst.msk [vmem:[#allocation2 + $0x200] sm:$0xff] %vm280, 0.0
      %346 = vst.msk [vmem:[#allocation2 + $0x208] sm:$0xff] %vm280, 0.0
      %347 = vst.msk [vmem:[#allocation2 + $0x210] sm:$0xff] %vm280, 0.0
      %348 = vst.msk [vmem:[#allocation2 + $0x218] sm:$0xff] %vm280, 0.0
      %349 = vst.msk [vmem:[#allocation2 + $0x220] sm:$0xff] %vm280, 0.0
      %350 = vst.msk [vmem:[#allocation2 + $0x228] sm:$0xff] %vm280, 0.0
      %351 = vst.msk [vmem:[#allocation2 + $0x230] sm:$0xff] %vm280, 0.0
      %352 = vst.msk [vmem:[#allocation2 + $0x238] sm:$0xff] %vm280, 0.0
      %v353 = vld [vmem:[%s273] sm:$0xff]
      %v354 = vld [vmem:[%s273 + $0x8] sm:$0xff]
      %v355 = vld [vmem:[%s273 + $0x10] sm:$0xff]
      %v356 = vld [vmem:[%s273 + $0x18] sm:$0xff]
      %v357 = vld [vmem:[%s273 + $0x20] sm:$0xff]
      %v358 = vld [vmem:[%s273 + $0x28] sm:$0xff]
      %v359 = vld [vmem:[%s273 + $0x30] sm:$0xff]
      %v360 = vld [vmem:[%s273 + $0x38] sm:$0xff]
      %v361 = vld [vmem:[%s273 + $0x40] sm:$0xff]
      %v362 = vld [vmem:[%s273 + $0x48] sm:$0xff]
      %v363 = vld [vmem:[%s273 + $0x50] sm:$0xff]
      %v364 = vld [vmem:[%s273 + $0x58] sm:$0xff]
      %v365 = vld [vmem:[%s273 + $0x60] sm:$0xff]
      %v366 = vld [vmem:[%s273 + $0x68] sm:$0xff]
      %v367 = vld [vmem:[%s273 + $0x70] sm:$0xff]
      %v368 = vld [vmem:[%s273 + $0x78] sm:$0xff]
      %v369 = vld [vmem:[%s273 + $0x80] sm:$0xff]
      %v370 = vld [vmem:[%s273 + $0x88] sm:$0xff]
      %v371 = vld [vmem:[%s273 + $0x90] sm:$0xff]
      %v372 = vld [vmem:[%s273 + $0x98] sm:$0xff]
      %v373 = vld [vmem:[%s273 + $0xa0] sm:$0xff]
      %v374 = vld [vmem:[%s273 + $0xa8] sm:$0xff]
      %v375 = vld [vmem:[%s273 + $0xb0] sm:$0xff]
      %v376 = vld [vmem:[%s273 + $0xb8] sm:$0xff]
      %v377 = vld [vmem:[%s273 + $0xc0] sm:$0xff]
      %v378 = vld [vmem:[%s273 + $0xc8] sm:$0xff]
      %v379 = vld [vmem:[%s273 + $0xd0] sm:$0xff]
      %v380 = vld [vmem:[%s273 + $0xd8] sm:$0xff]
      %v381 = vld [vmem:[%s273 + $0xe0] sm:$0xff]
      %v382 = vld [vmem:[%s273 + $0xe8] sm:$0xff]
      %v383 = vld [vmem:[%s273 + $0xf0] sm:$0xff]
      %v384 = vld [vmem:[%s273 + $0xf8] sm:$0xff]
      %s385 = scalar_lea.vmem [#allocation2], 32
      %386 = vst.msk [vmem:[%s385 + $0x8] sm:$0xff] %vm280, %v353
      %387 = vst.msk [vmem:[%s385 + $0x10] sm:$0xff] %vm280, %v354
      %388 = vst.msk [vmem:[%s385 + $0x28] sm:$0xff] %vm280, %v355
      %389 = vst.msk [vmem:[%s385 + $0x30] sm:$0xff] %vm280, %v356
      %390 = vst.msk [vmem:[%s385 + $0x48] sm:$0xff] %vm280, %v357
      %391 = vst.msk [vmem:[%s385 + $0x50] sm:$0xff] %vm280, %v358
      %392 = vst.msk [vmem:[%s385 + $0x68] sm:$0xff] %vm280, %v359
      %393 = vst.msk [vmem:[%s385 + $0x70] sm:$0xff] %vm280, %v360
      %394 = vst.msk [vmem:[%s385 + $0x88] sm:$0xff] %vm280, %v361
      %395 = vst.msk [vmem:[%s385 + $0x90] sm:$0xff] %vm280, %v362
      %396 = vst.msk [vmem:[%s385 + $0xa8] sm:$0xff] %vm280, %v363
      %397 = vst.msk [vmem:[%s385 + $0xb0] sm:$0xff] %vm280, %v364
      %398 = vst.msk [vmem:[%s385 + $0xc8] sm:$0xff] %vm280, %v365
      %399 = vst.msk [vmem:[%s385 + $0xd0] sm:$0xff] %vm280, %v366
      %400 = vst.msk [vmem:[%s385 + $0xe8] sm:$0xff] %vm280, %v367
      %401 = vst.msk [vmem:[%s385 + $0xf0] sm:$0xff] %vm280, %v368
      %402 = vst.msk [vmem:[%s385 + $0x108] sm:$0xff] %vm280, %v369
      %403 = vst.msk [vmem:[%s385 + $0x110] sm:$0xff] %vm280, %v370
      %404 = vst.msk [vmem:[%s385 + $0x128] sm:$0xff] %vm280, %v371
      %405 = vst.msk [vmem:[%s385 + $0x130] sm:$0xff] %vm280, %v372
      %406 = vst.msk [vmem:[%s385 + $0x148] sm:$0xff] %vm280, %v373
      %407 = vst.msk [vmem:[%s385 + $0x150] sm:$0xff] %vm280, %v374
      %408 = vst.msk [vmem:[%s385 + $0x168] sm:$0xff] %vm280, %v375
      %409 = vst.msk [vmem:[%s385 + $0x170] sm:$0xff] %vm280, %v376
      %410 = vst.msk [vmem:[%s385 + $0x188] sm:$0xff] %vm280, %v377
      %411 = vst.msk [vmem:[%s385 + $0x190] sm:$0xff] %vm280, %v378
      %412 = vst.msk [vmem:[%s385 + $0x1a8] sm:$0xff] %vm280, %v379
      %413 = vst.msk [vmem:[%s385 + $0x1b0] sm:$0xff] %vm280, %v380
      %414 = vst.msk [vmem:[%s385 + $0x1c8] sm:$0xff] %vm280, %v381
      %415 = vst.msk [vmem:[%s385 + $0x1d0] sm:$0xff] %vm280, %v382
      %416 = vst.msk [vmem:[%s385 + $0x1e8] sm:$0xff] %vm280, %v383
      %417 = vst.msk [vmem:[%s385 + $0x1f0] sm:$0xff] %vm280, %v384
      %v418 = vld [vmem:[#allocation2 + $0x7] sm:$0xff]
      %v419 = vld [vmem:[#allocation2 + $0xf] sm:$0xff]
      %v420 = vld [vmem:[#allocation2 + $0x27] sm:$0xff]
      %v421 = vld [vmem:[#allocation2 + $0x2f] sm:$0xff]
      %v422 = vld [vmem:[#allocation2 + $0x47] sm:$0xff]
      %v423 = vld [vmem:[#allocation2 + $0x4f] sm:$0xff]
      %v424 = vld [vmem:[#allocation2 + $0x67] sm:$0xff]
      %v425 = vld [vmem:[#allocation2 + $0x6f] sm:$0xff]
      %v426 = vld [vmem:[#allocation2 + $0x87] sm:$0xff]
      %v427 = vld [vmem:[#allocation2 + $0x8f] sm:$0xff]
      %v428 = vld [vmem:[#allocation2 + $0xa7] sm:$0xff]
      %v429 = vld [vmem:[#allocation2 + $0xaf] sm:$0xff]
      %v430 = vld [vmem:[#allocation2 + $0xc7] sm:$0xff]
      %v431 = vld [vmem:[#allocation2 + $0xcf] sm:$0xff]
      %v432 = vld [vmem:[#allocation2 + $0xe7] sm:$0xff]
      %v433 = vld [vmem:[#allocation2 + $0xef] sm:$0xff]
      %v434 = vld [vmem:[#allocation2 + $0x107] sm:$0xff]
      %v435 = vld [vmem:[#allocation2 + $0x10f] sm:$0xff]
      %v436 = vld [vmem:[#allocation2 + $0x127] sm:$0xff]
      %v437 = vld [vmem:[#allocation2 + $0x12f] sm:$0xff]
      %v438 = vld [vmem:[#allocation2 + $0x147] sm:$0xff]
      %v439 = vld [vmem:[#allocation2 + $0x14f] sm:$0xff]
      %v440 = vld [vmem:[#allocation2 + $0x167] sm:$0xff]
      %v441 = vld [vmem:[#allocation2 + $0x16f] sm:$0xff]
      %v442 = vld [vmem:[#allocation2 + $0x187] sm:$0xff]
      %v443 = vld [vmem:[#allocation2 + $0x18f] sm:$0xff]
      %v444 = vld [vmem:[#allocation2 + $0x1a7] sm:$0xff]
      %v445 = vld [vmem:[#allocation2 + $0x1af] sm:$0xff]
      %v446 = vld [vmem:[#allocation2 + $0x1c7] sm:$0xff]
      %v447 = vld [vmem:[#allocation2 + $0x1cf] sm:$0xff]
      %v448 = vld [vmem:[#allocation2 + $0x1e7] sm:$0xff]
      %v449 = vld [vmem:[#allocation2 + $0x1ef] sm:$0xff]
      %v450 = vld [vmem:[#allocation2 + $0x8] sm:$0xff]
      %v451 = vld [vmem:[#allocation2 + $0x10] sm:$0xff]
      %v452 = vld [vmem:[#allocation2 + $0x28] sm:$0xff]
      %v453 = vld [vmem:[#allocation2 + $0x30] sm:$0xff]
      %v454 = vld [vmem:[#allocation2 + $0x48] sm:$0xff]
      %v455 = vld [vmem:[#allocation2 + $0x50] sm:$0xff]
      %v456 = vld [vmem:[#allocation2 + $0x68] sm:$0xff]
      %v457 = vld [vmem:[#allocation2 + $0x70] sm:$0xff]
      %v458 = vld [vmem:[#allocation2 + $0x88] sm:$0xff]
      %v459 = vld [vmem:[#allocation2 + $0x90] sm:$0xff]
      %v460 = vld [vmem:[#allocation2 + $0xa8] sm:$0xff]
      %v461 = vld [vmem:[#allocation2 + $0xb0] sm:$0xff]
      %v462 = vld [vmem:[#allocation2 + $0xc8] sm:$0xff]
      %v463 = vld [vmem:[#allocation2 + $0xd0] sm:$0xff]
      %v464 = vld [vmem:[#allocation2 + $0xe8] sm:$0xff]
      %v465 = vld [vmem:[#allocation2 + $0xf0] sm:$0xff]
      %v466 = vld [vmem:[#allocation2 + $0x108] sm:$0xff]
      %v467 = vld [vmem:[#allocation2 + $0x110] sm:$0xff]
      %v468 = vld [vmem:[#allocation2 + $0x128] sm:$0xff]
      %v469 = vld [vmem:[#allocation2 + $0x130] sm:$0xff]
      %v470 = vld [vmem:[#allocation2 + $0x148] sm:$0xff]
      %v471 = vld [vmem:[#allocation2 + $0x150] sm:$0xff]
      %v472 = vld [vmem:[#allocation2 + $0x168] sm:$0xff]
      %v473 = vld [vmem:[#allocation2 + $0x170] sm:$0xff]
      %v474 = vld [vmem:[#allocation2 + $0x188] sm:$0xff]
      %v475 = vld [vmem:[#allocation2 + $0x190] sm:$0xff]
      %v476 = vld [vmem:[#allocation2 + $0x1a8] sm:$0xff]
      %v477 = vld [vmem:[#allocation2 + $0x1b0] sm:$0xff]
      %v478 = vld [vmem:[#allocation2 + $0x1c8] sm:$0xff]
      %v479 = vld [vmem:[#allocation2 + $0x1d0] sm:$0xff]
      %v480 = vld [vmem:[#allocation2 + $0x1e8] sm:$0xff]
      %v481 = vld [vmem:[#allocation2 + $0x1f0] sm:$0xff]
      %v482 = vld [vmem:[#allocation2 + $0x9] sm:$0xff]
      %v483 = vld [vmem:[#allocation2 + $0x11] sm:$0xff]
      %v484 = vld [vmem:[#allocation2 + $0x29] sm:$0xff]
      %v485 = vld [vmem:[#allocation2 + $0x31] sm:$0xff]
      %v486 = vld [vmem:[#allocation2 + $0x49] sm:$0xff]
      %v487 = vld [vmem:[#allocation2 + $0x51] sm:$0xff]
      %v488 = vld [vmem:[#allocation2 + $0x69] sm:$0xff]
      %v489 = vld [vmem:[#allocation2 + $0x71] sm:$0xff]
      %v490 = vld [vmem:[#allocation2 + $0x89] sm:$0xff]
      %v491 = vld [vmem:[#allocation2 + $0x91] sm:$0xff]
      %v492 = vld [vmem:[#allocation2 + $0xa9] sm:$0xff]
      %v493 = vld [vmem:[#allocation2 + $0xb1] sm:$0xff]
      %v494 = vld [vmem:[#allocation2 + $0xc9] sm:$0xff]
      %v495 = vld [vmem:[#allocation2 + $0xd1] sm:$0xff]
      %v496 = vld [vmem:[#allocation2 + $0xe9] sm:$0xff]
      %v497 = vld [vmem:[#allocation2 + $0xf1] sm:$0xff]
      %v498 = vld [vmem:[#allocation2 + $0x109] sm:$0xff]
      %v499 = vld [vmem:[#allocation2 + $0x111] sm:$0xff]
      %v500 = vld [vmem:[#allocation2 + $0x129] sm:$0xff]
      %v501 = vld [vmem:[#allocation2 + $0x131] sm:$0xff]
      %v502 = vld [vmem:[#allocation2 + $0x149] sm:$0xff]
      %v503 = vld [vmem:[#allocation2 + $0x151] sm:$0xff]
      %v504 = vld [vmem:[#allocation2 + $0x169] sm:$0xff]
      %v505 = vld [vmem:[#allocation2 + $0x171] sm:$0xff]
      %v506 = vld [vmem:[#allocation2 + $0x189] sm:$0xff]
      %v507 = vld [vmem:[#allocation2 + $0x191] sm:$0xff]
      %v508 = vld [vmem:[#allocation2 + $0x1a9] sm:$0xff]
      %v509 = vld [vmem:[#allocation2 + $0x1b1] sm:$0xff]
      %v510 = vld [vmem:[#allocation2 + $0x1c9] sm:$0xff]
      %v511 = vld [vmem:[#allocation2 + $0x1d1] sm:$0xff]
      %v512 = vld [vmem:[#allocation2 + $0x1e9] sm:$0xff]
      %v513 = vld [vmem:[#allocation2 + $0x1f1] sm:$0xff]
      %v514 = vld [vmem:[%s385 + $0x7] sm:$0xff]
      %v515 = vld [vmem:[%s385 + $0xf] sm:$0xff]
      %v516 = vld [vmem:[%s385 + $0x27] sm:$0xff]
      %v517 = vld [vmem:[%s385 + $0x2f] sm:$0xff]
      %v518 = vld [vmem:[%s385 + $0x47] sm:$0xff]
      %v519 = vld [vmem:[%s385 + $0x4f] sm:$0xff]
      %v520 = vld [vmem:[%s385 + $0x67] sm:$0xff]
      %v521 = vld [vmem:[%s385 + $0x6f] sm:$0xff]
      %v522 = vld [vmem:[%s385 + $0x87] sm:$0xff]
      %v523 = vld [vmem:[%s385 + $0x8f] sm:$0xff]
      %v524 = vld [vmem:[%s385 + $0xa7] sm:$0xff]
      %v525 = vld [vmem:[%s385 + $0xaf] sm:$0xff]
      %v526 = vld [vmem:[%s385 + $0xc7] sm:$0xff]
      %v527 = vld [vmem:[%s385 + $0xcf] sm:$0xff]
      %v528 = vld [vmem:[%s385 + $0xe7] sm:$0xff]
      %v529 = vld [vmem:[%s385 + $0xef] sm:$0xff]
      %v530 = vld [vmem:[%s385 + $0x107] sm:$0xff]
      %v531 = vld [vmem:[%s385 + $0x10f] sm:$0xff]
      %v532 = vld [vmem:[%s385 + $0x127] sm:$0xff]
      %v533 = vld [vmem:[%s385 + $0x12f] sm:$0xff]
      %v534 = vld [vmem:[%s385 + $0x147] sm:$0xff]
      %v535 = vld [vmem:[%s385 + $0x14f] sm:$0xff]
      %v536 = vld [vmem:[%s385 + $0x167] sm:$0xff]
      %v537 = vld [vmem:[%s385 + $0x16f] sm:$0xff]
      %v538 = vld [vmem:[%s385 + $0x187] sm:$0xff]
      %v539 = vld [vmem:[%s385 + $0x18f] sm:$0xff]
      %v540 = vld [vmem:[%s385 + $0x1a7] sm:$0xff]
      %v541 = vld [vmem:[%s385 + $0x1af] sm:$0xff]
      %v542 = vld [vmem:[%s385 + $0x1c7] sm:$0xff]
      %v543 = vld [vmem:[%s385 + $0x1cf] sm:$0xff]
      %v544 = vld [vmem:[%s385 + $0x1e7] sm:$0xff]
      %v545 = vld [vmem:[%s385 + $0x1ef] sm:$0xff]
      %v546 = vld [vmem:[%s385 + $0x8] sm:$0xff]
      %v547 = vld [vmem:[%s385 + $0x10] sm:$0xff]
      %v548 = vld [vmem:[%s385 + $0x28] sm:$0xff]
      %v549 = vld [vmem:[%s385 + $0x30] sm:$0xff]
      %v550 = vld [vmem:[%s385 + $0x48] sm:$0xff]
      %v551 = vld [vmem:[%s385 + $0x50] sm:$0xff]
      %v552 = vld [vmem:[%s385 + $0x68] sm:$0xff]
      %v553 = vld [vmem:[%s385 + $0x70] sm:$0xff]
      %v554 = vld [vmem:[%s385 + $0x88] sm:$0xff]
      %v555 = vld [vmem:[%s385 + $0x90] sm:$0xff]
      %v556 = vld [vmem:[%s385 + $0xa8] sm:$0xff]
      %v557 = vld [vmem:[%s385 + $0xb0] sm:$0xff]
      %v558 = vld [vmem:[%s385 + $0xc8] sm:$0xff]
      %v559 = vld [vmem:[%s385 + $0xd0] sm:$0xff]
      %v560 = vld [vmem:[%s385 + $0xe8] sm:$0xff]
      %v561 = vld [vmem:[%s385 + $0xf0] sm:$0xff]
      %v562 = vld [vmem:[%s385 + $0x108] sm:$0xff]
      %v563 = vld [vmem:[%s385 + $0x110] sm:$0xff]
      %v564 = vld [vmem:[%s385 + $0x128] sm:$0xff]
      %v565 = vld [vmem:[%s385 + $0x130] sm:$0xff]
      %v566 = vld [vmem:[%s385 + $0x148] sm:$0xff]
      %v567 = vld [vmem:[%s385 + $0x150] sm:$0xff]
      %v568 = vld [vmem:[%s385 + $0x168] sm:$0xff]
      %v569 = vld [vmem:[%s385 + $0x170] sm:$0xff]
      %v570 = vld [vmem:[%s385 + $0x188] sm:$0xff]
      %v571 = vld [vmem:[%s385 + $0x190] sm:$0xff]
      %v572 = vld [vmem:[%s385 + $0x1a8] sm:$0xff]
      %v573 = vld [vmem:[%s385 + $0x1b0] sm:$0xff]
      %v574 = vld [vmem:[%s385 + $0x1c8] sm:$0xff]
      %v575 = vld [vmem:[%s385 + $0x1d0] sm:$0xff]
      %v576 = vld [vmem:[%s385 + $0x1e8] sm:$0xff]
      %v577 = vld [vmem:[%s385 + $0x1f0] sm:$0xff]
      %v578 = vld [vmem:[%s385 + $0x9] sm:$0xff]
      %v579 = vld [vmem:[%s385 + $0x11] sm:$0xff]
      %v580 = vld [vmem:[%s385 + $0x29] sm:$0xff]
      %v581 = vld [vmem:[%s385 + $0x31] sm:$0xff]
      %v582 = vld [vmem:[%s385 + $0x49] sm:$0xff]
      %v583 = vld [vmem:[%s385 + $0x51] sm:$0xff]
      %v584 = vld [vmem:[%s385 + $0x69] sm:$0xff]
      %v585 = vld [vmem:[%s385 + $0x71] sm:$0xff]
      %v586 = vld [vmem:[%s385 + $0x89] sm:$0xff]
      %v587 = vld [vmem:[%s385 + $0x91] sm:$0xff]
      %v588 = vld [vmem:[%s385 + $0xa9] sm:$0xff]
      %v589 = vld [vmem:[%s385 + $0xb1] sm:$0xff]
      %v590 = vld [vmem:[%s385 + $0xc9] sm:$0xff]
      %v591 = vld [vmem:[%s385 + $0xd1] sm:$0xff]
      %v592 = vld [vmem:[%s385 + $0xe9] sm:$0xff]
      %v593 = vld [vmem:[%s385 + $0xf1] sm:$0xff]
      %v594 = vld [vmem:[%s385 + $0x109] sm:$0xff]
      %v595 = vld [vmem:[%s385 + $0x111] sm:$0xff]
      %v596 = vld [vmem:[%s385 + $0x129] sm:$0xff]
      %v597 = vld [vmem:[%s385 + $0x131] sm:$0xff]
      %v598 = vld [vmem:[%s385 + $0x149] sm:$0xff]
      %v599 = vld [vmem:[%s385 + $0x151] sm:$0xff]
      %v600 = vld [vmem:[%s385 + $0x169] sm:$0xff]
      %v601 = vld [vmem:[%s385 + $0x171] sm:$0xff]
      %v602 = vld [vmem:[%s385 + $0x189] sm:$0xff]
      %v603 = vld [vmem:[%s385 + $0x191] sm:$0xff]
      %v604 = vld [vmem:[%s385 + $0x1a9] sm:$0xff]
      %v605 = vld [vmem:[%s385 + $0x1b1] sm:$0xff]
      %v606 = vld [vmem:[%s385 + $0x1c9] sm:$0xff]
      %v607 = vld [vmem:[%s385 + $0x1d1] sm:$0xff]
      %v608 = vld [vmem:[%s385 + $0x1e9] sm:$0xff]
      %v609 = vld [vmem:[%s385 + $0x1f1] sm:$0xff]
      %s610 = scalar_lea.vmem [#allocation2], 64
      %v611 = vld [vmem:[%s610 + $0x7] sm:$0xff]
      %v612 = vld [vmem:[%s610 + $0xf] sm:$0xff]
      %v613 = vld [vmem:[%s610 + $0x27] sm:$0xff]
      %v614 = vld [vmem:[%s610 + $0x2f] sm:$0xff]
      %v615 = vld [vmem:[%s610 + $0x47] sm:$0xff]
      %v616 = vld [vmem:[%s610 + $0x4f] sm:$0xff]
      %v617 = vld [vmem:[%s610 + $0x67] sm:$0xff]
      %v618 = vld [vmem:[%s610 + $0x6f] sm:$0xff]
      %v619 = vld [vmem:[%s610 + $0x87] sm:$0xff]
      %v620 = vld [vmem:[%s610 + $0x8f] sm:$0xff]
      %v621 = vld [vmem:[%s610 + $0xa7] sm:$0xff]
      %v622 = vld [vmem:[%s610 + $0xaf] sm:$0xff]
      %v623 = vld [vmem:[%s610 + $0xc7] sm:$0xff]
      %v624 = vld [vmem:[%s610 + $0xcf] sm:$0xff]
      %v625 = vld [vmem:[%s610 + $0xe7] sm:$0xff]
      %v626 = vld [vmem:[%s610 + $0xef] sm:$0xff]
      %v627 = vld [vmem:[%s610 + $0x107] sm:$0xff]
      %v628 = vld [vmem:[%s610 + $0x10f] sm:$0xff]
      %v629 = vld [vmem:[%s610 + $0x127] sm:$0xff]
      %v630 = vld [vmem:[%s610 + $0x12f] sm:$0xff]
      %v631 = vld [vmem:[%s610 + $0x147] sm:$0xff]
      %v632 = vld [vmem:[%s610 + $0x14f] sm:$0xff]
      %v633 = vld [vmem:[%s610 + $0x167] sm:$0xff]
      %v634 = vld [vmem:[%s610 + $0x16f] sm:$0xff]
      %v635 = vld [vmem:[%s610 + $0x187] sm:$0xff]
      %v636 = vld [vmem:[%s610 + $0x18f] sm:$0xff]
      %v637 = vld [vmem:[%s610 + $0x1a7] sm:$0xff]
      %v638 = vld [vmem:[%s610 + $0x1af] sm:$0xff]
      %v639 = vld [vmem:[%s610 + $0x1c7] sm:$0xff]
      %v640 = vld [vmem:[%s610 + $0x1cf] sm:$0xff]
      %v641 = vld [vmem:[%s610 + $0x1e7] sm:$0xff]
      %v642 = vld [vmem:[%s610 + $0x1ef] sm:$0xff]
      %v643 = vld [vmem:[%s610 + $0x8] sm:$0xff]
      %v644 = vld [vmem:[%s610 + $0x10] sm:$0xff]
      %v645 = vld [vmem:[%s610 + $0x28] sm:$0xff]
      %v646 = vld [vmem:[%s610 + $0x30] sm:$0xff]
      %v647 = vld [vmem:[%s610 + $0x48] sm:$0xff]
      %v648 = vld [vmem:[%s610 + $0x50] sm:$0xff]
      %v649 = vld [vmem:[%s610 + $0x68] sm:$0xff]
      %v650 = vld [vmem:[%s610 + $0x70] sm:$0xff]
      %v651 = vld [vmem:[%s610 + $0x88] sm:$0xff]
      %v652 = vld [vmem:[%s610 + $0x90] sm:$0xff]
      %v653 = vld [vmem:[%s610 + $0xa8] sm:$0xff]
      %v654 = vld [vmem:[%s610 + $0xb0] sm:$0xff]
      %v655 = vld [vmem:[%s610 + $0xc8] sm:$0xff]
      %v656 = vld [vmem:[%s610 + $0xd0] sm:$0xff]
      %v657 = vld [vmem:[%s610 + $0xe8] sm:$0xff]
      %v658 = vld [vmem:[%s610 + $0xf0] sm:$0xff]
      %v659 = vld [vmem:[%s610 + $0x108] sm:$0xff]
      %v660 = vld [vmem:[%s610 + $0x110] sm:$0xff]
      %v661 = vld [vmem:[%s610 + $0x128] sm:$0xff]
      %v662 = vld [vmem:[%s610 + $0x130] sm:$0xff]
      %v663 = vld [vmem:[%s610 + $0x148] sm:$0xff]
      %v664 = vld [vmem:[%s610 + $0x150] sm:$0xff]
      %v665 = vld [vmem:[%s610 + $0x168] sm:$0xff]
      %v666 = vld [vmem:[%s610 + $0x170] sm:$0xff]
      %v667 = vld [vmem:[%s610 + $0x188] sm:$0xff]
      %v668 = vld [vmem:[%s610 + $0x190] sm:$0xff]
      %v669 = vld [vmem:[%s610 + $0x1a8] sm:$0xff]
      %v670 = vld [vmem:[%s610 + $0x1b0] sm:$0xff]
      %v671 = vld [vmem:[%s610 + $0x1c8] sm:$0xff]
      %v672 = vld [vmem:[%s610 + $0x1d0] sm:$0xff]
      %v673 = vld [vmem:[%s610 + $0x1e8] sm:$0xff]
      %v674 = vld [vmem:[%s610 + $0x1f0] sm:$0xff]
      %v675 = vld [vmem:[%s610 + $0x9] sm:$0xff]
      %v676 = vld [vmem:[%s610 + $0x11] sm:$0xff]
      %v677 = vld [vmem:[%s610 + $0x29] sm:$0xff]
      %v678 = vld [vmem:[%s610 + $0x31] sm:$0xff]
      %v679 = vld [vmem:[%s610 + $0x49] sm:$0xff]
      %v680 = vld [vmem:[%s610 + $0x51] sm:$0xff]
      %v681 = vld [vmem:[%s610 + $0x69] sm:$0xff]
      %v682 = vld [vmem:[%s610 + $0x71] sm:$0xff]
      %v683 = vld [vmem:[%s610 + $0x89] sm:$0xff]
      %v684 = vld [vmem:[%s610 + $0x91] sm:$0xff]
      %v685 = vld [vmem:[%s610 + $0xa9] sm:$0xff]
      %v686 = vld [vmem:[%s610 + $0xb1] sm:$0xff]
      %v687 = vld [vmem:[%s610 + $0xc9] sm:$0xff]
      %v688 = vld [vmem:[%s610 + $0xd1] sm:$0xff]
      %v689 = vld [vmem:[%s610 + $0xe9] sm:$0xff]
      %v690 = vld [vmem:[%s610 + $0xf1] sm:$0xff]
      %v691 = vld [vmem:[%s610 + $0x109] sm:$0xff]
      %v692 = vld [vmem:[%s610 + $0x111] sm:$0xff]
      %v693 = vld [vmem:[%s610 + $0x129] sm:$0xff]
      %v694 = vld [vmem:[%s610 + $0x131] sm:$0xff]
      %v695 = vld [vmem:[%s610 + $0x149] sm:$0xff]
      %v696 = vld [vmem:[%s610 + $0x151] sm:$0xff]
      %v697 = vld [vmem:[%s610 + $0x169] sm:$0xff]
      %v698 = vld [vmem:[%s610 + $0x171] sm:$0xff]
      %v699 = vld [vmem:[%s610 + $0x189] sm:$0xff]
      %v700 = vld [vmem:[%s610 + $0x191] sm:$0xff]
      %v701 = vld [vmem:[%s610 + $0x1a9] sm:$0xff]
      %v702 = vld [vmem:[%s610 + $0x1b1] sm:$0xff]
      %v703 = vld [vmem:[%s610 + $0x1c9] sm:$0xff]
      %v704 = vld [vmem:[%s610 + $0x1d1] sm:$0xff]
      %v705 = vld [vmem:[%s610 + $0x1e9] sm:$0xff]
      %v706 = vld [vmem:[%s610 + $0x1f1] sm:$0xff]
      %739 = vrot.lane.b32.xlu0 %v450, 4
      %v740 = vpop.permute.xlu0 %739
      %741 = vrot.lane.b32.xlu0 %v451, 4
      %v742 = vpop.permute.xlu0 %741
      %743 = vrot.lane.b32.xlu0 %v452, 4
      %v744 = vpop.permute.xlu0 %743
      %745 = vrot.lane.b32.xlu0 %v453, 4
      %v746 = vpop.permute.xlu0 %745
      %747 = vrot.lane.b32.xlu0 %v454, 4
      %v748 = vpop.permute.xlu0 %747
      %749 = vrot.lane.b32.xlu0 %v455, 4
      %v750 = vpop.permute.xlu0 %749
      %751 = vrot.lane.b32.xlu0 %v456, 4
      %v752 = vpop.permute.xlu0 %751
      %753 = vrot.lane.b32.xlu0 %v457, 4
      %v754 = vpop.permute.xlu0 %753
      %755 = vrot.lane.b32.xlu0 %v458, 4
      %v756 = vpop.permute.xlu0 %755
      %757 = vrot.lane.b32.xlu0 %v459, 4
      %v758 = vpop.permute.xlu0 %757
      %759 = vrot.lane.b32.xlu0 %v460, 4
      %v760 = vpop.permute.xlu0 %759
      %761 = vrot.lane.b32.xlu0 %v461, 4
      %v762 = vpop.permute.xlu0 %761
      %763 = vrot.lane.b32.xlu0 %v462, 4
      %v764 = vpop.permute.xlu0 %763
      %765 = vrot.lane.b32.xlu0 %v463, 4
      %v766 = vpop.permute.xlu0 %765
      %767 = vrot.lane.b32.xlu0 %v464, 4
      %v768 = vpop.permute.xlu0 %767
      %769 = vrot.lane.b32.xlu0 %v465, 4
      %v770 = vpop.permute.xlu0 %769
      %771 = vrot.lane.b32.xlu0 %v466, 4
      %v772 = vpop.permute.xlu0 %771
      %773 = vrot.lane.b32.xlu0 %v467, 4
      %v774 = vpop.permute.xlu0 %773
      %775 = vrot.lane.b32.xlu0 %v468, 4
      %v776 = vpop.permute.xlu0 %775
      %777 = vrot.lane.b32.xlu0 %v469, 4
      %v778 = vpop.permute.xlu0 %777
      %779 = vrot.lane.b32.xlu0 %v470, 4
      %v780 = vpop.permute.xlu0 %779
      %781 = vrot.lane.b32.xlu0 %v471, 4
      %v782 = vpop.permute.xlu0 %781
      %783 = vrot.lane.b32.xlu0 %v472, 4
      %v784 = vpop.permute.xlu0 %783
      %785 = vrot.lane.b32.xlu0 %v473, 4
      %v786 = vpop.permute.xlu0 %785
      %787 = vrot.lane.b32.xlu0 %v474, 4
      %v788 = vpop.permute.xlu0 %787
      %789 = vrot.lane.b32.xlu0 %v475, 4
      %v790 = vpop.permute.xlu0 %789
      %791 = vrot.lane.b32.xlu0 %v476, 4
      %v792 = vpop.permute.xlu0 %791
      %793 = vrot.lane.b32.xlu0 %v477, 4
      %v794 = vpop.permute.xlu0 %793
      %795 = vrot.lane.b32.xlu0 %v478, 4
      %v796 = vpop.permute.xlu0 %795
      %797 = vrot.lane.b32.xlu0 %v479, 4
      %v798 = vpop.permute.xlu0 %797
      %799 = vrot.lane.b32.xlu0 %v480, 4
      %v800 = vpop.permute.xlu0 %799
      %801 = vrot.lane.b32.xlu0 %v481, 4
      %v802 = vpop.permute.xlu0 %801
      %867 = vrot.lane.b32.xlu0 %v482, 8
      %v868 = vpop.permute.xlu0 %867
      %869 = vrot.lane.b32.xlu0 %v483, 8
      %v870 = vpop.permute.xlu0 %869
      %871 = vrot.lane.b32.xlu0 %v484, 8
      %v872 = vpop.permute.xlu0 %871
      %873 = vrot.lane.b32.xlu0 %v485, 8
      %v874 = vpop.permute.xlu0 %873
      %875 = vrot.lane.b32.xlu0 %v486, 8
      %v876 = vpop.permute.xlu0 %875
      %877 = vrot.lane.b32.xlu0 %v487, 8
      %v878 = vpop.permute.xlu0 %877
      %879 = vrot.lane.b32.xlu0 %v488, 8
      %v880 = vpop.permute.xlu0 %879
      %881 = vrot.lane.b32.xlu0 %v489, 8
      %v882 = vpop.permute.xlu0 %881
      %883 = vrot.lane.b32.xlu0 %v490, 8
      %v884 = vpop.permute.xlu0 %883
      %885 = vrot.lane.b32.xlu0 %v491, 8
      %v886 = vpop.permute.xlu0 %885
      %887 = vrot.lane.b32.xlu0 %v492, 8
      %v888 = vpop.permute.xlu0 %887
      %889 = vrot.lane.b32.xlu0 %v493, 8
      %v890 = vpop.permute.xlu0 %889
      %891 = vrot.lane.b32.xlu0 %v494, 8
      %v892 = vpop.permute.xlu0 %891
      %893 = vrot.lane.b32.xlu0 %v495, 8
      %v894 = vpop.permute.xlu0 %893
      %895 = vrot.lane.b32.xlu0 %v496, 8
      %v896 = vpop.permute.xlu0 %895
      %897 = vrot.lane.b32.xlu0 %v497, 8
      %v898 = vpop.permute.xlu0 %897
      %899 = vrot.lane.b32.xlu0 %v498, 8
      %v900 = vpop.permute.xlu0 %899
      %901 = vrot.lane.b32.xlu0 %v499, 8
      %v902 = vpop.permute.xlu0 %901
      %903 = vrot.lane.b32.xlu0 %v500, 8
      %v904 = vpop.permute.xlu0 %903
      %905 = vrot.lane.b32.xlu0 %v501, 8
      %v906 = vpop.permute.xlu0 %905
      %907 = vrot.lane.b32.xlu0 %v502, 8
      %v908 = vpop.permute.xlu0 %907
      %909 = vrot.lane.b32.xlu0 %v503, 8
      %v910 = vpop.permute.xlu0 %909
      %911 = vrot.lane.b32.xlu0 %v504, 8
      %v912 = vpop.permute.xlu0 %911
      %913 = vrot.lane.b32.xlu0 %v505, 8
      %v914 = vpop.permute.xlu0 %913
      %915 = vrot.lane.b32.xlu0 %v506, 8
      %v916 = vpop.permute.xlu0 %915
      %917 = vrot.lane.b32.xlu0 %v507, 8
      %v918 = vpop.permute.xlu0 %917
      %919 = vrot.lane.b32.xlu0 %v508, 8
      %v920 = vpop.permute.xlu0 %919
      %921 = vrot.lane.b32.xlu0 %v509, 8
      %v922 = vpop.permute.xlu0 %921
      %923 = vrot.lane.b32.xlu0 %v510, 8
      %v924 = vpop.permute.xlu0 %923
      %925 = vrot.lane.b32.xlu0 %v511, 8
      %v926 = vpop.permute.xlu0 %925
      %927 = vrot.lane.b32.xlu0 %v512, 8
      %v928 = vpop.permute.xlu0 %927
      %929 = vrot.lane.b32.xlu0 %v513, 8
      %v930 = vpop.permute.xlu0 %929
      %995 = vrot.lane.b32.xlu0 %v514, 12
      %v996 = vpop.permute.xlu0 %995
      %997 = vrot.lane.b32.xlu0 %v515, 12
      %v998 = vpop.permute.xlu0 %997
      %999 = vrot.lane.b32.xlu0 %v516, 12
      %v1000 = vpop.permute.xlu0 %999
      %1001 = vrot.lane.b32.xlu0 %v517, 12
      %v1002 = vpop.permute.xlu0 %1001
      %1003 = vrot.lane.b32.xlu0 %v518, 12
      %v1004 = vpop.permute.xlu0 %1003
      %1005 = vrot.lane.b32.xlu0 %v519, 12
      %v1006 = vpop.permute.xlu0 %1005
      %1007 = vrot.lane.b32.xlu0 %v520, 12
      %v1008 = vpop.permute.xlu0 %1007
      %1009 = vrot.lane.b32.xlu0 %v521, 12
      %v1010 = vpop.permute.xlu0 %1009
      %1011 = vrot.lane.b32.xlu0 %v522, 12
      %v1012 = vpop.permute.xlu0 %1011
      %1013 = vrot.lane.b32.xlu0 %v523, 12
      %v1014 = vpop.permute.xlu0 %1013
      %1015 = vrot.lane.b32.xlu0 %v524, 12
      %v1016 = vpop.permute.xlu0 %1015
      %1017 = vrot.lane.b32.xlu0 %v525, 12
      %v1018 = vpop.permute.xlu0 %1017
      %1019 = vrot.lane.b32.xlu0 %v526, 12
      %v1020 = vpop.permute.xlu0 %1019
      %1021 = vrot.lane.b32.xlu0 %v527, 12
      %v1022 = vpop.permute.xlu0 %1021
      %1023 = vrot.lane.b32.xlu0 %v528, 12
      %v1024 = vpop.permute.xlu0 %1023
      %1025 = vrot.lane.b32.xlu0 %v529, 12
      %v1026 = vpop.permute.xlu0 %1025
      %1027 = vrot.lane.b32.xlu0 %v530, 12
      %v1028 = vpop.permute.xlu0 %1027
      %1029 = vrot.lane.b32.xlu0 %v531, 12
      %v1030 = vpop.permute.xlu0 %1029
      %1031 = vrot.lane.b32.xlu0 %v532, 12
      %v1032 = vpop.permute.xlu0 %1031
      %1033 = vrot.lane.b32.xlu0 %v533, 12
      %v1034 = vpop.permute.xlu0 %1033
      %1035 = vrot.lane.b32.xlu0 %v534, 12
      %v1036 = vpop.permute.xlu0 %1035
      %1037 = vrot.lane.b32.xlu0 %v535, 12
      %v1038 = vpop.permute.xlu0 %1037
      %1039 = vrot.lane.b32.xlu0 %v536, 12
      %v1040 = vpop.permute.xlu0 %1039
      %1041 = vrot.lane.b32.xlu0 %v537, 12
      %v1042 = vpop.permute.xlu0 %1041
      %1043 = vrot.lane.b32.xlu0 %v538, 12
      %v1044 = vpop.permute.xlu0 %1043
      %1045 = vrot.lane.b32.xlu0 %v539, 12
      %v1046 = vpop.permute.xlu0 %1045
      %1047 = vrot.lane.b32.xlu0 %v540, 12
      %v1048 = vpop.permute.xlu0 %1047
      %1049 = vrot.lane.b32.xlu0 %v541, 12
      %v1050 = vpop.permute.xlu0 %1049
      %1051 = vrot.lane.b32.xlu0 %v542, 12
      %v1052 = vpop.permute.xlu0 %1051
      %1053 = vrot.lane.b32.xlu0 %v543, 12
      %v1054 = vpop.permute.xlu0 %1053
      %1055 = vrot.lane.b32.xlu0 %v544, 12
      %v1056 = vpop.permute.xlu0 %1055
      %1057 = vrot.lane.b32.xlu0 %v545, 12
      %v1058 = vpop.permute.xlu0 %1057
      %1123 = vrot.lane.b32.xlu0 %v546, 16
      %v1124 = vpop.permute.xlu0 %1123
      %1125 = vrot.lane.b32.xlu0 %v547, 16
      %v1126 = vpop.permute.xlu0 %1125
      %1127 = vrot.lane.b32.xlu0 %v548, 16
      %v1128 = vpop.permute.xlu0 %1127
      %1129 = vrot.lane.b32.xlu0 %v549, 16
      %v1130 = vpop.permute.xlu0 %1129
      %1131 = vrot.lane.b32.xlu0 %v550, 16
      %v1132 = vpop.permute.xlu0 %1131
      %1133 = vrot.lane.b32.xlu0 %v551, 16
      %v1134 = vpop.permute.xlu0 %1133
      %1135 = vrot.lane.b32.xlu0 %v552, 16
      %v1136 = vpop.permute.xlu0 %1135
      %1137 = vrot.lane.b32.xlu0 %v553, 16
      %v1138 = vpop.permute.xlu0 %1137
      %1139 = vrot.lane.b32.xlu0 %v554, 16
      %v1140 = vpop.permute.xlu0 %1139
      %1141 = vrot.lane.b32.xlu0 %v555, 16
      %v1142 = vpop.permute.xlu0 %1141
      %1143 = vrot.lane.b32.xlu0 %v556, 16
      %v1144 = vpop.permute.xlu0 %1143
      %1145 = vrot.lane.b32.xlu0 %v557, 16
      %v1146 = vpop.permute.xlu0 %1145
      %1147 = vrot.lane.b32.xlu0 %v558, 16
      %v1148 = vpop.permute.xlu0 %1147
      %1149 = vrot.lane.b32.xlu0 %v559, 16
      %v1150 = vpop.permute.xlu0 %1149
      %1151 = vrot.lane.b32.xlu0 %v560, 16
      %v1152 = vpop.permute.xlu0 %1151
      %1153 = vrot.lane.b32.xlu0 %v561, 16
      %v1154 = vpop.permute.xlu0 %1153
      %1155 = vrot.lane.b32.xlu0 %v562, 16
      %v1156 = vpop.permute.xlu0 %1155
      %1157 = vrot.lane.b32.xlu0 %v563, 16
      %v1158 = vpop.permute.xlu0 %1157
      %1159 = vrot.lane.b32.xlu0 %v564, 16
      %v1160 = vpop.permute.xlu0 %1159
      %1161 = vrot.lane.b32.xlu0 %v565, 16
      %v1162 = vpop.permute.xlu0 %1161
      %1163 = vrot.lane.b32.xlu0 %v566, 16
      %v1164 = vpop.permute.xlu0 %1163
      %1165 = vrot.lane.b32.xlu0 %v567, 16
      %v1166 = vpop.permute.xlu0 %1165
      %1167 = vrot.lane.b32.xlu0 %v568, 16
      %v1168 = vpop.permute.xlu0 %1167
      %1169 = vrot.lane.b32.xlu0 %v569, 16
      %v1170 = vpop.permute.xlu0 %1169
      %1171 = vrot.lane.b32.xlu0 %v570, 16
      %v1172 = vpop.permute.xlu0 %1171
      %1173 = vrot.lane.b32.xlu0 %v571, 16
      %v1174 = vpop.permute.xlu0 %1173
      %1175 = vrot.lane.b32.xlu0 %v572, 16
      %v1176 = vpop.permute.xlu0 %1175
      %1177 = vrot.lane.b32.xlu0 %v573, 16
      %v1178 = vpop.permute.xlu0 %1177
      %1179 = vrot.lane.b32.xlu0 %v574, 16
      %v1180 = vpop.permute.xlu0 %1179
      %1181 = vrot.lane.b32.xlu0 %v575, 16
      %v1182 = vpop.permute.xlu0 %1181
      %1183 = vrot.lane.b32.xlu0 %v576, 16
      %v1184 = vpop.permute.xlu0 %1183
      %1185 = vrot.lane.b32.xlu0 %v577, 16
      %v1186 = vpop.permute.xlu0 %1185
      %1251 = vrot.lane.b32.xlu0 %v578, 20
      %v1252 = vpop.permute.xlu0 %1251
      %1253 = vrot.lane.b32.xlu0 %v579, 20
      %v1254 = vpop.permute.xlu0 %1253
      %1255 = vrot.lane.b32.xlu0 %v580, 20
      %v1256 = vpop.permute.xlu0 %1255
      %1257 = vrot.lane.b32.xlu0 %v581, 20
      %v1258 = vpop.permute.xlu0 %1257
      %1259 = vrot.lane.b32.xlu0 %v582, 20
      %v1260 = vpop.permute.xlu0 %1259
      %1261 = vrot.lane.b32.xlu0 %v583, 20
      %v1262 = vpop.permute.xlu0 %1261
      %1263 = vrot.lane.b32.xlu0 %v584, 20
      %v1264 = vpop.permute.xlu0 %1263
      %1265 = vrot.lane.b32.xlu0 %v585, 20
      %v1266 = vpop.permute.xlu0 %1265
      %1267 = vrot.lane.b32.xlu0 %v586, 20
      %v1268 = vpop.permute.xlu0 %1267
      %1269 = vrot.lane.b32.xlu0 %v587, 20
      %v1270 = vpop.permute.xlu0 %1269
      %1271 = vrot.lane.b32.xlu0 %v588, 20
      %v1272 = vpop.permute.xlu0 %1271
      %1273 = vrot.lane.b32.xlu0 %v589, 20
      %v1274 = vpop.permute.xlu0 %1273
      %1275 = vrot.lane.b32.xlu0 %v590, 20
      %v1276 = vpop.permute.xlu0 %1275
      %1277 = vrot.lane.b32.xlu0 %v591, 20
      %v1278 = vpop.permute.xlu0 %1277
      %1279 = vrot.lane.b32.xlu0 %v592, 20
      %v1280 = vpop.permute.xlu0 %1279
      %1281 = vrot.lane.b32.xlu0 %v593, 20
      %v1282 = vpop.permute.xlu0 %1281
      %1283 = vrot.lane.b32.xlu0 %v594, 20
      %v1284 = vpop.permute.xlu0 %1283
      %1285 = vrot.lane.b32.xlu0 %v595, 20
      %v1286 = vpop.permute.xlu0 %1285
      %1287 = vrot.lane.b32.xlu0 %v596, 20
      %v1288 = vpop.permute.xlu0 %1287
      %1289 = vrot.lane.b32.xlu0 %v597, 20
      %v1290 = vpop.permute.xlu0 %1289
      %1291 = vrot.lane.b32.xlu0 %v598, 20
      %v1292 = vpop.permute.xlu0 %1291
      %1293 = vrot.lane.b32.xlu0 %v599, 20
      %v1294 = vpop.permute.xlu0 %1293
      %1295 = vrot.lane.b32.xlu0 %v600, 20
      %v1296 = vpop.permute.xlu0 %1295
      %1297 = vrot.lane.b32.xlu0 %v601, 20
      %v1298 = vpop.permute.xlu0 %1297
      %1299 = vrot.lane.b32.xlu0 %v602, 20
      %v1300 = vpop.permute.xlu0 %1299
      %1301 = vrot.lane.b32.xlu0 %v603, 20
      %v1302 = vpop.permute.xlu0 %1301
      %1303 = vrot.lane.b32.xlu0 %v604, 20
      %v1304 = vpop.permute.xlu0 %1303
      %1305 = vrot.lane.b32.xlu0 %v605, 20
      %v1306 = vpop.permute.xlu0 %1305
      %1307 = vrot.lane.b32.xlu0 %v606, 20
      %v1308 = vpop.permute.xlu0 %1307
      %1309 = vrot.lane.b32.xlu0 %v607, 20
      %v1310 = vpop.permute.xlu0 %1309
      %1311 = vrot.lane.b32.xlu0 %v608, 20
      %v1312 = vpop.permute.xlu0 %1311
      %1313 = vrot.lane.b32.xlu0 %v609, 20
      %v1314 = vpop.permute.xlu0 %1313
      %1379 = vrot.lane.b32.xlu0 %v611, 24
      %v1380 = vpop.permute.xlu0 %1379
      %1381 = vrot.lane.b32.xlu0 %v612, 24
      %v1382 = vpop.permute.xlu0 %1381
      %1383 = vrot.lane.b32.xlu0 %v613, 24
      %v1384 = vpop.permute.xlu0 %1383
      %1385 = vrot.lane.b32.xlu0 %v614, 24
      %v1386 = vpop.permute.xlu0 %1385
      %1387 = vrot.lane.b32.xlu0 %v615, 24
      %v1388 = vpop.permute.xlu0 %1387
      %1389 = vrot.lane.b32.xlu0 %v616, 24
      %v1390 = vpop.permute.xlu0 %1389
      %1391 = vrot.lane.b32.xlu0 %v617, 24
      %v1392 = vpop.permute.xlu0 %1391
      %1393 = vrot.lane.b32.xlu0 %v618, 24
      %v1394 = vpop.permute.xlu0 %1393
      %1395 = vrot.lane.b32.xlu0 %v619, 24
      %v1396 = vpop.permute.xlu0 %1395
      %1397 = vrot.lane.b32.xlu0 %v620, 24
      %v1398 = vpop.permute.xlu0 %1397
      %1399 = vrot.lane.b32.xlu0 %v621, 24
      %v1400 = vpop.permute.xlu0 %1399
      %1401 = vrot.lane.b32.xlu0 %v622, 24
      %v1402 = vpop.permute.xlu0 %1401
      %1403 = vrot.lane.b32.xlu0 %v623, 24
      %v1404 = vpop.permute.xlu0 %1403
      %1405 = vrot.lane.b32.xlu0 %v624, 24
      %v1406 = vpop.permute.xlu0 %1405
      %1407 = vrot.lane.b32.xlu0 %v625, 24
      %v1408 = vpop.permute.xlu0 %1407
      %1409 = vrot.lane.b32.xlu0 %v626, 24
      %v1410 = vpop.permute.xlu0 %1409
      %1411 = vrot.lane.b32.xlu0 %v627, 24
      %v1412 = vpop.permute.xlu0 %1411
      %1413 = vrot.lane.b32.xlu0 %v628, 24
      %v1414 = vpop.permute.xlu0 %1413
      %1415 = vrot.lane.b32.xlu0 %v629, 24
      %v1416 = vpop.permute.xlu0 %1415
      %1417 = vrot.lane.b32.xlu0 %v630, 24
      %v1418 = vpop.permute.xlu0 %1417
      %1419 = vrot.lane.b32.xlu0 %v631, 24
      %v1420 = vpop.permute.xlu0 %1419
      %1421 = vrot.lane.b32.xlu0 %v632, 24
      %v1422 = vpop.permute.xlu0 %1421
      %1423 = vrot.lane.b32.xlu0 %v633, 24
      %v1424 = vpop.permute.xlu0 %1423
      %1425 = vrot.lane.b32.xlu0 %v634, 24
      %v1426 = vpop.permute.xlu0 %1425
      %1427 = vrot.lane.b32.xlu0 %v635, 24
      %v1428 = vpop.permute.xlu0 %1427
      %1429 = vrot.lane.b32.xlu0 %v636, 24
      %v1430 = vpop.permute.xlu0 %1429
      %1431 = vrot.lane.b32.xlu0 %v637, 24
      %v1432 = vpop.permute.xlu0 %1431
      %1433 = vrot.lane.b32.xlu0 %v638, 24
      %v1434 = vpop.permute.xlu0 %1433
      %1435 = vrot.lane.b32.xlu0 %v639, 24
      %v1436 = vpop.permute.xlu0 %1435
      %1437 = vrot.lane.b32.xlu0 %v640, 24
      %v1438 = vpop.permute.xlu0 %1437
      %1439 = vrot.lane.b32.xlu0 %v641, 24
      %v1440 = vpop.permute.xlu0 %1439
      %1441 = vrot.lane.b32.xlu0 %v642, 24
      %v1442 = vpop.permute.xlu0 %1441
      %1507 = vrot.lane.b32.xlu0 %v643, 28
      %v1508 = vpop.permute.xlu0 %1507
      %1509 = vrot.lane.b32.xlu0 %v644, 28
      %v1510 = vpop.permute.xlu0 %1509
      %1511 = vrot.lane.b32.xlu0 %v645, 28
      %v1512 = vpop.permute.xlu0 %1511
      %1513 = vrot.lane.b32.xlu0 %v646, 28
      %v1514 = vpop.permute.xlu0 %1513
      %1515 = vrot.lane.b32.xlu0 %v647, 28
      %v1516 = vpop.permute.xlu0 %1515
      %1517 = vrot.lane.b32.xlu0 %v648, 28
      %v1518 = vpop.permute.xlu0 %1517
      %1519 = vrot.lane.b32.xlu0 %v649, 28
      %v1520 = vpop.permute.xlu0 %1519
      %1521 = vrot.lane.b32.xlu0 %v650, 28
      %v1522 = vpop.permute.xlu0 %1521
      %1523 = vrot.lane.b32.xlu0 %v651, 28
      %v1524 = vpop.permute.xlu0 %1523
      %1525 = vrot.lane.b32.xlu0 %v652, 28
      %v1526 = vpop.permute.xlu0 %1525
      %1527 = vrot.lane.b32.xlu0 %v653, 28
      %v1528 = vpop.permute.xlu0 %1527
      %1529 = vrot.lane.b32.xlu0 %v654, 28
      %v1530 = vpop.permute.xlu0 %1529
      %1531 = vrot.lane.b32.xlu0 %v655, 28
      %v1532 = vpop.permute.xlu0 %1531
      %1533 = vrot.lane.b32.xlu0 %v656, 28
      %v1534 = vpop.permute.xlu0 %1533
      %1535 = vrot.lane.b32.xlu0 %v657, 28
      %v1536 = vpop.permute.xlu0 %1535
      %1537 = vrot.lane.b32.xlu0 %v658, 28
      %v1538 = vpop.permute.xlu0 %1537
      %1539 = vrot.lane.b32.xlu0 %v659, 28
      %v1540 = vpop.permute.xlu0 %1539
      %1541 = vrot.lane.b32.xlu0 %v660, 28
      %v1542 = vpop.permute.xlu0 %1541
      %1543 = vrot.lane.b32.xlu0 %v661, 28
      %v1544 = vpop.permute.xlu0 %1543
      %1545 = vrot.lane.b32.xlu0 %v662, 28
      %v1546 = vpop.permute.xlu0 %1545
      %1547 = vrot.lane.b32.xlu0 %v663, 28
      %v1548 = vpop.permute.xlu0 %1547
      %1549 = vrot.lane.b32.xlu0 %v664, 28
      %v1550 = vpop.permute.xlu0 %1549
      %1551 = vrot.lane.b32.xlu0 %v665, 28
      %v1552 = vpop.permute.xlu0 %1551
      %1553 = vrot.lane.b32.xlu0 %v666, 28
      %v1554 = vpop.permute.xlu0 %1553
      %1555 = vrot.lane.b32.xlu0 %v667, 28
      %v1556 = vpop.permute.xlu0 %1555
      %1557 = vrot.lane.b32.xlu0 %v668, 28
      %v1558 = vpop.permute.xlu0 %1557
      %1559 = vrot.lane.b32.xlu0 %v669, 28
      %v1560 = vpop.permute.xlu0 %1559
      %1561 = vrot.lane.b32.xlu0 %v670, 28
      %v1562 = vpop.permute.xlu0 %1561
      %1563 = vrot.lane.b32.xlu0 %v671, 28
      %v1564 = vpop.permute.xlu0 %1563
      %1565 = vrot.lane.b32.xlu0 %v672, 28
      %v1566 = vpop.permute.xlu0 %1565
      %1567 = vrot.lane.b32.xlu0 %v673, 28
      %v1568 = vpop.permute.xlu0 %1567
      %1569 = vrot.lane.b32.xlu0 %v674, 28
      %v1570 = vpop.permute.xlu0 %1569
      %1635 = vrot.lane.b32.xlu0 %v675, 32
      %v1636 = vpop.permute.xlu0 %1635
      %1637 = vrot.lane.b32.xlu0 %v676, 32
      %v1638 = vpop.permute.xlu0 %1637
      %1639 = vrot.lane.b32.xlu0 %v677, 32
      %v1640 = vpop.permute.xlu0 %1639
      %1641 = vrot.lane.b32.xlu0 %v678, 32
      %v1642 = vpop.permute.xlu0 %1641
      %1643 = vrot.lane.b32.xlu0 %v679, 32
      %v1644 = vpop.permute.xlu0 %1643
      %1645 = vrot.lane.b32.xlu0 %v680, 32
      %v1646 = vpop.permute.xlu0 %1645
      %1647 = vrot.lane.b32.xlu0 %v681, 32
      %v1648 = vpop.permute.xlu0 %1647
      %1649 = vrot.lane.b32.xlu0 %v682, 32
      %v1650 = vpop.permute.xlu0 %1649
      %1651 = vrot.lane.b32.xlu0 %v683, 32
      %v1652 = vpop.permute.xlu0 %1651
      %1653 = vrot.lane.b32.xlu0 %v684, 32
      %v1654 = vpop.permute.xlu0 %1653
      %1655 = vrot.lane.b32.xlu0 %v685, 32
      %v1656 = vpop.permute.xlu0 %1655
      %1657 = vrot.lane.b32.xlu0 %v686, 32
      %v1658 = vpop.permute.xlu0 %1657
      %1659 = vrot.lane.b32.xlu0 %v687, 32
      %v1660 = vpop.permute.xlu0 %1659
      %1661 = vrot.lane.b32.xlu0 %v688, 32
      %v1662 = vpop.permute.xlu0 %1661
      %1663 = vrot.lane.b32.xlu0 %v689, 32
      %v1664 = vpop.permute.xlu0 %1663
      %1665 = vrot.lane.b32.xlu0 %v690, 32
      %v1666 = vpop.permute.xlu0 %1665
      %1667 = vrot.lane.b32.xlu0 %v691, 32
      %v1668 = vpop.permute.xlu0 %1667
      %1669 = vrot.lane.b32.xlu0 %v692, 32
      %v1670 = vpop.permute.xlu0 %1669
      %1671 = vrot.lane.b32.xlu0 %v693, 32
      %v1672 = vpop.permute.xlu0 %1671
      %1673 = vrot.lane.b32.xlu0 %v694, 32
      %v1674 = vpop.permute.xlu0 %1673
      %1675 = vrot.lane.b32.xlu0 %v695, 32
      %v1676 = vpop.permute.xlu0 %1675
      %1677 = vrot.lane.b32.xlu0 %v696, 32
      %v1678 = vpop.permute.xlu0 %1677
      %1679 = vrot.lane.b32.xlu0 %v697, 32
      %v1680 = vpop.permute.xlu0 %1679
      %1681 = vrot.lane.b32.xlu0 %v698, 32
      %v1682 = vpop.permute.xlu0 %1681
      %1683 = vrot.lane.b32.xlu0 %v699, 32
      %v1684 = vpop.permute.xlu0 %1683
      %1685 = vrot.lane.b32.xlu0 %v700, 32
      %v1686 = vpop.permute.xlu0 %1685
      %1687 = vrot.lane.b32.xlu0 %v701, 32
      %v1688 = vpop.permute.xlu0 %1687
      %1689 = vrot.lane.b32.xlu0 %v702, 32
      %v1690 = vpop.permute.xlu0 %1689
      %1691 = vrot.lane.b32.xlu0 %v703, 32
      %v1692 = vpop.permute.xlu0 %1691
      %1693 = vrot.lane.b32.xlu0 %v704, 32
      %v1694 = vpop.permute.xlu0 %1693
      %1695 = vrot.lane.b32.xlu0 %v705, 32
      %v1696 = vpop.permute.xlu0 %1695
      %1697 = vrot.lane.b32.xlu0 %v706, 32
      %v1698 = vpop.permute.xlu0 %1697
      %v1731 = vsel %vm280, %v418, %v740
      %v1732 = vsel %vm280, %v419, %v742
      %v1733 = vsel %vm280, %v420, %v744
      %v1734 = vsel %vm280, %v421, %v746
      %v1735 = vsel %vm280, %v422, %v748
      %v1736 = vsel %vm280, %v423, %v750
      %v1737 = vsel %vm280, %v424, %v752
      %v1738 = vsel %vm280, %v425, %v754
      %v1739 = vsel %vm280, %v426, %v756
      %v1740 = vsel %vm280, %v427, %v758
      %v1741 = vsel %vm280, %v428, %v760
      %v1742 = vsel %vm280, %v429, %v762
      %v1743 = vsel %vm280, %v430, %v764
      %v1744 = vsel %vm280, %v431, %v766
      %v1745 = vsel %vm280, %v432, %v768
      %v1746 = vsel %vm280, %v433, %v770
      %v1747 = vsel %vm280, %v434, %v772
      %v1748 = vsel %vm280, %v435, %v774
      %v1749 = vsel %vm280, %v436, %v776
      %v1750 = vsel %vm280, %v437, %v778
      %v1751 = vsel %vm280, %v438, %v780
      %v1752 = vsel %vm280, %v439, %v782
      %v1753 = vsel %vm280, %v440, %v784
      %v1754 = vsel %vm280, %v441, %v786
      %v1755 = vsel %vm280, %v442, %v788
      %v1756 = vsel %vm280, %v443, %v790
      %v1757 = vsel %vm280, %v444, %v792
      %v1758 = vsel %vm280, %v445, %v794
      %v1759 = vsel %vm280, %v446, %v796
      %v1760 = vsel %vm280, %v447, %v798
      %v1761 = vsel %vm280, %v448, %v800
      %v1762 = vsel %vm280, %v449, %v802
      %vm1763 = vcmask 64512
      %v1764 = vsel %vm1763, %v1731, %v868
      %v1765 = vsel %vm1763, %v1732, %v870
      %v1766 = vsel %vm1763, %v1733, %v872
      %v1767 = vsel %vm1763, %v1734, %v874
      %v1768 = vsel %vm1763, %v1735, %v876
      %v1769 = vsel %vm1763, %v1736, %v878
      %v1770 = vsel %vm1763, %v1737, %v880
      %v1771 = vsel %vm1763, %v1738, %v882
      %v1772 = vsel %vm1763, %v1739, %v884
      %v1773 = vsel %vm1763, %v1740, %v886
      %v1774 = vsel %vm1763, %v1741, %v888
      %v1775 = vsel %vm1763, %v1742, %v890
      %v1776 = vsel %vm1763, %v1743, %v892
      %v1777 = vsel %vm1763, %v1744, %v894
      %v1778 = vsel %vm1763, %v1745, %v896
      %v1779 = vsel %vm1763, %v1746, %v898
      %v1780 = vsel %vm1763, %v1747, %v900
      %v1781 = vsel %vm1763, %v1748, %v902
      %v1782 = vsel %vm1763, %v1749, %v904
      %v1783 = vsel %vm1763, %v1750, %v906
      %v1784 = vsel %vm1763, %v1751, %v908
      %v1785 = vsel %vm1763, %v1752, %v910
      %v1786 = vsel %vm1763, %v1753, %v912
      %v1787 = vsel %vm1763, %v1754, %v914
      %v1788 = vsel %vm1763, %v1755, %v916
      %v1789 = vsel %vm1763, %v1756, %v918
      %v1790 = vsel %vm1763, %v1757, %v920
      %v1791 = vsel %vm1763, %v1758, %v922
      %v1792 = vsel %vm1763, %v1759, %v924
      %v1793 = vsel %vm1763, %v1760, %v926
      %v1794 = vsel %vm1763, %v1761, %v928
      %v1795 = vsel %vm1763, %v1762, %v930
      %vm1796 = vcmask 97280
      %v1797 = vsel %vm1796, %v1764, %v996
      %v1798 = vsel %vm1796, %v1765, %v998
      %v1799 = vsel %vm1796, %v1766, %v1000
      %v1800 = vsel %vm1796, %v1767, %v1002
      %v1801 = vsel %vm1796, %v1768, %v1004
      %v1802 = vsel %vm1796, %v1769, %v1006
      %v1803 = vsel %vm1796, %v1770, %v1008
      %v1804 = vsel %vm1796, %v1771, %v1010
      %v1805 = vsel %vm1796, %v1772, %v1012
      %v1806 = vsel %vm1796, %v1773, %v1014
      %v1807 = vsel %vm1796, %v1774, %v1016
      %v1808 = vsel %vm1796, %v1775, %v1018
      %v1809 = vsel %vm1796, %v1776, %v1020
      %v1810 = vsel %vm1796, %v1777, %v1022
      %v1811 = vsel %vm1796, %v1778, %v1024
      %v1812 = vsel %vm1796, %v1779, %v1026
      %v1813 = vsel %vm1796, %v1780, %v1028
      %v1814 = vsel %vm1796, %v1781, %v1030
      %v1815 = vsel %vm1796, %v1782, %v1032
      %v1816 = vsel %vm1796, %v1783, %v1034
      %v1817 = vsel %vm1796, %v1784, %v1036
      %v1818 = vsel %vm1796, %v1785, %v1038
      %v1819 = vsel %vm1796, %v1786, %v1040
      %v1820 = vsel %vm1796, %v1787, %v1042
      %v1821 = vsel %vm1796, %v1788, %v1044
      %v1822 = vsel %vm1796, %v1789, %v1046
      %v1823 = vsel %vm1796, %v1790, %v1048
      %v1824 = vsel %vm1796, %v1791, %v1050
      %v1825 = vsel %vm1796, %v1792, %v1052
      %v1826 = vsel %vm1796, %v1793, %v1054
      %v1827 = vsel %vm1796, %v1794, %v1056
      %v1828 = vsel %vm1796, %v1795, %v1058
      %vm1829 = vcmask 130048
      %v1830 = vsel %vm1829, %v1797, %v1124
      %v1831 = vsel %vm1829, %v1798, %v1126
      %v1832 = vsel %vm1829, %v1799, %v1128
      %v1833 = vsel %vm1829, %v1800, %v1130
      %v1834 = vsel %vm1829, %v1801, %v1132
      %v1835 = vsel %vm1829, %v1802, %v1134
      %v1836 = vsel %vm1829, %v1803, %v1136
      %v1837 = vsel %vm1829, %v1804, %v1138
      %v1838 = vsel %vm1829, %v1805, %v1140
      %v1839 = vsel %vm1829, %v1806, %v1142
      %v1840 = vsel %vm1829, %v1807, %v1144
      %v1841 = vsel %vm1829, %v1808, %v1146
      %v1842 = vsel %vm1829, %v1809, %v1148
      %v1843 = vsel %vm1829, %v1810, %v1150
      %v1844 = vsel %vm1829, %v1811, %v1152
      %v1845 = vsel %vm1829, %v1812, %v1154
      %v1846 = vsel %vm1829, %v1813, %v1156
      %v1847 = vsel %vm1829, %v1814, %v1158
      %v1848 = vsel %vm1829, %v1815, %v1160
      %v1849 = vsel %vm1829, %v1816, %v1162
      %v1850 = vsel %vm1829, %v1817, %v1164
      %v1851 = vsel %vm1829, %v1818, %v1166
      %v1852 = vsel %vm1829, %v1819, %v1168
      %v1853 = vsel %vm1829, %v1820, %v1170
      %v1854 = vsel %vm1829, %v1821, %v1172
      %v1855 = vsel %vm1829, %v1822, %v1174
      %v1856 = vsel %vm1829, %v1823, %v1176
      %v1857 = vsel %vm1829, %v1824, %v1178
      %v1858 = vsel %vm1829, %v1825, %v1180
      %v1859 = vsel %vm1829, %v1826, %v1182
      %v1860 = vsel %vm1829, %v1827, %v1184
      %v1861 = vsel %vm1829, %v1828, %v1186
      %vm1862 = vcmask 162816
      %v1863 = vsel %vm1862, %v1830, %v1252
      %v1864 = vsel %vm1862, %v1831, %v1254
      %v1865 = vsel %vm1862, %v1832, %v1256
      %v1866 = vsel %vm1862, %v1833, %v1258
      %v1867 = vsel %vm1862, %v1834, %v1260
      %v1868 = vsel %vm1862, %v1835, %v1262
      %v1869 = vsel %vm1862, %v1836, %v1264
      %v1870 = vsel %vm1862, %v1837, %v1266
      %v1871 = vsel %vm1862, %v1838, %v1268
      %v1872 = vsel %vm1862, %v1839, %v1270
      %v1873 = vsel %vm1862, %v1840, %v1272
      %v1874 = vsel %vm1862, %v1841, %v1274
      %v1875 = vsel %vm1862, %v1842, %v1276
      %v1876 = vsel %vm1862, %v1843, %v1278
      %v1877 = vsel %vm1862, %v1844, %v1280
      %v1878 = vsel %vm1862, %v1845, %v1282
      %v1879 = vsel %vm1862, %v1846, %v1284
      %v1880 = vsel %vm1862, %v1847, %v1286
      %v1881 = vsel %vm1862, %v1848, %v1288
      %v1882 = vsel %vm1862, %v1849, %v1290
      %v1883 = vsel %vm1862, %v1850, %v1292
      %v1884 = vsel %vm1862, %v1851, %v1294
      %v1885 = vsel %vm1862, %v1852, %v1296
      %v1886 = vsel %vm1862, %v1853, %v1298
      %v1887 = vsel %vm1862, %v1854, %v1300
      %v1888 = vsel %vm1862, %v1855, %v1302
      %v1889 = vsel %vm1862, %v1856, %v1304
      %v1890 = vsel %vm1862, %v1857, %v1306
      %v1891 = vsel %vm1862, %v1858, %v1308
      %v1892 = vsel %vm1862, %v1859, %v1310
      %v1893 = vsel %vm1862, %v1860, %v1312
      %v1894 = vsel %vm1862, %v1861, %v1314
      %vm1895 = vcmask 195584
      %v1896 = vsel %vm1895, %v1863, %v1380
      %v1897 = vsel %vm1895, %v1864, %v1382
      %v1898 = vsel %vm1895, %v1865, %v1384
      %v1899 = vsel %vm1895, %v1866, %v1386
      %v1900 = vsel %vm1895, %v1867, %v1388
      %v1901 = vsel %vm1895, %v1868, %v1390
      %v1902 = vsel %vm1895, %v1869, %v1392
      %v1903 = vsel %vm1895, %v1870, %v1394
      %v1904 = vsel %vm1895, %v1871, %v1396
      %v1905 = vsel %vm1895, %v1872, %v1398
      %v1906 = vsel %vm1895, %v1873, %v1400
      %v1907 = vsel %vm1895, %v1874, %v1402
      %v1908 = vsel %vm1895, %v1875, %v1404
      %v1909 = vsel %vm1895, %v1876, %v1406
      %v1910 = vsel %vm1895, %v1877, %v1408
      %v1911 = vsel %vm1895, %v1878, %v1410
      %v1912 = vsel %vm1895, %v1879, %v1412
      %v1913 = vsel %vm1895, %v1880, %v1414
      %v1914 = vsel %vm1895, %v1881, %v1416
      %v1915 = vsel %vm1895, %v1882, %v1418
      %v1916 = vsel %vm1895, %v1883, %v1420
      %v1917 = vsel %vm1895, %v1884, %v1422
      %v1918 = vsel %vm1895, %v1885, %v1424
      %v1919 = vsel %vm1895, %v1886, %v1426
      %v1920 = vsel %vm1895, %v1887, %v1428
      %v1921 = vsel %vm1895, %v1888, %v1430
      %v1922 = vsel %vm1895, %v1889, %v1432
      %v1923 = vsel %vm1895, %v1890, %v1434
      %v1924 = vsel %vm1895, %v1891, %v1436
      %v1925 = vsel %vm1895, %v1892, %v1438
      %v1926 = vsel %vm1895, %v1893, %v1440
      %v1927 = vsel %vm1895, %v1894, %v1442
      %vm1928 = vcmask 228352
      %v1929 = vsel %vm1928, %v1896, %v1508
      %v1930 = vsel %vm1928, %v1897, %v1510
      %v1931 = vsel %vm1928, %v1898, %v1512
      %v1932 = vsel %vm1928, %v1899, %v1514
      %v1933 = vsel %vm1928, %v1900, %v1516
      %v1934 = vsel %vm1928, %v1901, %v1518
      %v1935 = vsel %vm1928, %v1902, %v1520
      %v1936 = vsel %vm1928, %v1903, %v1522
      %v1937 = vsel %vm1928, %v1904, %v1524
      %v1938 = vsel %vm1928, %v1905, %v1526
      %v1939 = vsel %vm1928, %v1906, %v1528
      %v1940 = vsel %vm1928, %v1907, %v1530
      %v1941 = vsel %vm1928, %v1908, %v1532
      %v1942 = vsel %vm1928, %v1909, %v1534
      %v1943 = vsel %vm1928, %v1910, %v1536
      %v1944 = vsel %vm1928, %v1911, %v1538
      %v1945 = vsel %vm1928, %v1912, %v1540
      %v1946 = vsel %vm1928, %v1913, %v1542
      %v1947 = vsel %vm1928, %v1914, %v1544
      %v1948 = vsel %vm1928, %v1915, %v1546
      %v1949 = vsel %vm1928, %v1916, %v1548
      %v1950 = vsel %vm1928, %v1917, %v1550
      %v1951 = vsel %vm1928, %v1918, %v1552
      %v1952 = vsel %vm1928, %v1919, %v1554
      %v1953 = vsel %vm1928, %v1920, %v1556
      %v1954 = vsel %vm1928, %v1921, %v1558
      %v1955 = vsel %vm1928, %v1922, %v1560
      %v1956 = vsel %vm1928, %v1923, %v1562
      %v1957 = vsel %vm1928, %v1924, %v1564
      %v1958 = vsel %vm1928, %v1925, %v1566
      %v1959 = vsel %vm1928, %v1926, %v1568
      %v1960 = vsel %vm1928, %v1927, %v1570
      %vm1961 = vcmask 261120
      %v1962 = vsel %vm1961, %v1929, %v1636
      %v1963 = vsel %vm1961, %v1930, %v1638
      %v1964 = vsel %vm1961, %v1931, %v1640
      %v1965 = vsel %vm1961, %v1932, %v1642
      %v1966 = vsel %vm1961, %v1933, %v1644
      %v1967 = vsel %vm1961, %v1934, %v1646
      %v1968 = vsel %vm1961, %v1935, %v1648
      %v1969 = vsel %vm1961, %v1936, %v1650
      %v1970 = vsel %vm1961, %v1937, %v1652
      %v1971 = vsel %vm1961, %v1938, %v1654
      %v1972 = vsel %vm1961, %v1939, %v1656
      %v1973 = vsel %vm1961, %v1940, %v1658
      %v1974 = vsel %vm1961, %v1941, %v1660
      %v1975 = vsel %vm1961, %v1942, %v1662
      %v1976 = vsel %vm1961, %v1943, %v1664
      %v1977 = vsel %vm1961, %v1944, %v1666
      %v1978 = vsel %vm1961, %v1945, %v1668
      %v1979 = vsel %vm1961, %v1946, %v1670
      %v1980 = vsel %vm1961, %v1947, %v1672
      %v1981 = vsel %vm1961, %v1948, %v1674
      %v1982 = vsel %vm1961, %v1949, %v1676
      %v1983 = vsel %vm1961, %v1950, %v1678
      %v1984 = vsel %vm1961, %v1951, %v1680
      %v1985 = vsel %vm1961, %v1952, %v1682
      %v1986 = vsel %vm1961, %v1953, %v1684
      %v1987 = vsel %vm1961, %v1954, %v1686
      %v1988 = vsel %vm1961, %v1955, %v1688
      %v1989 = vsel %vm1961, %v1956, %v1690
      %v1990 = vsel %vm1961, %v1957, %v1692
      %v1991 = vsel %vm1961, %v1958, %v1694
      %v1992 = vsel %vm1961, %v1959, %v1696
      %v1993 = vsel %vm1961, %v1960, %v1698
      %v1994 = vpack.c.bf16 %v1963, %v1962
      %v1995 = vpack.c.bf16 %v1965, %v1964
      %v1996 = vpack.c.bf16 %v1967, %v1966
      %v1997 = vpack.c.bf16 %v1969, %v1968
      %v1998 = vpack.c.bf16 %v1971, %v1970
      %v1999 = vpack.c.bf16 %v1973, %v1972
      %v2000 = vpack.c.bf16 %v1975, %v1974
      %v2001 = vpack.c.bf16 %v1977, %v1976
      %v2002 = vpack.c.bf16 %v1979, %v1978
      %v2003 = vpack.c.bf16 %v1981, %v1980
      %v2004 = vpack.c.bf16 %v1983, %v1982
      %v2005 = vpack.c.bf16 %v1985, %v1984
      %v2006 = vpack.c.bf16 %v1987, %v1986
      %v2007 = vpack.c.bf16 %v1989, %v1988
      %v2008 = vpack.c.bf16 %v1991, %v1990
      %v2009 = vpack.c.bf16 %v1993, %v1992
      %v2010 = vld [vmem:[%s1] sm:$0xf]
      %v2011 = vld [vmem:[%s1 + $0x4] sm:$0xf]
      %v2012 = vld [vmem:[%s1 + $0x8] sm:$0xf]
      %v2013 = vld [vmem:[%s1 + $0xc] sm:$0xf]
      %v2014 = vld [vmem:[%s1 + $0x10] sm:$0x3]
      %v2020 = vunpack.c.l.b16 %v2010
      %v2021 = vunpack.c.l.b16 %v2011
      %v2022 = vunpack.c.l.b16 %v2012
      %v2023 = vunpack.c.l.b16 %v2013
      %v2024 = vunpack.c.l.b16 %v2014
      %v2025 = vpack.c.b16 %v2021, %v2020
      %v2026 = vpack.c.b16 %v2023, %v2022
      %v2027 = vpack.c.b16 %v2024, %v2024
      %vm2030 = vcmask 293888
      %v2032 = vsel %vm2030, %v1994, 0
      %v2035 = vsel %vm2030, %v1995, 0
      %v2038 = vsel %vm2030, %v1996, 0
      %v2041 = vsel %vm2030, %v1997, 0
      %v2044 = vsel %vm2030, %v1998, 0
      %v2047 = vsel %vm2030, %v1999, 0
      %v2050 = vsel %vm2030, %v2000, 0
      %v2053 = vsel %vm2030, %v2001, 0
      %v2056 = vsel %vm2030, %v2002, 0
      %v2059 = vsel %vm2030, %v2003, 0
      %v2062 = vsel %vm2030, %v2004, 0
      %v2065 = vsel %vm2030, %v2005, 0
      %v2068 = vsel %vm2030, %v2006, 0
      %v2071 = vsel %vm2030, %v2007, 0
      %v2074 = vsel %vm2030, %v2008, 0
      %v2077 = vsel %vm2030, %v2009, 0
      %vm2079 = vcmask 1041408
      %v2081 = vsel %vm2079, %v2027, 0
      %2083 = vmatprep.subr.bf16.mxu0 0
      %2084 = vmatpush1.bf16.msra.mxu0 %v2025
      %2085 = vmatprep.subr.bf16.mxu0 0
      %2086 = vmatpush1.bf16.msra.mxu0 %v2026
      %2087 = vmatprep.subr.bf16.mxu0 0
      %2088 = vmatpush1.bf16.msra.mxu0 %v2081
      %2089 = vmatprep.subr.bf16.mxu0 0
      %2090 = vmatpush1.bf16.msra.mxu0 0
      %2091 = vmatprep.subr.bf16.mxu0 0
      %2092 = vmatpush1.bf16.msra.mxu0 0
      %2093 = vmatprep.subr.bf16.mxu0 0
      %2094 = vmatpush1.bf16.msra.mxu0 0
      %2095 = vmatprep.subr.bf16.mxu0 0
      %2096 = vmatpush1.bf16.msra.mxu0 0
      %2097 = vmatprep.subr.bf16.mxu0 0
      %2098 = vmatpush1.bf16.msra.mxu0 0
      %2099 = vmatprep.subr.bf16.mxu0 0
      %2100 = vmatpush1.bf16.msra.mxu0 0
      %2101 = vmatprep.subr.bf16.mxu0 0
      %2102 = vmatpush1.bf16.msra.mxu0 0
      %2103 = vmatprep.subr.bf16.mxu0 0
      %2104 = vmatpush1.bf16.msra.mxu0 0
      %2105 = vmatprep.subr.bf16.mxu0 0
      %2106 = vmatpush1.bf16.msra.mxu0 0
      %2107 = vmatprep.subr.bf16.mxu0 0
      %2108 = vmatpush1.bf16.msra.mxu0 0
      %2109 = vmatprep.subr.bf16.mxu0 0
      %2110 = vmatpush1.bf16.msra.mxu0 0
      %2111 = vmatprep.subr.bf16.mxu0 0
      %2112 = vmatpush1.bf16.msra.mxu0 0
      %2113 = vmatprep.subr.bf16.mxu0 0
      %2114 = vmatpush1.bf16.msra.mxu0 0
      %2115 = vmatprep.mubr.bf16.mxu0 0
      %2116 = vmatmul.mubr.bf16.gmra.mrb[0].mxu0 %v2032
      %v2117 = vpop.f32.mrb[0].mxu0
      %v2118 = vadd.f32 0.0, %v2117
      %v2119 = vpop.f32.mrb[0].mxu0
      %v2120 = vpop.f32.mrb[0].mxu0
      %v2121 = vadd.f32 0.0, %v2120
      %v2122 = vpop.f32.mrb[0].mxu0
      %2123 = vmatprep.mubr.bf16.mxu0 0
      %2124 = vmatmul.mubr.bf16.gmra.mrb[0].mxu0 %v2035
      %v2125 = vpop.f32.mrb[0].mxu0
      %v2126 = vadd.f32 0.0, %v2125
      %v2127 = vpop.f32.mrb[0].mxu0
      %v2128 = vpop.f32.mrb[0].mxu0
      %v2129 = vadd.f32 0.0, %v2128
      %v2130 = vpop.f32.mrb[0].mxu0
      %2131 = vmatprep.mubr.bf16.mxu0 0
      %2132 = vmatmul.mubr.bf16.gmra.mrb[0].mxu0 %v2038
      %v2133 = vpop.f32.mrb[0].mxu0
      %v2134 = vadd.f32 0.0, %v2133
      %v2135 = vpop.f32.mrb[0].mxu0
      %v2136 = vpop.f32.mrb[0].mxu0
      %v2137 = vadd.f32 0.0, %v2136
      %v2138 = vpop.f32.mrb[0].mxu0
      %2139 = vmatprep.mubr.bf16.mxu0 0
      %2140 = vmatmul.mubr.bf16.gmra.mrb[0].mxu0 %v2041
      %v2141 = vpop.f32.mrb[0].mxu0
      %v2142 = vadd.f32 0.0, %v2141
      %v2143 = vpop.f32.mrb[0].mxu0
      %v2144 = vpop.f32.mrb[0].mxu0
      %v2145 = vadd.f32 0.0, %v2144
      %v2146 = vpop.f32.mrb[0].mxu0
      %2147 = vmatprep.mubr.bf16.mxu0 0
      %2148 = vmatmul.mubr.bf16.gmra.mrb[0].mxu0 %v2044
      %v2149 = vpop.f32.mrb[0].mxu0
      %v2150 = vadd.f32 0.0, %v2149
      %v2151 = vpop.f32.mrb[0].mxu0
      %v2152 = vpop.f32.mrb[0].mxu0
      %v2153 = vadd.f32 0.0, %v2152
      %v2154 = vpop.f32.mrb[0].mxu0
      %2155 = vmatprep.mubr.bf16.mxu0 0
      %2156 = vmatmul.mubr.bf16.gmra.mrb[0].mxu0 %v2047
      %v2157 = vpop.f32.mrb[0].mxu0
      %v2158 = vadd.f32 0.0, %v2157
      %v2159 = vpop.f32.mrb[0].mxu0
      %v2160 = vpop.f32.mrb[0].mxu0
      %v2161 = vadd.f32 0.0, %v2160
      %v2162 = vpop.f32.mrb[0].mxu0
      %2163 = vmatprep.mubr.bf16.mxu0 0
      %2164 = vmatmul.mubr.bf16.gmra.mrb[0].mxu0 %v2050
      %v2165 = vpop.f32.mrb[0].mxu0
      %v2166 = vadd.f32 0.0, %v2165
      %v2167 = vpop.f32.mrb[0].mxu0
      %v2168 = vpop.f32.mrb[0].mxu0
      %v2169 = vadd.f32 0.0, %v2168
      %v2170 = vpop.f32.mrb[0].mxu0
      %2171 = vmatprep.mubr.bf16.mxu0 0
      %2172 = vmatmul.mubr.bf16.gmra.mrb[0].mxu0 %v2053
      %v2173 = vpop.f32.mrb[0].mxu0
      %v2174 = vadd.f32 0.0, %v2173
      %v2175 = vpop.f32.mrb[0].mxu0
      %v2176 = vpop.f32.mrb[0].mxu0
      %v2177 = vadd.f32 0.0, %v2176
      %v2178 = vpop.f32.mrb[0].mxu0
      %2179 = vmatprep.mubr.bf16.mxu0 0
      %2180 = vmatmul.mubr.bf16.gmra.mrb[0].mxu0 %v2056
      %v2181 = vpop.f32.mrb[0].mxu0
      %v2182 = vadd.f32 0.0, %v2181
      %v2183 = vpop.f32.mrb[0].mxu0
      %v2184 = vpop.f32.mrb[0].mxu0
      %v2185 = vadd.f32 0.0, %v2184
      %v2186 = vpop.f32.mrb[0].mxu0
      %2187 = vmatprep.mubr.bf16.mxu0 0
      %2188 = vmatmul.mubr.bf16.gmra.mrb[0].mxu0 %v2059
      %v2189 = vpop.f32.mrb[0].mxu0
      %v2190 = vadd.f32 0.0, %v2189
      %v2191 = vpop.f32.mrb[0].mxu0
      %v2192 = vpop.f32.mrb[0].mxu0
      %v2193 = vadd.f32 0.0, %v2192
      %v2194 = vpop.f32.mrb[0].mxu0
      %2195 = vmatprep.mubr.bf16.mxu0 0
      %2196 = vmatmul.mubr.bf16.gmra.mrb[0].mxu0 %v2062
      %v2197 = vpop.f32.mrb[0].mxu0
      %v2198 = vadd.f32 0.0, %v2197
      %v2199 = vpop.f32.mrb[0].mxu0
      %v2200 = vpop.f32.mrb[0].mxu0
      %v2201 = vadd.f32 0.0, %v2200
      %v2202 = vpop.f32.mrb[0].mxu0
      %2203 = vmatprep.mubr.bf16.mxu0 0
      %2204 = vmatmul.mubr.bf16.gmra.mrb[0].mxu0 %v2065
      %v2205 = vpop.f32.mrb[0].mxu0
      %v2206 = vadd.f32 0.0, %v2205
      %v2207 = vpop.f32.mrb[0].mxu0
      %v2208 = vpop.f32.mrb[0].mxu0
      %v2209 = vadd.f32 0.0, %v2208
      %v2210 = vpop.f32.mrb[0].mxu0
      %2211 = vmatprep.mubr.bf16.mxu0 0
      %2212 = vmatmul.mubr.bf16.gmra.mrb[0].mxu0 %v2068
      %v2213 = vpop.f32.mrb[0].mxu0
      %v2214 = vadd.f32 0.0, %v2213
      %v2215 = vpop.f32.mrb[0].mxu0
      %v2216 = vpop.f32.mrb[0].mxu0
      %v2217 = vadd.f32 0.0, %v2216
      %v2218 = vpop.f32.mrb[0].mxu0
      %2219 = vmatprep.mubr.bf16.mxu0 0
      %2220 = vmatmul.mubr.bf16.gmra.mrb[0].mxu0 %v2071
      %v2221 = vpop.f32.mrb[0].mxu0
      %v2222 = vadd.f32 0.0, %v2221
      %v2223 = vpop.f32.mrb[0].mxu0
      %v2224 = vpop.f32.mrb[0].mxu0
      %v2225 = vadd.f32 0.0, %v2224
      %v2226 = vpop.f32.mrb[0].mxu0
      %2227 = vmatprep.mubr.bf16.mxu0 0
      %2228 = vmatmul.mubr.bf16.gmra.mrb[0].mxu0 %v2074
      %v2229 = vpop.f32.mrb[0].mxu0
      %v2230 = vadd.f32 0.0, %v2229
      %v2231 = vpop.f32.mrb[0].mxu0
      %v2232 = vpop.f32.mrb[0].mxu0
      %v2233 = vadd.f32 0.0, %v2232
      %v2234 = vpop.f32.mrb[0].mxu0
      %2235 = vmatprep.mubr.bf16.mxu0 0
      %2236 = vmatmul.mubr.bf16.gmra.mrb[0].mxu0 %v2077
      %v2237 = vpop.f32.mrb[0].mxu0
      %v2238 = vadd.f32 0.0, %v2237
      %v2239 = vpop.f32.mrb[0].mxu0
      %v2240 = vpop.f32.mrb[0].mxu0
      %v2241 = vadd.f32 0.0, %v2240
      %v2242 = vpop.f32.mrb[0].mxu0
      %2243 = vdwg.mxu0
      %v2244 = vld [vmem:[%s2] sm:$0x1]
      %v2246 = vlaneseq
      %v2247 = vshrl.u32 %v2246, 7
      %v2248 = vsub.s32 0, %v2247
      %v2249 = vrot.slane %v2244, %v2248
      %v2251 = vmul.f32 %v2118, %v2249
      %v2252 = vmul.f32 %v2121, %v2249
      %v2253 = vmul.f32 %v2126, %v2249
      %v2254 = vmul.f32 %v2129, %v2249
      %v2255 = vmul.f32 %v2134, %v2249
      %v2256 = vmul.f32 %v2137, %v2249
      %v2257 = vmul.f32 %v2142, %v2249
      %v2258 = vmul.f32 %v2145, %v2249
      %v2259 = vmul.f32 %v2150, %v2249
      %v2260 = vmul.f32 %v2153, %v2249
      %v2261 = vmul.f32 %v2158, %v2249
      %v2262 = vmul.f32 %v2161, %v2249
      %v2263 = vmul.f32 %v2166, %v2249
      %v2264 = vmul.f32 %v2169, %v2249
      %v2265 = vmul.f32 %v2174, %v2249
      %v2266 = vmul.f32 %v2177, %v2249
      %v2267 = vmul.f32 %v2182, %v2249
      %v2268 = vmul.f32 %v2185, %v2249
      %v2269 = vmul.f32 %v2190, %v2249
      %v2270 = vmul.f32 %v2193, %v2249
      %v2271 = vmul.f32 %v2198, %v2249
      %v2272 = vmul.f32 %v2201, %v2249
      %v2273 = vmul.f32 %v2206, %v2249
      %v2274 = vmul.f32 %v2209, %v2249
      %v2275 = vmul.f32 %v2214, %v2249
      %v2276 = vmul.f32 %v2217, %v2249
      %v2277 = vmul.f32 %v2222, %v2249
      %v2278 = vmul.f32 %v2225, %v2249
      %v2279 = vmul.f32 %v2230, %v2249
      %v2280 = vmul.f32 %v2233, %v2249
      %v2281 = vmul.f32 %v2238, %v2249
      %v2282 = vmul.f32 %v2241, %v2249
      %v2283 = vld [vmem:[%s3] sm:$0x1]
      %v2285 = vlaneseq
      %v2286 = vshrl.u32 %v2285, 7
      %v2287 = vsub.s32 0, %v2286
      %v2288 = vrot.slane %v2283, %v2287
      %v2290 = vadd.f32 %v2251, %v2288
      %v2291 = vadd.f32 %v2252, %v2288
      %v2292 = vadd.f32 %v2253, %v2288
      %v2293 = vadd.f32 %v2254, %v2288
      %v2294 = vadd.f32 %v2255, %v2288
      %v2295 = vadd.f32 %v2256, %v2288
      %v2296 = vadd.f32 %v2257, %v2288
      %v2297 = vadd.f32 %v2258, %v2288
      %v2298 = vadd.f32 %v2259, %v2288
      %v2299 = vadd.f32 %v2260, %v2288
      %v2300 = vadd.f32 %v2261, %v2288
      %v2301 = vadd.f32 %v2262, %v2288
      %v2302 = vadd.f32 %v2263, %v2288
      %v2303 = vadd.f32 %v2264, %v2288
      %v2304 = vadd.f32 %v2265, %v2288
      %v2305 = vadd.f32 %v2266, %v2288
      %v2306 = vadd.f32 %v2267, %v2288
      %v2307 = vadd.f32 %v2268, %v2288
      %v2308 = vadd.f32 %v2269, %v2288
      %v2309 = vadd.f32 %v2270, %v2288
      %v2310 = vadd.f32 %v2271, %v2288
      %v2311 = vadd.f32 %v2272, %v2288
      %v2312 = vadd.f32 %v2273, %v2288
      %v2313 = vadd.f32 %v2274, %v2288
      %v2314 = vadd.f32 %v2275, %v2288
      %v2315 = vadd.f32 %v2276, %v2288
      %v2316 = vadd.f32 %v2277, %v2288
      %v2317 = vadd.f32 %v2278, %v2288
      %v2318 = vadd.f32 %v2279, %v2288
      %v2319 = vadd.f32 %v2280, %v2288
      %v2320 = vadd.f32 %v2281, %v2288
      %v2321 = vadd.f32 %v2282, %v2288
      %v2322 = vmax.f32 %v2290, 0.0
      %v2323 = vmax.f32 %v2291, 0.0
      %v2324 = vmax.f32 %v2292, 0.0
      %v2325 = vmax.f32 %v2293, 0.0
      %v2326 = vmax.f32 %v2294, 0.0
      %v2327 = vmax.f32 %v2295, 0.0
      %v2328 = vmax.f32 %v2296, 0.0
      %v2329 = vmax.f32 %v2297, 0.0
      %v2330 = vmax.f32 %v2298, 0.0
      %v2331 = vmax.f32 %v2299, 0.0
      %v2332 = vmax.f32 %v2300, 0.0
      %v2333 = vmax.f32 %v2301, 0.0
      %v2334 = vmax.f32 %v2302, 0.0
      %v2335 = vmax.f32 %v2303, 0.0
      %v2336 = vmax.f32 %v2304, 0.0
      %v2337 = vmax.f32 %v2305, 0.0
      %v2338 = vmax.f32 %v2306, 0.0
      %v2339 = vmax.f32 %v2307, 0.0
      %v2340 = vmax.f32 %v2308, 0.0
      %v2341 = vmax.f32 %v2309, 0.0
      %v2342 = vmax.f32 %v2310, 0.0
      %v2343 = vmax.f32 %v2311, 0.0
      %v2344 = vmax.f32 %v2312, 0.0
      %v2345 = vmax.f32 %v2313, 0.0
      %v2346 = vmax.f32 %v2314, 0.0
      %v2347 = vmax.f32 %v2315, 0.0
      %v2348 = vmax.f32 %v2316, 0.0
      %v2349 = vmax.f32 %v2317, 0.0
      %v2350 = vmax.f32 %v2318, 0.0
      %v2351 = vmax.f32 %v2319, 0.0
      %v2352 = vmax.f32 %v2320, 0.0
      %v2353 = vmax.f32 %v2321, 0.0
      %2354 = vst.msk [vmem:[#allocation3] sm:$0xff] %vm1763, 0.0
      %2355 = vst.msk [vmem:[#allocation3 + $0x8] sm:$0xff] %vm1763, 0.0
      %2356 = vst.msk [vmem:[#allocation3 + $0x10] sm:$0xff] %vm1763, 0.0
      %2357 = vst.msk [vmem:[#allocation3 + $0x18] sm:$0xff] %vm1763, 0.0
      %2358 = vst.msk [vmem:[#allocation3 + $0x20] sm:$0xff] %vm1763, 0.0
      %2359 = vst.msk [vmem:[#allocation3 + $0x28] sm:$0xff] %vm1763, 0.0
      %2360 = vst.msk [vmem:[#allocation3 + $0x30] sm:$0xff] %vm1763, 0.0
      %2361 = vst.msk [vmem:[#allocation3 + $0x38] sm:$0xff] %vm1763, 0.0
      %2362 = vst.msk [vmem:[#allocation3 + $0x40] sm:$0xff] %vm1763, 0.0
      %2363 = vst.msk [vmem:[#allocation3 + $0x48] sm:$0xff] %vm1763, 0.0
      %2364 = vst.msk [vmem:[#allocation3 + $0x50] sm:$0xff] %vm1763, 0.0
      %2365 = vst.msk [vmem:[#allocation3 + $0x58] sm:$0xff] %vm1763, 0.0
      %2366 = vst.msk [vmem:[#allocation3 + $0x60] sm:$0xff] %vm1763, 0.0
      %2367 = vst.msk [vmem:[#allocation3 + $0x68] sm:$0xff] %vm1763, 0.0
      %2368 = vst.msk [vmem:[#allocation3 + $0x70] sm:$0xff] %vm1763, 0.0
      %2369 = vst.msk [vmem:[#allocation3 + $0x78] sm:$0xff] %vm1763, 0.0
      %2370 = vst.msk [vmem:[#allocation3 + $0x80] sm:$0xff] %vm1763, 0.0
      %2371 = vst.msk [vmem:[#allocation3 + $0x88] sm:$0xff] %vm1763, 0.0
      %2372 = vst.msk [vmem:[#allocation3 + $0x90] sm:$0xff] %vm1763, 0.0
      %2373 = vst.msk [vmem:[#allocation3 + $0x98] sm:$0xff] %vm1763, 0.0
      %2374 = vst.msk [vmem:[#allocation3 + $0xa0] sm:$0xff] %vm1763, 0.0
      %2375 = vst.msk [vmem:[#allocation3 + $0xa8] sm:$0xff] %vm1763, 0.0
      %2376 = vst.msk [vmem:[#allocation3 + $0xb0] sm:$0xff] %vm1763, 0.0
      %2377 = vst.msk [vmem:[#allocation3 + $0xb8] sm:$0xff] %vm1763, 0.0
      %2378 = vst.msk [vmem:[#allocation3 + $0xc0] sm:$0xff] %vm1763, 0.0
      %2379 = vst.msk [vmem:[#allocation3 + $0xc8] sm:$0xff] %vm1763, 0.0
      %2380 = vst.msk [vmem:[#allocation3 + $0xd0] sm:$0xff] %vm1763, 0.0
      %2381 = vst.msk [vmem:[#allocation3 + $0xd8] sm:$0xff] %vm1763, 0.0
      %2382 = vst.msk [vmem:[#allocation3 + $0xe0] sm:$0xff] %vm1763, 0.0
      %2383 = vst.msk [vmem:[#allocation3 + $0xe8] sm:$0xff] %vm1763, 0.0
      %2384 = vst.msk [vmem:[#allocation3 + $0xf0] sm:$0xff] %vm1763, 0.0
      %2385 = vst.msk [vmem:[#allocation3 + $0xf8] sm:$0xff] %vm1763, 0.0
      %2386 = vst.msk [vmem:[#allocation3 + $0x100] sm:$0xff] %vm1763, 0.0
      %2387 = vst.msk [vmem:[#allocation3 + $0x108] sm:$0xff] %vm1763, 0.0
      %2388 = vst.msk [vmem:[#allocation3 + $0x110] sm:$0xff] %vm1763, 0.0
      %2389 = vst.msk [vmem:[#allocation3 + $0x118] sm:$0xff] %vm1763, 0.0
      %2390 = vst.msk [vmem:[#allocation3 + $0x120] sm:$0xff] %vm1763, 0.0
      %2391 = vst.msk [vmem:[#allocation3 + $0x128] sm:$0xff] %vm1763, 0.0
      %2392 = vst.msk [vmem:[#allocation3 + $0x130] sm:$0xff] %vm1763, 0.0
      %2393 = vst.msk [vmem:[#allocation3 + $0x138] sm:$0xff] %vm1763, 0.0
      %2394 = vst.msk [vmem:[#allocation3 + $0x140] sm:$0xff] %vm1763, 0.0
      %2395 = vst.msk [vmem:[#allocation3 + $0x148] sm:$0xff] %vm1763, 0.0
      %2396 = vst.msk [vmem:[#allocation3 + $0x150] sm:$0xff] %vm1763, 0.0
      %2397 = vst.msk [vmem:[#allocation3 + $0x158] sm:$0xff] %vm1763, 0.0
      %2398 = vst.msk [vmem:[#allocation3 + $0x160] sm:$0xff] %vm1763, 0.0
      %2399 = vst.msk [vmem:[#allocation3 + $0x168] sm:$0xff] %vm1763, 0.0
      %2400 = vst.msk [vmem:[#allocation3 + $0x170] sm:$0xff] %vm1763, 0.0
      %2401 = vst.msk [vmem:[#allocation3 + $0x178] sm:$0xff] %vm1763, 0.0
      %2402 = vst.msk [vmem:[#allocation3 + $0x180] sm:$0xff] %vm1763, 0.0
      %2403 = vst.msk [vmem:[#allocation3 + $0x188] sm:$0xff] %vm1763, 0.0
      %2404 = vst.msk [vmem:[#allocation3 + $0x190] sm:$0xff] %vm1763, 0.0
      %2405 = vst.msk [vmem:[#allocation3 + $0x198] sm:$0xff] %vm1763, 0.0
      %2406 = vst.msk [vmem:[#allocation3 + $0x1a0] sm:$0xff] %vm1763, 0.0
      %2407 = vst.msk [vmem:[#allocation3 + $0x1a8] sm:$0xff] %vm1763, 0.0
      %2408 = vst.msk [vmem:[#allocation3 + $0x1b0] sm:$0xff] %vm1763, 0.0
      %2409 = vst.msk [vmem:[#allocation3 + $0x1b8] sm:$0xff] %vm1763, 0.0
      %2410 = vst.msk [vmem:[#allocation3 + $0x1c0] sm:$0xff] %vm1763, 0.0
      %2411 = vst.msk [vmem:[#allocation3 + $0x1c8] sm:$0xff] %vm1763, 0.0
      %2412 = vst.msk [vmem:[#allocation3 + $0x1d0] sm:$0xff] %vm1763, 0.0
      %2413 = vst.msk [vmem:[#allocation3 + $0x1d8] sm:$0xff] %vm1763, 0.0
      %2414 = vst.msk [vmem:[#allocation3 + $0x1e0] sm:$0xff] %vm1763, 0.0
      %2415 = vst.msk [vmem:[#allocation3 + $0x1e8] sm:$0xff] %vm1763, 0.0
      %2416 = vst.msk [vmem:[#allocation3 + $0x1f0] sm:$0xff] %vm1763, 0.0
      %2417 = vst.msk [vmem:[#allocation3 + $0x1f8] sm:$0xff] %vm1763, 0.0
      %2418 = vst.msk [vmem:[#allocation3 + $0x200] sm:$0xff] %vm1763, 0.0
      %2419 = vst.msk [vmem:[#allocation3 + $0x208] sm:$0xff] %vm1763, 0.0
      %2420 = vst.msk [vmem:[#allocation3 + $0x210] sm:$0xff] %vm1763, 0.0
      %2421 = vst.msk [vmem:[#allocation3 + $0x218] sm:$0xff] %vm1763, 0.0
      %2422 = vst.msk [vmem:[#allocation3 + $0x220] sm:$0xff] %vm1763, 0.0
      %2423 = vst.msk [vmem:[#allocation3 + $0x228] sm:$0xff] %vm1763, 0.0
      %2424 = vst.msk [vmem:[#allocation3 + $0x230] sm:$0xff] %vm1763, 0.0
      %2425 = vst.msk [vmem:[#allocation3 + $0x238] sm:$0xff] %vm1763, 0.0
      %s2426 = scalar_lea.vmem [#allocation3], 32
      %2427 = vst.msk [vmem:[%s2426 + $0x8] sm:$0xff] %vm1763, %v2322
      %2428 = vst.msk [vmem:[%s2426 + $0x10] sm:$0xff] %vm1763, %v2323
      %2429 = vst.msk [vmem:[%s2426 + $0x28] sm:$0xff] %vm1763, %v2324
      %2430 = vst.msk [vmem:[%s2426 + $0x30] sm:$0xff] %vm1763, %v2325
      %2431 = vst.msk [vmem:[%s2426 + $0x48] sm:$0xff] %vm1763, %v2326
      %2432 = vst.msk [vmem:[%s2426 + $0x50] sm:$0xff] %vm1763, %v2327
      %2433 = vst.msk [vmem:[%s2426 + $0x68] sm:$0xff] %vm1763, %v2328
      %2434 = vst.msk [vmem:[%s2426 + $0x70] sm:$0xff] %vm1763, %v2329
      %2435 = vst.msk [vmem:[%s2426 + $0x88] sm:$0xff] %vm1763, %v2330
      %2436 = vst.msk [vmem:[%s2426 + $0x90] sm:$0xff] %vm1763, %v2331
      %2437 = vst.msk [vmem:[%s2426 + $0xa8] sm:$0xff] %vm1763, %v2332
      %2438 = vst.msk [vmem:[%s2426 + $0xb0] sm:$0xff] %vm1763, %v2333
      %2439 = vst.msk [vmem:[%s2426 + $0xc8] sm:$0xff] %vm1763, %v2334
      %2440 = vst.msk [vmem:[%s2426 + $0xd0] sm:$0xff] %vm1763, %v2335
      %2441 = vst.msk [vmem:[%s2426 + $0xe8] sm:$0xff] %vm1763, %v2336
      %2442 = vst.msk [vmem:[%s2426 + $0xf0] sm:$0xff] %vm1763, %v2337
      %2443 = vst.msk [vmem:[%s2426 + $0x108] sm:$0xff] %vm1763, %v2338
      %2444 = vst.msk [vmem:[%s2426 + $0x110] sm:$0xff] %vm1763, %v2339
      %2445 = vst.msk [vmem:[%s2426 + $0x128] sm:$0xff] %vm1763, %v2340
      %2446 = vst.msk [vmem:[%s2426 + $0x130] sm:$0xff] %vm1763, %v2341
      %2447 = vst.msk [vmem:[%s2426 + $0x148] sm:$0xff] %vm1763, %v2342
      %2448 = vst.msk [vmem:[%s2426 + $0x150] sm:$0xff] %vm1763, %v2343
      %2449 = vst.msk [vmem:[%s2426 + $0x168] sm:$0xff] %vm1763, %v2344
      %2450 = vst.msk [vmem:[%s2426 + $0x170] sm:$0xff] %vm1763, %v2345
      %2451 = vst.msk [vmem:[%s2426 + $0x188] sm:$0xff] %vm1763, %v2346
      %2452 = vst.msk [vmem:[%s2426 + $0x190] sm:$0xff] %vm1763, %v2347
      %2453 = vst.msk [vmem:[%s2426 + $0x1a8] sm:$0xff] %vm1763, %v2348
      %2454 = vst.msk [vmem:[%s2426 + $0x1b0] sm:$0xff] %vm1763, %v2349
      %2455 = vst.msk [vmem:[%s2426 + $0x1c8] sm:$0xff] %vm1763, %v2350
      %2456 = vst.msk [vmem:[%s2426 + $0x1d0] sm:$0xff] %vm1763, %v2351
      %2457 = vst.msk [vmem:[%s2426 + $0x1e8] sm:$0xff] %vm1763, %v2352
      %2458 = vst.msk [vmem:[%s2426 + $0x1f0] sm:$0xff] %vm1763, %v2353
      %v2459 = vld [vmem:[#allocation3 + $0x7] sm:$0xff]
      %v2460 = vld [vmem:[#allocation3 + $0xf] sm:$0xff]
      %v2461 = vld [vmem:[#allocation3 + $0x27] sm:$0xff]
      %v2462 = vld [vmem:[#allocation3 + $0x2f] sm:$0xff]
      %v2463 = vld [vmem:[#allocation3 + $0x47] sm:$0xff]
      %v2464 = vld [vmem:[#allocation3 + $0x4f] sm:$0xff]
      %v2465 = vld [vmem:[#allocation3 + $0x67] sm:$0xff]
      %v2466 = vld [vmem:[#allocation3 + $0x6f] sm:$0xff]
      %v2467 = vld [vmem:[#allocation3 + $0x87] sm:$0xff]
      %v2468 = vld [vmem:[#allocation3 + $0x8f] sm:$0xff]
      %v2469 = vld [vmem:[#allocation3 + $0xa7] sm:$0xff]
      %v2470 = vld [vmem:[#allocation3 + $0xaf] sm:$0xff]
      %v2471 = vld [vmem:[#allocation3 + $0xc7] sm:$0xff]
      %v2472 = vld [vmem:[#allocation3 + $0xcf] sm:$0xff]
      %v2473 = vld [vmem:[#allocation3 + $0xe7] sm:$0xff]
      %v2474 = vld [vmem:[#allocation3 + $0xef] sm:$0xff]
      %v2475 = vld [vmem:[#allocation3 + $0x107] sm:$0xff]
      %v2476 = vld [vmem:[#allocation3 + $0x10f] sm:$0xff]
      %v2477 = vld [vmem:[#allocation3 + $0x127] sm:$0xff]
      %v2478 = vld [vmem:[#allocation3 + $0x12f] sm:$0xff]
      %v2479 = vld [vmem:[#allocation3 + $0x147] sm:$0xff]
      %v2480 = vld [vmem:[#allocation3 + $0x14f] sm:$0xff]
      %v2481 = vld [vmem:[#allocation3 + $0x167] sm:$0xff]
      %v2482 = vld [vmem:[#allocation3 + $0x16f] sm:$0xff]
      %v2483 = vld [vmem:[#allocation3 + $0x187] sm:$0xff]
      %v2484 = vld [vmem:[#allocation3 + $0x18f] sm:$0xff]
      %v2485 = vld [vmem:[#allocation3 + $0x1a7] sm:$0xff]
      %v2486 = vld [vmem:[#allocation3 + $0x1af] sm:$0xff]
      %v2487 = vld [vmem:[#allocation3 + $0x1c7] sm:$0xff]
      %v2488 = vld [vmem:[#allocation3 + $0x1cf] sm:$0xff]
      %v2489 = vld [vmem:[#allocation3 + $0x1e7] sm:$0xff]
      %v2490 = vld [vmem:[#allocation3 + $0x1ef] sm:$0xff]
      %v2491 = vld [vmem:[#allocation3 + $0x8] sm:$0xff]
      %v2492 = vld [vmem:[#allocation3 + $0x10] sm:$0xff]
      %v2493 = vld [vmem:[#allocation3 + $0x28] sm:$0xff]
      %v2494 = vld [vmem:[#allocation3 + $0x30] sm:$0xff]
      %v2495 = vld [vmem:[#allocation3 + $0x48] sm:$0xff]
      %v2496 = vld [vmem:[#allocation3 + $0x50] sm:$0xff]
      %v2497 = vld [vmem:[#allocation3 + $0x68] sm:$0xff]
      %v2498 = vld [vmem:[#allocation3 + $0x70] sm:$0xff]
      %v2499 = vld [vmem:[#allocation3 + $0x88] sm:$0xff]
      %v2500 = vld [vmem:[#allocation3 + $0x90] sm:$0xff]
      %v2501 = vld [vmem:[#allocation3 + $0xa8] sm:$0xff]
      %v2502 = vld [vmem:[#allocation3 + $0xb0] sm:$0xff]
      %v2503 = vld [vmem:[#allocation3 + $0xc8] sm:$0xff]
      %v2504 = vld [vmem:[#allocation3 + $0xd0] sm:$0xff]
      %v2505 = vld [vmem:[#allocation3 + $0xe8] sm:$0xff]
      %v2506 = vld [vmem:[#allocation3 + $0xf0] sm:$0xff]
      %v2507 = vld [vmem:[#allocation3 + $0x108] sm:$0xff]
      %v2508 = vld [vmem:[#allocation3 + $0x110] sm:$0xff]
      %v2509 = vld [vmem:[#allocation3 + $0x128] sm:$0xff]
      %v2510 = vld [vmem:[#allocation3 + $0x130] sm:$0xff]
      %v2511 = vld [vmem:[#allocation3 + $0x148] sm:$0xff]
      %v2512 = vld [vmem:[#allocation3 + $0x150] sm:$0xff]
      %v2513 = vld [vmem:[#allocation3 + $0x168] sm:$0xff]
      %v2514 = vld [vmem:[#allocation3 + $0x170] sm:$0xff]
      %v2515 = vld [vmem:[#allocation3 + $0x188] sm:$0xff]
      %v2516 = vld [vmem:[#allocation3 + $0x190] sm:$0xff]
      %v2517 = vld [vmem:[#allocation3 + $0x1a8] sm:$0xff]
      %v2518 = vld [vmem:[#allocation3 + $0x1b0] sm:$0xff]
      %v2519 = vld [vmem:[#allocation3 + $0x1c8] sm:$0xff]
      %v2520 = vld [vmem:[#allocation3 + $0x1d0] sm:$0xff]
      %v2521 = vld [vmem:[#allocation3 + $0x1e8] sm:$0xff]
      %v2522 = vld [vmem:[#allocation3 + $0x1f0] sm:$0xff]
      %v2523 = vld [vmem:[#allocation3 + $0x9] sm:$0xff]
      %v2524 = vld [vmem:[#allocation3 + $0x11] sm:$0xff]
      %v2525 = vld [vmem:[#allocation3 + $0x29] sm:$0xff]
      %v2526 = vld [vmem:[#allocation3 + $0x31] sm:$0xff]
      %v2527 = vld [vmem:[#allocation3 + $0x49] sm:$0xff]
      %v2528 = vld [vmem:[#allocation3 + $0x51] sm:$0xff]
      %v2529 = vld [vmem:[#allocation3 + $0x69] sm:$0xff]
      %v2530 = vld [vmem:[#allocation3 + $0x71] sm:$0xff]
      %v2531 = vld [vmem:[#allocation3 + $0x89] sm:$0xff]
      %v2532 = vld [vmem:[#allocation3 + $0x91] sm:$0xff]
      %v2533 = vld [vmem:[#allocation3 + $0xa9] sm:$0xff]
      %v2534 = vld [vmem:[#allocation3 + $0xb1] sm:$0xff]
      %v2535 = vld [vmem:[#allocation3 + $0xc9] sm:$0xff]
      %v2536 = vld [vmem:[#allocation3 + $0xd1] sm:$0xff]
      %v2537 = vld [vmem:[#allocation3 + $0xe9] sm:$0xff]
      %v2538 = vld [vmem:[#allocation3 + $0xf1] sm:$0xff]
      %v2539 = vld [vmem:[#allocation3 + $0x109] sm:$0xff]
      %v2540 = vld [vmem:[#allocation3 + $0x111] sm:$0xff]
      %v2541 = vld [vmem:[#allocation3 + $0x129] sm:$0xff]
      %v2542 = vld [vmem:[#allocation3 + $0x131] sm:$0xff]
      %v2543 = vld [vmem:[#allocation3 + $0x149] sm:$0xff]
      %v2544 = vld [vmem:[#allocation3 + $0x151] sm:$0xff]
      %v2545 = vld [vmem:[#allocation3 + $0x169] sm:$0xff]
      %v2546 = vld [vmem:[#allocation3 + $0x171] sm:$0xff]
      %v2547 = vld [vmem:[#allocation3 + $0x189] sm:$0xff]
      %v2548 = vld [vmem:[#allocation3 + $0x191] sm:$0xff]
      %v2549 = vld [vmem:[#allocation3 + $0x1a9] sm:$0xff]
      %v2550 = vld [vmem:[#allocation3 + $0x1b1] sm:$0xff]
      %v2551 = vld [vmem:[#allocation3 + $0x1c9] sm:$0xff]
      %v2552 = vld [vmem:[#allocation3 + $0x1d1] sm:$0xff]
      %v2553 = vld [vmem:[#allocation3 + $0x1e9] sm:$0xff]
      %v2554 = vld [vmem:[#allocation3 + $0x1f1] sm:$0xff]
      %v2555 = vld [vmem:[%s2426 + $0x7] sm:$0xff]
      %v2556 = vld [vmem:[%s2426 + $0xf] sm:$0xff]
      %v2557 = vld [vmem:[%s2426 + $0x27] sm:$0xff]
      %v2558 = vld [vmem:[%s2426 + $0x2f] sm:$0xff]
      %v2559 = vld [vmem:[%s2426 + $0x47] sm:$0xff]
      %v2560 = vld [vmem:[%s2426 + $0x4f] sm:$0xff]
      %v2561 = vld [vmem:[%s2426 + $0x67] sm:$0xff]
      %v2562 = vld [vmem:[%s2426 + $0x6f] sm:$0xff]
      %v2563 = vld [vmem:[%s2426 + $0x87] sm:$0xff]
      %v2564 = vld [vmem:[%s2426 + $0x8f] sm:$0xff]
      %v2565 = vld [vmem:[%s2426 + $0xa7] sm:$0xff]
      %v2566 = vld [vmem:[%s2426 + $0xaf] sm:$0xff]
      %v2567 = vld [vmem:[%s2426 + $0xc7] sm:$0xff]
      %v2568 = vld [vmem:[%s2426 + $0xcf] sm:$0xff]
      %v2569 = vld [vmem:[%s2426 + $0xe7] sm:$0xff]
      %v2570 = vld [vmem:[%s2426 + $0xef] sm:$0xff]
      %v2571 = vld [vmem:[%s2426 + $0x107] sm:$0xff]
      %v2572 = vld [vmem:[%s2426 + $0x10f] sm:$0xff]
      %v2573 = vld [vmem:[%s2426 + $0x127] sm:$0xff]
      %v2574 = vld [vmem:[%s2426 + $0x12f] sm:$0xff]
      %v2575 = vld [vmem:[%s2426 + $0x147] sm:$0xff]
      %v2576 = vld [vmem:[%s2426 + $0x14f] sm:$0xff]
      %v2577 = vld [vmem:[%s2426 + $0x167] sm:$0xff]
      %v2578 = vld [vmem:[%s2426 + $0x16f] sm:$0xff]
      %v2579 = vld [vmem:[%s2426 + $0x187] sm:$0xff]
      %v2580 = vld [vmem:[%s2426 + $0x18f] sm:$0xff]
      %v2581 = vld [vmem:[%s2426 + $0x1a7] sm:$0xff]
      %v2582 = vld [vmem:[%s2426 + $0x1af] sm:$0xff]
      %v2583 = vld [vmem:[%s2426 + $0x1c7] sm:$0xff]
      %v2584 = vld [vmem:[%s2426 + $0x1cf] sm:$0xff]
      %v2585 = vld [vmem:[%s2426 + $0x1e7] sm:$0xff]
      %v2586 = vld [vmem:[%s2426 + $0x1ef] sm:$0xff]
      %v2587 = vld [vmem:[%s2426 + $0x8] sm:$0xff]
      %v2588 = vld [vmem:[%s2426 + $0x10] sm:$0xff]
      %v2589 = vld [vmem:[%s2426 + $0x28] sm:$0xff]
      %v2590 = vld [vmem:[%s2426 + $0x30] sm:$0xff]
      %v2591 = vld [vmem:[%s2426 + $0x48] sm:$0xff]
      %v2592 = vld [vmem:[%s2426 + $0x50] sm:$0xff]
      %v2593 = vld [vmem:[%s2426 + $0x68] sm:$0xff]
      %v2594 = vld [vmem:[%s2426 + $0x70] sm:$0xff]
      %v2595 = vld [vmem:[%s2426 + $0x88] sm:$0xff]
      %v2596 = vld [vmem:[%s2426 + $0x90] sm:$0xff]
      %v2597 = vld [vmem:[%s2426 + $0xa8] sm:$0xff]
      %v2598 = vld [vmem:[%s2426 + $0xb0] sm:$0xff]
      %v2599 = vld [vmem:[%s2426 + $0xc8] sm:$0xff]
      %v2600 = vld [vmem:[%s2426 + $0xd0] sm:$0xff]
      %v2601 = vld [vmem:[%s2426 + $0xe8] sm:$0xff]
      %v2602 = vld [vmem:[%s2426 + $0xf0] sm:$0xff]
      %v2603 = vld [vmem:[%s2426 + $0x108] sm:$0xff]
      %v2604 = vld [vmem:[%s2426 + $0x110] sm:$0xff]
      %v2605 = vld [vmem:[%s2426 + $0x128] sm:$0xff]
      %v2606 = vld [vmem:[%s2426 + $0x130] sm:$0xff]
      %v2607 = vld [vmem:[%s2426 + $0x148] sm:$0xff]
      %v2608 = vld [vmem:[%s2426 + $0x150] sm:$0xff]
      %v2609 = vld [vmem:[%s2426 + $0x168] sm:$0xff]
      %v2610 = vld [vmem:[%s2426 + $0x170] sm:$0xff]
      %v2611 = vld [vmem:[%s2426 + $0x188] sm:$0xff]
      %v2612 = vld [vmem:[%s2426 + $0x190] sm:$0xff]
      %v2613 = vld [vmem:[%s2426 + $0x1a8] sm:$0xff]
      %v2614 = vld [vmem:[%s2426 + $0x1b0] sm:$0xff]
      %v2615 = vld [vmem:[%s2426 + $0x1c8] sm:$0xff]
      %v2616 = vld [vmem:[%s2426 + $0x1d0] sm:$0xff]
      %v2617 = vld [vmem:[%s2426 + $0x1e8] sm:$0xff]
      %v2618 = vld [vmem:[%s2426 + $0x1f0] sm:$0xff]
      %v2619 = vld [vmem:[%s2426 + $0x9] sm:$0xff]
      %v2620 = vld [vmem:[%s2426 + $0x11] sm:$0xff]
      %v2621 = vld [vmem:[%s2426 + $0x29] sm:$0xff]
      %v2622 = vld [vmem:[%s2426 + $0x31] sm:$0xff]
      %v2623 = vld [vmem:[%s2426 + $0x49] sm:$0xff]
      %v2624 = vld [vmem:[%s2426 + $0x51] sm:$0xff]
      %v2625 = vld [vmem:[%s2426 + $0x69] sm:$0xff]
      %v2626 = vld [vmem:[%s2426 + $0x71] sm:$0xff]
      %v2627 = vld [vmem:[%s2426 + $0x89] sm:$0xff]
      %v2628 = vld [vmem:[%s2426 + $0x91] sm:$0xff]
      %v2629 = vld [vmem:[%s2426 + $0xa9] sm:$0xff]
      %v2630 = vld [vmem:[%s2426 + $0xb1] sm:$0xff]
      %v2631 = vld [vmem:[%s2426 + $0xc9] sm:$0xff]
      %v2632 = vld [vmem:[%s2426 + $0xd1] sm:$0xff]
      %v2633 = vld [vmem:[%s2426 + $0xe9] sm:$0xff]
      %v2634 = vld [vmem:[%s2426 + $0xf1] sm:$0xff]
      %v2635 = vld [vmem:[%s2426 + $0x109] sm:$0xff]
      %v2636 = vld [vmem:[%s2426 + $0x111] sm:$0xff]
      %v2637 = vld [vmem:[%s2426 + $0x129] sm:$0xff]
      %v2638 = vld [vmem:[%s2426 + $0x131] sm:$0xff]
      %v2639 = vld [vmem:[%s2426 + $0x149] sm:$0xff]
      %v2640 = vld [vmem:[%s2426 + $0x151] sm:$0xff]
      %v2641 = vld [vmem:[%s2426 + $0x169] sm:$0xff]
      %v2642 = vld [vmem:[%s2426 + $0x171] sm:$0xff]
      %v2643 = vld [vmem:[%s2426 + $0x189] sm:$0xff]
      %v2644 = vld [vmem:[%s2426 + $0x191] sm:$0xff]
      %v2645 = vld [vmem:[%s2426 + $0x1a9] sm:$0xff]
      %v2646 = vld [vmem:[%s2426 + $0x1b1] sm:$0xff]
      %v2647 = vld [vmem:[%s2426 + $0x1c9] sm:$0xff]
      %v2648 = vld [vmem:[%s2426 + $0x1d1] sm:$0xff]
      %v2649 = vld [vmem:[%s2426 + $0x1e9] sm:$0xff]
      %v2650 = vld [vmem:[%s2426 + $0x1f1] sm:$0xff]
      %s2651 = scalar_lea.vmem [#allocation3], 64
      %v2652 = vld [vmem:[%s2651 + $0x7] sm:$0xff]
      %v2653 = vld [vmem:[%s2651 + $0xf] sm:$0xff]
      %v2654 = vld [vmem:[%s2651 + $0x27] sm:$0xff]
      %v2655 = vld [vmem:[%s2651 + $0x2f] sm:$0xff]
      %v2656 = vld [vmem:[%s2651 + $0x47] sm:$0xff]
      %v2657 = vld [vmem:[%s2651 + $0x4f] sm:$0xff]
      %v2658 = vld [vmem:[%s2651 + $0x67] sm:$0xff]
      %v2659 = vld [vmem:[%s2651 + $0x6f] sm:$0xff]
      %v2660 = vld [vmem:[%s2651 + $0x87] sm:$0xff]
      %v2661 = vld [vmem:[%s2651 + $0x8f] sm:$0xff]
      %v2662 = vld [vmem:[%s2651 + $0xa7] sm:$0xff]
      %v2663 = vld [vmem:[%s2651 + $0xaf] sm:$0xff]
      %v2664 = vld [vmem:[%s2651 + $0xc7] sm:$0xff]
      %v2665 = vld [vmem:[%s2651 + $0xcf] sm:$0xff]
      %v2666 = vld [vmem:[%s2651 + $0xe7] sm:$0xff]
      %v2667 = vld [vmem:[%s2651 + $0xef] sm:$0xff]
      %v2668 = vld [vmem:[%s2651 + $0x107] sm:$0xff]
      %v2669 = vld [vmem:[%s2651 + $0x10f] sm:$0xff]
      %v2670 = vld [vmem:[%s2651 + $0x127] sm:$0xff]
      %v2671 = vld [vmem:[%s2651 + $0x12f] sm:$0xff]
      %v2672 = vld [vmem:[%s2651 + $0x147] sm:$0xff]
      %v2673 = vld [vmem:[%s2651 + $0x14f] sm:$0xff]
      %v2674 = vld [vmem:[%s2651 + $0x167] sm:$0xff]
      %v2675 = vld [vmem:[%s2651 + $0x16f] sm:$0xff]
      %v2676 = vld [vmem:[%s2651 + $0x187] sm:$0xff]
      %v2677 = vld [vmem:[%s2651 + $0x18f] sm:$0xff]
      %v2678 = vld [vmem:[%s2651 + $0x1a7] sm:$0xff]
      %v2679 = vld [vmem:[%s2651 + $0x1af] sm:$0xff]
      %v2680 = vld [vmem:[%s2651 + $0x1c7] sm:$0xff]
      %v2681 = vld [vmem:[%s2651 + $0x1cf] sm:$0xff]
      %v2682 = vld [vmem:[%s2651 + $0x1e7] sm:$0xff]
      %v2683 = vld [vmem:[%s2651 + $0x1ef] sm:$0xff]
      %v2684 = vld [vmem:[%s2651 + $0x8] sm:$0xff]
      %v2685 = vld [vmem:[%s2651 + $0x10] sm:$0xff]
      %v2686 = vld [vmem:[%s2651 + $0x28] sm:$0xff]
      %v2687 = vld [vmem:[%s2651 + $0x30] sm:$0xff]
      %v2688 = vld [vmem:[%s2651 + $0x48] sm:$0xff]
      %v2689 = vld [vmem:[%s2651 + $0x50] sm:$0xff]
      %v2690 = vld [vmem:[%s2651 + $0x68] sm:$0xff]
      %v2691 = vld [vmem:[%s2651 + $0x70] sm:$0xff]
      %v2692 = vld [vmem:[%s2651 + $0x88] sm:$0xff]
      %v2693 = vld [vmem:[%s2651 + $0x90] sm:$0xff]
      %v2694 = vld [vmem:[%s2651 + $0xa8] sm:$0xff]
      %v2695 = vld [vmem:[%s2651 + $0xb0] sm:$0xff]
      %v2696 = vld [vmem:[%s2651 + $0xc8] sm:$0xff]
      %v2697 = vld [vmem:[%s2651 + $0xd0] sm:$0xff]
      %v2698 = vld [vmem:[%s2651 + $0xe8] sm:$0xff]
      %v2699 = vld [vmem:[%s2651 + $0xf0] sm:$0xff]
      %v2700 = vld [vmem:[%s2651 + $0x108] sm:$0xff]
      %v2701 = vld [vmem:[%s2651 + $0x110] sm:$0xff]
      %v2702 = vld [vmem:[%s2651 + $0x128] sm:$0xff]
      %v2703 = vld [vmem:[%s2651 + $0x130] sm:$0xff]
      %v2704 = vld [vmem:[%s2651 + $0x148] sm:$0xff]
      %v2705 = vld [vmem:[%s2651 + $0x150] sm:$0xff]
      %v2706 = vld [vmem:[%s2651 + $0x168] sm:$0xff]
      %v2707 = vld [vmem:[%s2651 + $0x170] sm:$0xff]
      %v2708 = vld [vmem:[%s2651 + $0x188] sm:$0xff]
      %v2709 = vld [vmem:[%s2651 + $0x190] sm:$0xff]
      %v2710 = vld [vmem:[%s2651 + $0x1a8] sm:$0xff]
      %v2711 = vld [vmem:[%s2651 + $0x1b0] sm:$0xff]
      %v2712 = vld [vmem:[%s2651 + $0x1c8] sm:$0xff]
      %v2713 = vld [vmem:[%s2651 + $0x1d0] sm:$0xff]
      %v2714 = vld [vmem:[%s2651 + $0x1e8] sm:$0xff]
      %v2715 = vld [vmem:[%s2651 + $0x1f0] sm:$0xff]
      %v2716 = vld [vmem:[%s2651 + $0x9] sm:$0xff]
      %v2717 = vld [vmem:[%s2651 + $0x11] sm:$0xff]
      %v2718 = vld [vmem:[%s2651 + $0x29] sm:$0xff]
      %v2719 = vld [vmem:[%s2651 + $0x31] sm:$0xff]
      %v2720 = vld [vmem:[%s2651 + $0x49] sm:$0xff]
      %v2721 = vld [vmem:[%s2651 + $0x51] sm:$0xff]
      %v2722 = vld [vmem:[%s2651 + $0x69] sm:$0xff]
      %v2723 = vld [vmem:[%s2651 + $0x71] sm:$0xff]
      %v2724 = vld [vmem:[%s2651 + $0x89] sm:$0xff]
      %v2725 = vld [vmem:[%s2651 + $0x91] sm:$0xff]
      %v2726 = vld [vmem:[%s2651 + $0xa9] sm:$0xff]
      %v2727 = vld [vmem:[%s2651 + $0xb1] sm:$0xff]
      %v2728 = vld [vmem:[%s2651 + $0xc9] sm:$0xff]
      %v2729 = vld [vmem:[%s2651 + $0xd1] sm:$0xff]
      %v2730 = vld [vmem:[%s2651 + $0xe9] sm:$0xff]
      %v2731 = vld [vmem:[%s2651 + $0xf1] sm:$0xff]
      %v2732 = vld [vmem:[%s2651 + $0x109] sm:$0xff]
      %v2733 = vld [vmem:[%s2651 + $0x111] sm:$0xff]
      %v2734 = vld [vmem:[%s2651 + $0x129] sm:$0xff]
      %v2735 = vld [vmem:[%s2651 + $0x131] sm:$0xff]
      %v2736 = vld [vmem:[%s2651 + $0x149] sm:$0xff]
      %v2737 = vld [vmem:[%s2651 + $0x151] sm:$0xff]
      %v2738 = vld [vmem:[%s2651 + $0x169] sm:$0xff]
      %v2739 = vld [vmem:[%s2651 + $0x171] sm:$0xff]
      %v2740 = vld [vmem:[%s2651 + $0x189] sm:$0xff]
      %v2741 = vld [vmem:[%s2651 + $0x191] sm:$0xff]
      %v2742 = vld [vmem:[%s2651 + $0x1a9] sm:$0xff]
      %v2743 = vld [vmem:[%s2651 + $0x1b1] sm:$0xff]
      %v2744 = vld [vmem:[%s2651 + $0x1c9] sm:$0xff]
      %v2745 = vld [vmem:[%s2651 + $0x1d1] sm:$0xff]
      %v2746 = vld [vmem:[%s2651 + $0x1e9] sm:$0xff]
      %v2747 = vld [vmem:[%s2651 + $0x1f1] sm:$0xff]
      %2780 = vrot.lane.b32.xlu0 %v2491, 8
      %v2781 = vpop.permute.xlu0 %2780
      %2782 = vrot.lane.b32.xlu0 %v2492, 8
      %v2783 = vpop.permute.xlu0 %2782
      %2784 = vrot.lane.b32.xlu0 %v2493, 8
      %v2785 = vpop.permute.xlu0 %2784
      %2786 = vrot.lane.b32.xlu0 %v2494, 8
      %v2787 = vpop.permute.xlu0 %2786
      %2788 = vrot.lane.b32.xlu0 %v2495, 8
      %v2789 = vpop.permute.xlu0 %2788
      %2790 = vrot.lane.b32.xlu0 %v2496, 8
      %v2791 = vpop.permute.xlu0 %2790
      %2792 = vrot.lane.b32.xlu0 %v2497, 8
      %v2793 = vpop.permute.xlu0 %2792
      %2794 = vrot.lane.b32.xlu0 %v2498, 8
      %v2795 = vpop.permute.xlu0 %2794
      %2796 = vrot.lane.b32.xlu0 %v2499, 8
      %v2797 = vpop.permute.xlu0 %2796
      %2798 = vrot.lane.b32.xlu0 %v2500, 8
      %v2799 = vpop.permute.xlu0 %2798
      %2800 = vrot.lane.b32.xlu0 %v2501, 8
      %v2801 = vpop.permute.xlu0 %2800
      %2802 = vrot.lane.b32.xlu0 %v2502, 8
      %v2803 = vpop.permute.xlu0 %2802
      %2804 = vrot.lane.b32.xlu0 %v2503, 8
      %v2805 = vpop.permute.xlu0 %2804
      %2806 = vrot.lane.b32.xlu0 %v2504, 8
      %v2807 = vpop.permute.xlu0 %2806
      %2808 = vrot.lane.b32.xlu0 %v2505, 8
      %v2809 = vpop.permute.xlu0 %2808
      %2810 = vrot.lane.b32.xlu0 %v2506, 8
      %v2811 = vpop.permute.xlu0 %2810
      %2812 = vrot.lane.b32.xlu0 %v2507, 8
      %v2813 = vpop.permute.xlu0 %2812
      %2814 = vrot.lane.b32.xlu0 %v2508, 8
      %v2815 = vpop.permute.xlu0 %2814
      %2816 = vrot.lane.b32.xlu0 %v2509, 8
      %v2817 = vpop.permute.xlu0 %2816
      %2818 = vrot.lane.b32.xlu0 %v2510, 8
      %v2819 = vpop.permute.xlu0 %2818
      %2820 = vrot.lane.b32.xlu0 %v2511, 8
      %v2821 = vpop.permute.xlu0 %2820
      %2822 = vrot.lane.b32.xlu0 %v2512, 8
      %v2823 = vpop.permute.xlu0 %2822
      %2824 = vrot.lane.b32.xlu0 %v2513, 8
      %v2825 = vpop.permute.xlu0 %2824
      %2826 = vrot.lane.b32.xlu0 %v2514, 8
      %v2827 = vpop.permute.xlu0 %2826
      %2828 = vrot.lane.b32.xlu0 %v2515, 8
      %v2829 = vpop.permute.xlu0 %2828
      %2830 = vrot.lane.b32.xlu0 %v2516, 8
      %v2831 = vpop.permute.xlu0 %2830
      %2832 = vrot.lane.b32.xlu0 %v2517, 8
      %v2833 = vpop.permute.xlu0 %2832
      %2834 = vrot.lane.b32.xlu0 %v2518, 8
      %v2835 = vpop.permute.xlu0 %2834
      %2836 = vrot.lane.b32.xlu0 %v2519, 8
      %v2837 = vpop.permute.xlu0 %2836
      %2838 = vrot.lane.b32.xlu0 %v2520, 8
      %v2839 = vpop.permute.xlu0 %2838
      %2840 = vrot.lane.b32.xlu0 %v2521, 8
      %v2841 = vpop.permute.xlu0 %2840
      %2842 = vrot.lane.b32.xlu0 %v2522, 8
      %v2843 = vpop.permute.xlu0 %2842
      %2908 = vrot.lane.b32.xlu0 %v2523, 16
      %v2909 = vpop.permute.xlu0 %2908
      %2910 = vrot.lane.b32.xlu0 %v2524, 16
      %v2911 = vpop.permute.xlu0 %2910
      %2912 = vrot.lane.b32.xlu0 %v2525, 16
      %v2913 = vpop.permute.xlu0 %2912
      %2914 = vrot.lane.b32.xlu0 %v2526, 16
      %v2915 = vpop.permute.xlu0 %2914
      %2916 = vrot.lane.b32.xlu0 %v2527, 16
      %v2917 = vpop.permute.xlu0 %2916
      %2918 = vrot.lane.b32.xlu0 %v2528, 16
      %v2919 = vpop.permute.xlu0 %2918
      %2920 = vrot.lane.b32.xlu0 %v2529, 16
      %v2921 = vpop.permute.xlu0 %2920
      %2922 = vrot.lane.b32.xlu0 %v2530, 16
      %v2923 = vpop.permute.xlu0 %2922
      %2924 = vrot.lane.b32.xlu0 %v2531, 16
      %v2925 = vpop.permute.xlu0 %2924
      %2926 = vrot.lane.b32.xlu0 %v2532, 16
      %v2927 = vpop.permute.xlu0 %2926
      %2928 = vrot.lane.b32.xlu0 %v2533, 16
      %v2929 = vpop.permute.xlu0 %2928
      %2930 = vrot.lane.b32.xlu0 %v2534, 16
      %v2931 = vpop.permute.xlu0 %2930
      %2932 = vrot.lane.b32.xlu0 %v2535, 16
      %v2933 = vpop.permute.xlu0 %2932
      %2934 = vrot.lane.b32.xlu0 %v2536, 16
      %v2935 = vpop.permute.xlu0 %2934
      %2936 = vrot.lane.b32.xlu0 %v2537, 16
      %v2937 = vpop.permute.xlu0 %2936
      %2938 = vrot.lane.b32.xlu0 %v2538, 16
      %v2939 = vpop.permute.xlu0 %2938
      %2940 = vrot.lane.b32.xlu0 %v2539, 16
      %v2941 = vpop.permute.xlu0 %2940
      %2942 = vrot.lane.b32.xlu0 %v2540, 16
      %v2943 = vpop.permute.xlu0 %2942
      %2944 = vrot.lane.b32.xlu0 %v2541, 16
      %v2945 = vpop.permute.xlu0 %2944
      %2946 = vrot.lane.b32.xlu0 %v2542, 16
      %v2947 = vpop.permute.xlu0 %2946
      %2948 = vrot.lane.b32.xlu0 %v2543, 16
      %v2949 = vpop.permute.xlu0 %2948
      %2950 = vrot.lane.b32.xlu0 %v2544, 16
      %v2951 = vpop.permute.xlu0 %2950
      %2952 = vrot.lane.b32.xlu0 %v2545, 16
      %v2953 = vpop.permute.xlu0 %2952
      %2954 = vrot.lane.b32.xlu0 %v2546, 16
      %v2955 = vpop.permute.xlu0 %2954
      %2956 = vrot.lane.b32.xlu0 %v2547, 16
      %v2957 = vpop.permute.xlu0 %2956
      %2958 = vrot.lane.b32.xlu0 %v2548, 16
      %v2959 = vpop.permute.xlu0 %2958
      %2960 = vrot.lane.b32.xlu0 %v2549, 16
      %v2961 = vpop.permute.xlu0 %2960
      %2962 = vrot.lane.b32.xlu0 %v2550, 16
      %v2963 = vpop.permute.xlu0 %2962
      %2964 = vrot.lane.b32.xlu0 %v2551, 16
      %v2965 = vpop.permute.xlu0 %2964
      %2966 = vrot.lane.b32.xlu0 %v2552, 16
      %v2967 = vpop.permute.xlu0 %2966
      %2968 = vrot.lane.b32.xlu0 %v2553, 16
      %v2969 = vpop.permute.xlu0 %2968
      %2970 = vrot.lane.b32.xlu0 %v2554, 16
      %v2971 = vpop.permute.xlu0 %2970
      %3036 = vrot.lane.b32.xlu0 %v2555, 24
      %v3037 = vpop.permute.xlu0 %3036
      %3038 = vrot.lane.b32.xlu0 %v2556, 24
      %v3039 = vpop.permute.xlu0 %3038
      %3040 = vrot.lane.b32.xlu0 %v2557, 24
      %v3041 = vpop.permute.xlu0 %3040
      %3042 = vrot.lane.b32.xlu0 %v2558, 24
      %v3043 = vpop.permute.xlu0 %3042
      %3044 = vrot.lane.b32.xlu0 %v2559, 24
      %v3045 = vpop.permute.xlu0 %3044
      %3046 = vrot.lane.b32.xlu0 %v2560, 24
      %v3047 = vpop.permute.xlu0 %3046
      %3048 = vrot.lane.b32.xlu0 %v2561, 24
      %v3049 = vpop.permute.xlu0 %3048
      %3050 = vrot.lane.b32.xlu0 %v2562, 24
      %v3051 = vpop.permute.xlu0 %3050
      %3052 = vrot.lane.b32.xlu0 %v2563, 24
      %v3053 = vpop.permute.xlu0 %3052
      %3054 = vrot.lane.b32.xlu0 %v2564, 24
      %v3055 = vpop.permute.xlu0 %3054
      %3056 = vrot.lane.b32.xlu0 %v2565, 24
      %v3057 = vpop.permute.xlu0 %3056
      %3058 = vrot.lane.b32.xlu0 %v2566, 24
      %v3059 = vpop.permute.xlu0 %3058
      %3060 = vrot.lane.b32.xlu0 %v2567, 24
      %v3061 = vpop.permute.xlu0 %3060
      %3062 = vrot.lane.b32.xlu0 %v2568, 24
      %v3063 = vpop.permute.xlu0 %3062
      %3064 = vrot.lane.b32.xlu0 %v2569, 24
      %v3065 = vpop.permute.xlu0 %3064
      %3066 = vrot.lane.b32.xlu0 %v2570, 24
      %v3067 = vpop.permute.xlu0 %3066
      %3068 = vrot.lane.b32.xlu0 %v2571, 24
      %v3069 = vpop.permute.xlu0 %3068
      %3070 = vrot.lane.b32.xlu0 %v2572, 24
      %v3071 = vpop.permute.xlu0 %3070
      %3072 = vrot.lane.b32.xlu0 %v2573, 24
      %v3073 = vpop.permute.xlu0 %3072
      %3074 = vrot.lane.b32.xlu0 %v2574, 24
      %v3075 = vpop.permute.xlu0 %3074
      %3076 = vrot.lane.b32.xlu0 %v2575, 24
      %v3077 = vpop.permute.xlu0 %3076
      %3078 = vrot.lane.b32.xlu0 %v2576, 24
      %v3079 = vpop.permute.xlu0 %3078
      %3080 = vrot.lane.b32.xlu0 %v2577, 24
      %v3081 = vpop.permute.xlu0 %3080
      %3082 = vrot.lane.b32.xlu0 %v2578, 24
      %v3083 = vpop.permute.xlu0 %3082
      %3084 = vrot.lane.b32.xlu0 %v2579, 24
      %v3085 = vpop.permute.xlu0 %3084
      %3086 = vrot.lane.b32.xlu0 %v2580, 24
      %v3087 = vpop.permute.xlu0 %3086
      %3088 = vrot.lane.b32.xlu0 %v2581, 24
      %v3089 = vpop.permute.xlu0 %3088
      %3090 = vrot.lane.b32.xlu0 %v2582, 24
      %v3091 = vpop.permute.xlu0 %3090
      %3092 = vrot.lane.b32.xlu0 %v2583, 24
      %v3093 = vpop.permute.xlu0 %3092
      %3094 = vrot.lane.b32.xlu0 %v2584, 24
      %v3095 = vpop.permute.xlu0 %3094
      %3096 = vrot.lane.b32.xlu0 %v2585, 24
      %v3097 = vpop.permute.xlu0 %3096
      %3098 = vrot.lane.b32.xlu0 %v2586, 24
      %v3099 = vpop.permute.xlu0 %3098
      %3164 = vrot.lane.b32.xlu0 %v2587, 32
      %v3165 = vpop.permute.xlu0 %3164
      %3166 = vrot.lane.b32.xlu0 %v2588, 32
      %v3167 = vpop.permute.xlu0 %3166
      %3168 = vrot.lane.b32.xlu0 %v2589, 32
      %v3169 = vpop.permute.xlu0 %3168
      %3170 = vrot.lane.b32.xlu0 %v2590, 32
      %v3171 = vpop.permute.xlu0 %3170
      %3172 = vrot.lane.b32.xlu0 %v2591, 32
      %v3173 = vpop.permute.xlu0 %3172
      %3174 = vrot.lane.b32.xlu0 %v2592, 32
      %v3175 = vpop.permute.xlu0 %3174
      %3176 = vrot.lane.b32.xlu0 %v2593, 32
      %v3177 = vpop.permute.xlu0 %3176
      %3178 = vrot.lane.b32.xlu0 %v2594, 32
      %v3179 = vpop.permute.xlu0 %3178
      %3180 = vrot.lane.b32.xlu0 %v2595, 32
      %v3181 = vpop.permute.xlu0 %3180
      %3182 = vrot.lane.b32.xlu0 %v2596, 32
      %v3183 = vpop.permute.xlu0 %3182
      %3184 = vrot.lane.b32.xlu0 %v2597, 32
      %v3185 = vpop.permute.xlu0 %3184
      %3186 = vrot.lane.b32.xlu0 %v2598, 32
      %v3187 = vpop.permute.xlu0 %3186
      %3188 = vrot.lane.b32.xlu0 %v2599, 32
      %v3189 = vpop.permute.xlu0 %3188
      %3190 = vrot.lane.b32.xlu0 %v2600, 32
      %v3191 = vpop.permute.xlu0 %3190
      %3192 = vrot.lane.b32.xlu0 %v2601, 32
      %v3193 = vpop.permute.xlu0 %3192
      %3194 = vrot.lane.b32.xlu0 %v2602, 32
      %v3195 = vpop.permute.xlu0 %3194
      %3196 = vrot.lane.b32.xlu0 %v2603, 32
      %v3197 = vpop.permute.xlu0 %3196
      %3198 = vrot.lane.b32.xlu0 %v2604, 32
      %v3199 = vpop.permute.xlu0 %3198
      %3200 = vrot.lane.b32.xlu0 %v2605, 32
      %v3201 = vpop.permute.xlu0 %3200
      %3202 = vrot.lane.b32.xlu0 %v2606, 32
      %v3203 = vpop.permute.xlu0 %3202
      %3204 = vrot.lane.b32.xlu0 %v2607, 32
      %v3205 = vpop.permute.xlu0 %3204
      %3206 = vrot.lane.b32.xlu0 %v2608, 32
      %v3207 = vpop.permute.xlu0 %3206
      %3208 = vrot.lane.b32.xlu0 %v2609, 32
      %v3209 = vpop.permute.xlu0 %3208
      %3210 = vrot.lane.b32.xlu0 %v2610, 32
      %v3211 = vpop.permute.xlu0 %3210
      %3212 = vrot.lane.b32.xlu0 %v2611, 32
      %v3213 = vpop.permute.xlu0 %3212
      %3214 = vrot.lane.b32.xlu0 %v2612, 32
      %v3215 = vpop.permute.xlu0 %3214
      %3216 = vrot.lane.b32.xlu0 %v2613, 32
      %v3217 = vpop.permute.xlu0 %3216
      %3218 = vrot.lane.b32.xlu0 %v2614, 32
      %v3219 = vpop.permute.xlu0 %3218
      %3220 = vrot.lane.b32.xlu0 %v2615, 32
      %v3221 = vpop.permute.xlu0 %3220
      %3222 = vrot.lane.b32.xlu0 %v2616, 32
      %v3223 = vpop.permute.xlu0 %3222
      %3224 = vrot.lane.b32.xlu0 %v2617, 32
      %v3225 = vpop.permute.xlu0 %3224
      %3226 = vrot.lane.b32.xlu0 %v2618, 32
      %v3227 = vpop.permute.xlu0 %3226
      %3292 = vrot.lane.b32.xlu0 %v2619, 40
      %v3293 = vpop.permute.xlu0 %3292
      %3294 = vrot.lane.b32.xlu0 %v2620, 40
      %v3295 = vpop.permute.xlu0 %3294
      %3296 = vrot.lane.b32.xlu0 %v2621, 40
      %v3297 = vpop.permute.xlu0 %3296
      %3298 = vrot.lane.b32.xlu0 %v2622, 40
      %v3299 = vpop.permute.xlu0 %3298
      %3300 = vrot.lane.b32.xlu0 %v2623, 40
      %v3301 = vpop.permute.xlu0 %3300
      %3302 = vrot.lane.b32.xlu0 %v2624, 40
      %v3303 = vpop.permute.xlu0 %3302
      %3304 = vrot.lane.b32.xlu0 %v2625, 40
      %v3305 = vpop.permute.xlu0 %3304
      %3306 = vrot.lane.b32.xlu0 %v2626, 40
      %v3307 = vpop.permute.xlu0 %3306
      %3308 = vrot.lane.b32.xlu0 %v2627, 40
      %v3309 = vpop.permute.xlu0 %3308
      %3310 = vrot.lane.b32.xlu0 %v2628, 40
      %v3311 = vpop.permute.xlu0 %3310
      %3312 = vrot.lane.b32.xlu0 %v2629, 40
      %v3313 = vpop.permute.xlu0 %3312
      %3314 = vrot.lane.b32.xlu0 %v2630, 40
      %v3315 = vpop.permute.xlu0 %3314
      %3316 = vrot.lane.b32.xlu0 %v2631, 40
      %v3317 = vpop.permute.xlu0 %3316
      %3318 = vrot.lane.b32.xlu0 %v2632, 40
      %v3319 = vpop.permute.xlu0 %3318
      %3320 = vrot.lane.b32.xlu0 %v2633, 40
      %v3321 = vpop.permute.xlu0 %3320
      %3322 = vrot.lane.b32.xlu0 %v2634, 40
      %v3323 = vpop.permute.xlu0 %3322
      %3324 = vrot.lane.b32.xlu0 %v2635, 40
      %v3325 = vpop.permute.xlu0 %3324
      %3326 = vrot.lane.b32.xlu0 %v2636, 40
      %v3327 = vpop.permute.xlu0 %3326
      %3328 = vrot.lane.b32.xlu0 %v2637, 40
      %v3329 = vpop.permute.xlu0 %3328
      %3330 = vrot.lane.b32.xlu0 %v2638, 40
      %v3331 = vpop.permute.xlu0 %3330
      %3332 = vrot.lane.b32.xlu0 %v2639, 40
      %v3333 = vpop.permute.xlu0 %3332
      %3334 = vrot.lane.b32.xlu0 %v2640, 40
      %v3335 = vpop.permute.xlu0 %3334
      %3336 = vrot.lane.b32.xlu0 %v2641, 40
      %v3337 = vpop.permute.xlu0 %3336
      %3338 = vrot.lane.b32.xlu0 %v2642, 40
      %v3339 = vpop.permute.xlu0 %3338
      %3340 = vrot.lane.b32.xlu0 %v2643, 40
      %v3341 = vpop.permute.xlu0 %3340
      %3342 = vrot.lane.b32.xlu0 %v2644, 40
      %v3343 = vpop.permute.xlu0 %3342
      %3344 = vrot.lane.b32.xlu0 %v2645, 40
      %v3345 = vpop.permute.xlu0 %3344
      %3346 = vrot.lane.b32.xlu0 %v2646, 40
      %v3347 = vpop.permute.xlu0 %3346
      %3348 = vrot.lane.b32.xlu0 %v2647, 40
      %v3349 = vpop.permute.xlu0 %3348
      %3350 = vrot.lane.b32.xlu0 %v2648, 40
      %v3351 = vpop.permute.xlu0 %3350
      %3352 = vrot.lane.b32.xlu0 %v2649, 40
      %v3353 = vpop.permute.xlu0 %3352
      %3354 = vrot.lane.b32.xlu0 %v2650, 40
      %v3355 = vpop.permute.xlu0 %3354
      %3420 = vrot.lane.b32.xlu0 %v2652, 48
      %v3421 = vpop.permute.xlu0 %3420
      %3422 = vrot.lane.b32.xlu0 %v2653, 48
      %v3423 = vpop.permute.xlu0 %3422
      %3424 = vrot.lane.b32.xlu0 %v2654, 48
      %v3425 = vpop.permute.xlu0 %3424
      %3426 = vrot.lane.b32.xlu0 %v2655, 48
      %v3427 = vpop.permute.xlu0 %3426
      %3428 = vrot.lane.b32.xlu0 %v2656, 48
      %v3429 = vpop.permute.xlu0 %3428
      %3430 = vrot.lane.b32.xlu0 %v2657, 48
      %v3431 = vpop.permute.xlu0 %3430
      %3432 = vrot.lane.b32.xlu0 %v2658, 48
      %v3433 = vpop.permute.xlu0 %3432
      %3434 = vrot.lane.b32.xlu0 %v2659, 48
      %v3435 = vpop.permute.xlu0 %3434
      %3436 = vrot.lane.b32.xlu0 %v2660, 48
      %v3437 = vpop.permute.xlu0 %3436
      %3438 = vrot.lane.b32.xlu0 %v2661, 48
      %v3439 = vpop.permute.xlu0 %3438
      %3440 = vrot.lane.b32.xlu0 %v2662, 48
      %v3441 = vpop.permute.xlu0 %3440
      %3442 = vrot.lane.b32.xlu0 %v2663, 48
      %v3443 = vpop.permute.xlu0 %3442
      %3444 = vrot.lane.b32.xlu0 %v2664, 48
      %v3445 = vpop.permute.xlu0 %3444
      %3446 = vrot.lane.b32.xlu0 %v2665, 48
      %v3447 = vpop.permute.xlu0 %3446
      %3448 = vrot.lane.b32.xlu0 %v2666, 48
      %v3449 = vpop.permute.xlu0 %3448
      %3450 = vrot.lane.b32.xlu0 %v2667, 48
      %v3451 = vpop.permute.xlu0 %3450
      %3452 = vrot.lane.b32.xlu0 %v2668, 48
      %v3453 = vpop.permute.xlu0 %3452
      %3454 = vrot.lane.b32.xlu0 %v2669, 48
      %v3455 = vpop.permute.xlu0 %3454
      %3456 = vrot.lane.b32.xlu0 %v2670, 48
      %v3457 = vpop.permute.xlu0 %3456
      %3458 = vrot.lane.b32.xlu0 %v2671, 48
      %v3459 = vpop.permute.xlu0 %3458
      %3460 = vrot.lane.b32.xlu0 %v2672, 48
      %v3461 = vpop.permute.xlu0 %3460
      %3462 = vrot.lane.b32.xlu0 %v2673, 48
      %v3463 = vpop.permute.xlu0 %3462
      %3464 = vrot.lane.b32.xlu0 %v2674, 48
      %v3465 = vpop.permute.xlu0 %3464
      %3466 = vrot.lane.b32.xlu0 %v2675, 48
      %v3467 = vpop.permute.xlu0 %3466
      %3468 = vrot.lane.b32.xlu0 %v2676, 48
      %v3469 = vpop.permute.xlu0 %3468
      %3470 = vrot.lane.b32.xlu0 %v2677, 48
      %v3471 = vpop.permute.xlu0 %3470
      %3472 = vrot.lane.b32.xlu0 %v2678, 48
      %v3473 = vpop.permute.xlu0 %3472
      %3474 = vrot.lane.b32.xlu0 %v2679, 48
      %v3475 = vpop.permute.xlu0 %3474
      %3476 = vrot.lane.b32.xlu0 %v2680, 48
      %v3477 = vpop.permute.xlu0 %3476
      %3478 = vrot.lane.b32.xlu0 %v2681, 48
      %v3479 = vpop.permute.xlu0 %3478
      %3480 = vrot.lane.b32.xlu0 %v2682, 48
      %v3481 = vpop.permute.xlu0 %3480
      %3482 = vrot.lane.b32.xlu0 %v2683, 48
      %v3483 = vpop.permute.xlu0 %3482
      %3548 = vrot.lane.b32.xlu0 %v2684, 56
      %v3549 = vpop.permute.xlu0 %3548
      %3550 = vrot.lane.b32.xlu0 %v2685, 56
      %v3551 = vpop.permute.xlu0 %3550
      %3552 = vrot.lane.b32.xlu0 %v2686, 56
      %v3553 = vpop.permute.xlu0 %3552
      %3554 = vrot.lane.b32.xlu0 %v2687, 56
      %v3555 = vpop.permute.xlu0 %3554
      %3556 = vrot.lane.b32.xlu0 %v2688, 56
      %v3557 = vpop.permute.xlu0 %3556
      %3558 = vrot.lane.b32.xlu0 %v2689, 56
      %v3559 = vpop.permute.xlu0 %3558
      %3560 = vrot.lane.b32.xlu0 %v2690, 56
      %v3561 = vpop.permute.xlu0 %3560
      %3562 = vrot.lane.b32.xlu0 %v2691, 56
      %v3563 = vpop.permute.xlu0 %3562
      %3564 = vrot.lane.b32.xlu0 %v2692, 56
      %v3565 = vpop.permute.xlu0 %3564
      %3566 = vrot.lane.b32.xlu0 %v2693, 56
      %v3567 = vpop.permute.xlu0 %3566
      %3568 = vrot.lane.b32.xlu0 %v2694, 56
      %v3569 = vpop.permute.xlu0 %3568
      %3570 = vrot.lane.b32.xlu0 %v2695, 56
      %v3571 = vpop.permute.xlu0 %3570
      %3572 = vrot.lane.b32.xlu0 %v2696, 56
      %v3573 = vpop.permute.xlu0 %3572
      %3574 = vrot.lane.b32.xlu0 %v2697, 56
      %v3575 = vpop.permute.xlu0 %3574
      %3576 = vrot.lane.b32.xlu0 %v2698, 56
      %v3577 = vpop.permute.xlu0 %3576
      %3578 = vrot.lane.b32.xlu0 %v2699, 56
      %v3579 = vpop.permute.xlu0 %3578
      %3580 = vrot.lane.b32.xlu0 %v2700, 56
      %v3581 = vpop.permute.xlu0 %3580
      %3582 = vrot.lane.b32.xlu0 %v2701, 56
      %v3583 = vpop.permute.xlu0 %3582
      %3584 = vrot.lane.b32.xlu0 %v2702, 56
      %v3585 = vpop.permute.xlu0 %3584
      %3586 = vrot.lane.b32.xlu0 %v2703, 56
      %v3587 = vpop.permute.xlu0 %3586
      %3588 = vrot.lane.b32.xlu0 %v2704, 56
      %v3589 = vpop.permute.xlu0 %3588
      %3590 = vrot.lane.b32.xlu0 %v2705, 56
      %v3591 = vpop.permute.xlu0 %3590
      %3592 = vrot.lane.b32.xlu0 %v2706, 56
      %v3593 = vpop.permute.xlu0 %3592
      %3594 = vrot.lane.b32.xlu0 %v2707, 56
      %v3595 = vpop.permute.xlu0 %3594
      %3596 = vrot.lane.b32.xlu0 %v2708, 56
      %v3597 = vpop.permute.xlu0 %3596
      %3598 = vrot.lane.b32.xlu0 %v2709, 56
      %v3599 = vpop.permute.xlu0 %3598
      %3600 = vrot.lane.b32.xlu0 %v2710, 56
      %v3601 = vpop.permute.xlu0 %3600
      %3602 = vrot.lane.b32.xlu0 %v2711, 56
      %v3603 = vpop.permute.xlu0 %3602
      %3604 = vrot.lane.b32.xlu0 %v2712, 56
      %v3605 = vpop.permute.xlu0 %3604
      %3606 = vrot.lane.b32.xlu0 %v2713, 56
      %v3607 = vpop.permute.xlu0 %3606
      %3608 = vrot.lane.b32.xlu0 %v2714, 56
      %v3609 = vpop.permute.xlu0 %3608
      %3610 = vrot.lane.b32.xlu0 %v2715, 56
      %v3611 = vpop.permute.xlu0 %3610
      %3676 = vrot.lane.b32.xlu0 %v2716, 64
      %v3677 = vpop.permute.xlu0 %3676
      %3678 = vrot.lane.b32.xlu0 %v2717, 64
      %v3679 = vpop.permute.xlu0 %3678
      %3680 = vrot.lane.b32.xlu0 %v2718, 64
      %v3681 = vpop.permute.xlu0 %3680
      %3682 = vrot.lane.b32.xlu0 %v2719, 64
      %v3683 = vpop.permute.xlu0 %3682
      %3684 = vrot.lane.b32.xlu0 %v2720, 64
      %v3685 = vpop.permute.xlu0 %3684
      %3686 = vrot.lane.b32.xlu0 %v2721, 64
      %v3687 = vpop.permute.xlu0 %3686
      %3688 = vrot.lane.b32.xlu0 %v2722, 64
      %v3689 = vpop.permute.xlu0 %3688
      %3690 = vrot.lane.b32.xlu0 %v2723, 64
      %v3691 = vpop.permute.xlu0 %3690
      %3692 = vrot.lane.b32.xlu0 %v2724, 64
      %v3693 = vpop.permute.xlu0 %3692
      %3694 = vrot.lane.b32.xlu0 %v2725, 64
      %v3695 = vpop.permute.xlu0 %3694
      %3696 = vrot.lane.b32.xlu0 %v2726, 64
      %v3697 = vpop.permute.xlu0 %3696
      %3698 = vrot.lane.b32.xlu0 %v2727, 64
      %v3699 = vpop.permute.xlu0 %3698
      %3700 = vrot.lane.b32.xlu0 %v2728, 64
      %v3701 = vpop.permute.xlu0 %3700
      %3702 = vrot.lane.b32.xlu0 %v2729, 64
      %v3703 = vpop.permute.xlu0 %3702
      %3704 = vrot.lane.b32.xlu0 %v2730, 64
      %v3705 = vpop.permute.xlu0 %3704
      %3706 = vrot.lane.b32.xlu0 %v2731, 64
      %v3707 = vpop.permute.xlu0 %3706
      %3708 = vrot.lane.b32.xlu0 %v2732, 64
      %v3709 = vpop.permute.xlu0 %3708
      %3710 = vrot.lane.b32.xlu0 %v2733, 64
      %v3711 = vpop.permute.xlu0 %3710
      %3712 = vrot.lane.b32.xlu0 %v2734, 64
      %v3713 = vpop.permute.xlu0 %3712
      %3714 = vrot.lane.b32.xlu0 %v2735, 64
      %v3715 = vpop.permute.xlu0 %3714
      %3716 = vrot.lane.b32.xlu0 %v2736, 64
      %v3717 = vpop.permute.xlu0 %3716
      %3718 = vrot.lane.b32.xlu0 %v2737, 64
      %v3719 = vpop.permute.xlu0 %3718
      %3720 = vrot.lane.b32.xlu0 %v2738, 64
      %v3721 = vpop.permute.xlu0 %3720
      %3722 = vrot.lane.b32.xlu0 %v2739, 64
      %v3723 = vpop.permute.xlu0 %3722
      %3724 = vrot.lane.b32.xlu0 %v2740, 64
      %v3725 = vpop.permute.xlu0 %3724
      %3726 = vrot.lane.b32.xlu0 %v2741, 64
      %v3727 = vpop.permute.xlu0 %3726
      %3728 = vrot.lane.b32.xlu0 %v2742, 64
      %v3729 = vpop.permute.xlu0 %3728
      %3730 = vrot.lane.b32.xlu0 %v2743, 64
      %v3731 = vpop.permute.xlu0 %3730
      %3732 = vrot.lane.b32.xlu0 %v2744, 64
      %v3733 = vpop.permute.xlu0 %3732
      %3734 = vrot.lane.b32.xlu0 %v2745, 64
      %v3735 = vpop.permute.xlu0 %3734
      %3736 = vrot.lane.b32.xlu0 %v2746, 64
      %v3737 = vpop.permute.xlu0 %3736
      %3738 = vrot.lane.b32.xlu0 %v2747, 64
      %v3739 = vpop.permute.xlu0 %3738
      %v3772 = vsel %vm1763, %v2459, %v2781
      %v3773 = vsel %vm1763, %v2460, %v2783
      %v3774 = vsel %vm1763, %v2461, %v2785
      %v3775 = vsel %vm1763, %v2462, %v2787
      %v3776 = vsel %vm1763, %v2463, %v2789
      %v3777 = vsel %vm1763, %v2464, %v2791
      %v3778 = vsel %vm1763, %v2465, %v2793
      %v3779 = vsel %vm1763, %v2466, %v2795
      %v3780 = vsel %vm1763, %v2467, %v2797
      %v3781 = vsel %vm1763, %v2468, %v2799
      %v3782 = vsel %vm1763, %v2469, %v2801
      %v3783 = vsel %vm1763, %v2470, %v2803
      %v3784 = vsel %vm1763, %v2471, %v2805
      %v3785 = vsel %vm1763, %v2472, %v2807
      %v3786 = vsel %vm1763, %v2473, %v2809
      %v3787 = vsel %vm1763, %v2474, %v2811
      %v3788 = vsel %vm1763, %v2475, %v2813
      %v3789 = vsel %vm1763, %v2476, %v2815
      %v3790 = vsel %vm1763, %v2477, %v2817
      %v3791 = vsel %vm1763, %v2478, %v2819
      %v3792 = vsel %vm1763, %v2479, %v2821
      %v3793 = vsel %vm1763, %v2480, %v2823
      %v3794 = vsel %vm1763, %v2481, %v2825
      %v3795 = vsel %vm1763, %v2482, %v2827
      %v3796 = vsel %vm1763, %v2483, %v2829
      %v3797 = vsel %vm1763, %v2484, %v2831
      %v3798 = vsel %vm1763, %v2485, %v2833
      %v3799 = vsel %vm1763, %v2486, %v2835
      %v3800 = vsel %vm1763, %v2487, %v2837
      %v3801 = vsel %vm1763, %v2488, %v2839
      %v3802 = vsel %vm1763, %v2489, %v2841
      %v3803 = vsel %vm1763, %v2490, %v2843
      %v3804 = vsel %vm1829, %v3772, %v2909
      %v3805 = vsel %vm1829, %v3773, %v2911
      %v3806 = vsel %vm1829, %v3774, %v2913
      %v3807 = vsel %vm1829, %v3775, %v2915
      %v3808 = vsel %vm1829, %v3776, %v2917
      %v3809 = vsel %vm1829, %v3777, %v2919
      %v3810 = vsel %vm1829, %v3778, %v2921
      %v3811 = vsel %vm1829, %v3779, %v2923
      %v3812 = vsel %vm1829, %v3780, %v2925
      %v3813 = vsel %vm1829, %v3781, %v2927
      %v3814 = vsel %vm1829, %v3782, %v2929
      %v3815 = vsel %vm1829, %v3783, %v2931
      %v3816 = vsel %vm1829, %v3784, %v2933
      %v3817 = vsel %vm1829, %v3785, %v2935
      %v3818 = vsel %vm1829, %v3786, %v2937
      %v3819 = vsel %vm1829, %v3787, %v2939
      %v3820 = vsel %vm1829, %v3788, %v2941
      %v3821 = vsel %vm1829, %v3789, %v2943
      %v3822 = vsel %vm1829, %v3790, %v2945
      %v3823 = vsel %vm1829, %v3791, %v2947
      %v3824 = vsel %vm1829, %v3792, %v2949
      %v3825 = vsel %vm1829, %v3793, %v2951
      %v3826 = vsel %vm1829, %v3794, %v2953
      %v3827 = vsel %vm1829, %v3795, %v2955
      %v3828 = vsel %vm1829, %v3796, %v2957
      %v3829 = vsel %vm1829, %v3797, %v2959
      %v3830 = vsel %vm1829, %v3798, %v2961
      %v3831 = vsel %vm1829, %v3799, %v2963
      %v3832 = vsel %vm1829, %v3800, %v2965
      %v3833 = vsel %vm1829, %v3801, %v2967
      %v3834 = vsel %vm1829, %v3802, %v2969
      %v3835 = vsel %vm1829, %v3803, %v2971
      %v3836 = vsel %vm1895, %v3804, %v3037
      %v3837 = vsel %vm1895, %v3805, %v3039
      %v3838 = vsel %vm1895, %v3806, %v3041
      %v3839 = vsel %vm1895, %v3807, %v3043
      %v3840 = vsel %vm1895, %v3808, %v3045
      %v3841 = vsel %vm1895, %v3809, %v3047
      %v3842 = vsel %vm1895, %v3810, %v3049
      %v3843 = vsel %vm1895, %v3811, %v3051
      %v3844 = vsel %vm1895, %v3812, %v3053
      %v3845 = vsel %vm1895, %v3813, %v3055
      %v3846 = vsel %vm1895, %v3814, %v3057
      %v3847 = vsel %vm1895, %v3815, %v3059
      %v3848 = vsel %vm1895, %v3816, %v3061
      %v3849 = vsel %vm1895, %v3817, %v3063
      %v3850 = vsel %vm1895, %v3818, %v3065
      %v3851 = vsel %vm1895, %v3819, %v3067
      %v3852 = vsel %vm1895, %v3820, %v3069
      %v3853 = vsel %vm1895, %v3821, %v3071
      %v3854 = vsel %vm1895, %v3822, %v3073
      %v3855 = vsel %vm1895, %v3823, %v3075
      %v3856 = vsel %vm1895, %v3824, %v3077
      %v3857 = vsel %vm1895, %v3825, %v3079
      %v3858 = vsel %vm1895, %v3826, %v3081
      %v3859 = vsel %vm1895, %v3827, %v3083
      %v3860 = vsel %vm1895, %v3828, %v3085
      %v3861 = vsel %vm1895, %v3829, %v3087
      %v3862 = vsel %vm1895, %v3830, %v3089
      %v3863 = vsel %vm1895, %v3831, %v3091
      %v3864 = vsel %vm1895, %v3832, %v3093
      %v3865 = vsel %vm1895, %v3833, %v3095
      %v3866 = vsel %vm1895, %v3834, %v3097
      %v3867 = vsel %vm1895, %v3835, %v3099
      %v3868 = vsel %vm1961, %v3836, %v3165
      %v3869 = vsel %vm1961, %v3837, %v3167
      %v3870 = vsel %vm1961, %v3838, %v3169
      %v3871 = vsel %vm1961, %v3839, %v3171
      %v3872 = vsel %vm1961, %v3840, %v3173
      %v3873 = vsel %vm1961, %v3841, %v3175
      %v3874 = vsel %vm1961, %v3842, %v3177
      %v3875 = vsel %vm1961, %v3843, %v3179
      %v3876 = vsel %vm1961, %v3844, %v3181
      %v3877 = vsel %vm1961, %v3845, %v3183
      %v3878 = vsel %vm1961, %v3846, %v3185
      %v3879 = vsel %vm1961, %v3847, %v3187
      %v3880 = vsel %vm1961, %v3848, %v3189
      %v3881 = vsel %vm1961, %v3849, %v3191
      %v3882 = vsel %vm1961, %v3850, %v3193
      %v3883 = vsel %vm1961, %v3851, %v3195
      %v3884 = vsel %vm1961, %v3852, %v3197
      %v3885 = vsel %vm1961, %v3853, %v3199
      %v3886 = vsel %vm1961, %v3854, %v3201
      %v3887 = vsel %vm1961, %v3855, %v3203
      %v3888 = vsel %vm1961, %v3856, %v3205
      %v3889 = vsel %vm1961, %v3857, %v3207
      %v3890 = vsel %vm1961, %v3858, %v3209
      %v3891 = vsel %vm1961, %v3859, %v3211
      %v3892 = vsel %vm1961, %v3860, %v3213
      %v3893 = vsel %vm1961, %v3861, %v3215
      %v3894 = vsel %vm1961, %v3862, %v3217
      %v3895 = vsel %vm1961, %v3863, %v3219
      %v3896 = vsel %vm1961, %v3864, %v3221
      %v3897 = vsel %vm1961, %v3865, %v3223
      %v3898 = vsel %vm1961, %v3866, %v3225
      %v3899 = vsel %vm1961, %v3867, %v3227
      %vm3900 = vcmask 326656
      %v3901 = vsel %vm3900, %v3868, %v3293
      %v3902 = vsel %vm3900, %v3869, %v3295
      %v3903 = vsel %vm3900, %v3870, %v3297
      %v3904 = vsel %vm3900, %v3871, %v3299
      %v3905 = vsel %vm3900, %v3872, %v3301
      %v3906 = vsel %vm3900, %v3873, %v3303
      %v3907 = vsel %vm3900, %v3874, %v3305
      %v3908 = vsel %vm3900, %v3875, %v3307
      %v3909 = vsel %vm3900, %v3876, %v3309
      %v3910 = vsel %vm3900, %v3877, %v3311
      %v3911 = vsel %vm3900, %v3878, %v3313
      %v3912 = vsel %vm3900, %v3879, %v3315
      %v3913 = vsel %vm3900, %v3880, %v3317
      %v3914 = vsel %vm3900, %v3881, %v3319
      %v3915 = vsel %vm3900, %v3882, %v3321
      %v3916 = vsel %vm3900, %v3883, %v3323
      %v3917 = vsel %vm3900, %v3884, %v3325
      %v3918 = vsel %vm3900, %v3885, %v3327
      %v3919 = vsel %vm3900, %v3886, %v3329
      %v3920 = vsel %vm3900, %v3887, %v3331
      %v3921 = vsel %vm3900, %v3888, %v3333
      %v3922 = vsel %vm3900, %v3889, %v3335
      %v3923 = vsel %vm3900, %v3890, %v3337
      %v3924 = vsel %vm3900, %v3891, %v3339
      %v3925 = vsel %vm3900, %v3892, %v3341
      %v3926 = vsel %vm3900, %v3893, %v3343
      %v3927 = vsel %vm3900, %v3894, %v3345
      %v3928 = vsel %vm3900, %v3895, %v3347
      %v3929 = vsel %vm3900, %v3896, %v3349
      %v3930 = vsel %vm3900, %v3897, %v3351
      %v3931 = vsel %vm3900, %v3898, %v3353
      %v3932 = vsel %vm3900, %v3899, %v3355
      %vm3933 = vcmask 392192
      %v3934 = vsel %vm3933, %v3901, %v3421
      %v3935 = vsel %vm3933, %v3902, %v3423
      %v3936 = vsel %vm3933, %v3903, %v3425
      %v3937 = vsel %vm3933, %v3904, %v3427
      %v3938 = vsel %vm3933, %v3905, %v3429
      %v3939 = vsel %vm3933, %v3906, %v3431
      %v3940 = vsel %vm3933, %v3907, %v3433
      %v3941 = vsel %vm3933, %v3908, %v3435
      %v3942 = vsel %vm3933, %v3909, %v3437
      %v3943 = vsel %vm3933, %v3910, %v3439
      %v3944 = vsel %vm3933, %v3911, %v3441
      %v3945 = vsel %vm3933, %v3912, %v3443
      %v3946 = vsel %vm3933, %v3913, %v3445
      %v3947 = vsel %vm3933, %v3914, %v3447
      %v3948 = vsel %vm3933, %v3915, %v3449
      %v3949 = vsel %vm3933, %v3916, %v3451
      %v3950 = vsel %vm3933, %v3917, %v3453
      %v3951 = vsel %vm3933, %v3918, %v3455
      %v3952 = vsel %vm3933, %v3919, %v3457
      %v3953 = vsel %vm3933, %v3920, %v3459
      %v3954 = vsel %vm3933, %v3921, %v3461
      %v3955 = vsel %vm3933, %v3922, %v3463
      %v3956 = vsel %vm3933, %v3923, %v3465
      %v3957 = vsel %vm3933, %v3924, %v3467
      %v3958 = vsel %vm3933, %v3925, %v3469
      %v3959 = vsel %vm3933, %v3926, %v3471
      %v3960 = vsel %vm3933, %v3927, %v3473
      %v3961 = vsel %vm3933, %v3928, %v3475
      %v3962 = vsel %vm3933, %v3929, %v3477
      %v3963 = vsel %vm3933, %v3930, %v3479
      %v3964 = vsel %vm3933, %v3931, %v3481
      %v3965 = vsel %vm3933, %v3932, %v3483
      %vm3966 = vcmask 457728
      %v3967 = vsel %vm3966, %v3934, %v3549
      %v3968 = vsel %vm3966, %v3935, %v3551
      %v3969 = vsel %vm3966, %v3936, %v3553
      %v3970 = vsel %vm3966, %v3937, %v3555
      %v3971 = vsel %vm3966, %v3938, %v3557
      %v3972 = vsel %vm3966, %v3939, %v3559
      %v3973 = vsel %vm3966, %v3940, %v3561
      %v3974 = vsel %vm3966, %v3941, %v3563
      %v3975 = vsel %vm3966, %v3942, %v3565
      %v3976 = vsel %vm3966, %v3943, %v3567
      %v3977 = vsel %vm3966, %v3944, %v3569
      %v3978 = vsel %vm3966, %v3945, %v3571
      %v3979 = vsel %vm3966, %v3946, %v3573
      %v3980 = vsel %vm3966, %v3947, %v3575
      %v3981 = vsel %vm3966, %v3948, %v3577
      %v3982 = vsel %vm3966, %v3949, %v3579
      %v3983 = vsel %vm3966, %v3950, %v3581
      %v3984 = vsel %vm3966, %v3951, %v3583
      %v3985 = vsel %vm3966, %v3952, %v3585
      %v3986 = vsel %vm3966, %v3953, %v3587
      %v3987 = vsel %vm3966, %v3954, %v3589
      %v3988 = vsel %vm3966, %v3955, %v3591
      %v3989 = vsel %vm3966, %v3956, %v3593
      %v3990 = vsel %vm3966, %v3957, %v3595
      %v3991 = vsel %vm3966, %v3958, %v3597
      %v3992 = vsel %vm3966, %v3959, %v3599
      %v3993 = vsel %vm3966, %v3960, %v3601
      %v3994 = vsel %vm3966, %v3961, %v3603
      %v3995 = vsel %vm3966, %v3962, %v3605
      %v3996 = vsel %vm3966, %v3963, %v3607
      %v3997 = vsel %vm3966, %v3964, %v3609
      %v3998 = vsel %vm3966, %v3965, %v3611
      %vm3999 = vcmask 523264
      %v4000 = vsel %vm3999, %v3967, %v3677
      %v4001 = vsel %vm3999, %v3968, %v3679
      %v4002 = vsel %vm3999, %v3969, %v3681
      %v4003 = vsel %vm3999, %v3970, %v3683
      %v4004 = vsel %vm3999, %v3971, %v3685
      %v4005 = vsel %vm3999, %v3972, %v3687
      %v4006 = vsel %vm3999, %v3973, %v3689
      %v4007 = vsel %vm3999, %v3974, %v3691
      %v4008 = vsel %vm3999, %v3975, %v3693
      %v4009 = vsel %vm3999, %v3976, %v3695
      %v4010 = vsel %vm3999, %v3977, %v3697
      %v4011 = vsel %vm3999, %v3978, %v3699
      %v4012 = vsel %vm3999, %v3979, %v3701
      %v4013 = vsel %vm3999, %v3980, %v3703
      %v4014 = vsel %vm3999, %v3981, %v3705
      %v4015 = vsel %vm3999, %v3982, %v3707
      %v4016 = vsel %vm3999, %v3983, %v3709
      %v4017 = vsel %vm3999, %v3984, %v3711
      %v4018 = vsel %vm3999, %v3985, %v3713
      %v4019 = vsel %vm3999, %v3986, %v3715
      %v4020 = vsel %vm3999, %v3987, %v3717
      %v4021 = vsel %vm3999, %v3988, %v3719
      %v4022 = vsel %vm3999, %v3989, %v3721
      %v4023 = vsel %vm3999, %v3990, %v3723
      %v4024 = vsel %vm3999, %v3991, %v3725
      %v4025 = vsel %vm3999, %v3992, %v3727
      %v4026 = vsel %vm3999, %v3993, %v3729
      %v4027 = vsel %vm3999, %v3994, %v3731
      %v4028 = vsel %vm3999, %v3995, %v3733
      %v4029 = vsel %vm3999, %v3996, %v3735
      %v4030 = vsel %vm3999, %v3997, %v3737
      %v4031 = vsel %vm3999, %v3998, %v3739
      %v4032 = vpack.c.bf16 %v4001, %v4000
      %v4033 = vpack.c.bf16 %v4003, %v4002
      %v4034 = vpack.c.bf16 %v4005, %v4004
      %v4035 = vpack.c.bf16 %v4007, %v4006
      %v4036 = vpack.c.bf16 %v4009, %v4008
      %v4037 = vpack.c.bf16 %v4011, %v4010
      %v4038 = vpack.c.bf16 %v4013, %v4012
      %v4039 = vpack.c.bf16 %v4015, %v4014
      %v4040 = vpack.c.bf16 %v4017, %v4016
      %v4041 = vpack.c.bf16 %v4019, %v4018
      %v4042 = vpack.c.bf16 %v4021, %v4020
      %v4043 = vpack.c.bf16 %v4023, %v4022
      %v4044 = vpack.c.bf16 %v4025, %v4024
      %v4045 = vpack.c.bf16 %v4027, %v4026
      %v4046 = vpack.c.bf16 %v4029, %v4028
      %v4047 = vpack.c.bf16 %v4031, %v4030
      %v4048 = vld [vmem:[%s4] sm:$0xf]
      %v4049 = vld [vmem:[%s4 + $0x4] sm:$0xf]
      %v4050 = vld [vmem:[%s4 + $0x8] sm:$0xf]
      %v4051 = vld [vmem:[%s4 + $0xc] sm:$0xf]
      %v4052 = vld [vmem:[%s4 + $0x10] sm:$0xf]
      %v4053 = vld [vmem:[%s4 + $0x14] sm:$0xf]
      %v4054 = vld [vmem:[%s4 + $0x18] sm:$0xf]
      %v4055 = vld [vmem:[%s4 + $0x1c] sm:$0xf]
      %v4056 = vld [vmem:[%s4 + $0x20] sm:$0xf]
      %v4066 = vunpack.c.l.b16 %v4048
      %v4067 = vunpack.c.l.b16 %v4049
      %v4068 = vunpack.c.l.b16 %v4050
      %v4069 = vunpack.c.l.b16 %v4051
      %v4070 = vunpack.c.l.b16 %v4052
      %v4071 = vunpack.c.l.b16 %v4053
      %v4072 = vunpack.c.l.b16 %v4054
      %v4073 = vunpack.c.l.b16 %v4055
      %v4074 = vunpack.c.l.b16 %v4056
      %v4075 = vpack.c.b16 %v4067, %v4066
      %v4076 = vpack.c.b16 %v4069, %v4068
      %v4077 = vpack.c.b16 %v4071, %v4070
      %v4078 = vpack.c.b16 %v4073, %v4072
      %v4079 = vpack.c.b16 %v4074, %v4074
      %vm4084 = vcmask 588800
      %v4086 = vsel %vm4084, %v4032, 0
      %v4089 = vsel %vm4084, %v4033, 0
      %v4092 = vsel %vm4084, %v4034, 0
      %v4095 = vsel %vm4084, %v4035, 0
      %v4098 = vsel %vm4084, %v4036, 0
      %v4101 = vsel %vm4084, %v4037, 0
      %v4104 = vsel %vm4084, %v4038, 0
      %v4107 = vsel %vm4084, %v4039, 0
      %v4110 = vsel %vm4084, %v4040, 0
      %v4113 = vsel %vm4084, %v4041, 0
      %v4116 = vsel %vm4084, %v4042, 0
      %v4119 = vsel %vm4084, %v4043, 0
      %v4122 = vsel %vm4084, %v4044, 0
      %v4125 = vsel %vm4084, %v4045, 0
      %v4128 = vsel %vm4084, %v4046, 0
      %v4131 = vsel %vm4084, %v4047, 0
      %vm4133 = vcmask 1043456
      %v4135 = vsel %vm4133, %v4079, 0
      %4137 = vmatprep.subr.bf16.mxu0 0
      %4138 = vmatpush1.bf16.msra.mxu0 %v4075
      %4139 = vmatprep.subr.bf16.mxu0 0
      %4140 = vmatpush1.bf16.msra.mxu0 %v4076
      %4141 = vmatprep.subr.bf16.mxu0 0
      %4142 = vmatpush1.bf16.msra.mxu0 %v4077
      %4143 = vmatprep.subr.bf16.mxu0 0
      %4144 = vmatpush1.bf16.msra.mxu0 %v4078
      %4145 = vmatprep.subr.bf16.mxu0 0
      %4146 = vmatpush1.bf16.msra.mxu0 %v4135
      %4147 = vmatprep.subr.bf16.mxu0 0
      %4148 = vmatpush1.bf16.msra.mxu0 0
      %4149 = vmatprep.subr.bf16.mxu0 0
      %4150 = vmatpush1.bf16.msra.mxu0 0
      %4151 = vmatprep.subr.bf16.mxu0 0
      %4152 = vmatpush1.bf16.msra.mxu0 0
      %4153 = vmatprep.subr.bf16.mxu0 0
      %4154 = vmatpush1.bf16.msra.mxu0 0
      %4155 = vmatprep.subr.bf16.mxu0 0
      %4156 = vmatpush1.bf16.msra.mxu0 0
      %4157 = vmatprep.subr.bf16.mxu0 0
      %4158 = vmatpush1.bf16.msra.mxu0 0
      %4159 = vmatprep.subr.bf16.mxu0 0
      %4160 = vmatpush1.bf16.msra.mxu0 0
      %4161 = vmatprep.subr.bf16.mxu0 0
      %4162 = vmatpush1.bf16.msra.mxu0 0
      %4163 = vmatprep.subr.bf16.mxu0 0
      %4164 = vmatpush1.bf16.msra.mxu0 0
      %4165 = vmatprep.subr.bf16.mxu0 0
      %4166 = vmatpush1.bf16.msra.mxu0 0
      %4167 = vmatprep.subr.bf16.mxu0 0
      %4168 = vmatpush1.bf16.msra.mxu0 0
      %4169 = vmatprep.mubr.bf16.mxu0 0
      %4170 = vmatmul.mubr.bf16.gmra.mrb[0].mxu0 %v4086
      %v4171 = vpop.f32.mrb[0].mxu0
      %v4172 = vadd.f32 0.0, %v4171
      %v4173 = vpop.f32.mrb[0].mxu0
      %v4174 = vpop.f32.mrb[0].mxu0
      %v4175 = vadd.f32 0.0, %v4174
      %v4176 = vpop.f32.mrb[0].mxu0
      %4177 = vmatprep.mubr.bf16.mxu0 0
      %4178 = vmatmul.mubr.bf16.gmra.mrb[0].mxu0 %v4089
      %v4179 = vpop.f32.mrb[0].mxu0
      %v4180 = vadd.f32 0.0, %v4179
      %v4181 = vpop.f32.mrb[0].mxu0
      %v4182 = vpop.f32.mrb[0].mxu0
      %v4183 = vadd.f32 0.0, %v4182
      %v4184 = vpop.f32.mrb[0].mxu0
      %4185 = vmatprep.mubr.bf16.mxu0 0
      %4186 = vmatmul.mubr.bf16.gmra.mrb[0].mxu0 %v4092
      %v4187 = vpop.f32.mrb[0].mxu0
      %v4188 = vadd.f32 0.0, %v4187
      %v4189 = vpop.f32.mrb[0].mxu0
      %v4190 = vpop.f32.mrb[0].mxu0
      %v4191 = vadd.f32 0.0, %v4190
      %v4192 = vpop.f32.mrb[0].mxu0
      %4193 = vmatprep.mubr.bf16.mxu0 0
      %4194 = vmatmul.mubr.bf16.gmra.mrb[0].mxu0 %v4095
      %v4195 = vpop.f32.mrb[0].mxu0
      %v4196 = vadd.f32 0.0, %v4195
      %v4197 = vpop.f32.mrb[0].mxu0
      %v4198 = vpop.f32.mrb[0].mxu0
      %v4199 = vadd.f32 0.0, %v4198
      %v4200 = vpop.f32.mrb[0].mxu0
      %4201 = vmatprep.mubr.bf16.mxu0 0
      %4202 = vmatmul.mubr.bf16.gmra.mrb[0].mxu0 %v4098
      %v4203 = vpop.f32.mrb[0].mxu0
      %v4204 = vadd.f32 0.0, %v4203
      %v4205 = vpop.f32.mrb[0].mxu0
      %v4206 = vpop.f32.mrb[0].mxu0
      %v4207 = vadd.f32 0.0, %v4206
      %v4208 = vpop.f32.mrb[0].mxu0
      %4209 = vmatprep.mubr.bf16.mxu0 0
      %4210 = vmatmul.mubr.bf16.gmra.mrb[0].mxu0 %v4101
      %v4211 = vpop.f32.mrb[0].mxu0
      %v4212 = vadd.f32 0.0, %v4211
      %v4213 = vpop.f32.mrb[0].mxu0
      %v4214 = vpop.f32.mrb[0].mxu0
      %v4215 = vadd.f32 0.0, %v4214
      %v4216 = vpop.f32.mrb[0].mxu0
      %4217 = vmatprep.mubr.bf16.mxu0 0
      %4218 = vmatmul.mubr.bf16.gmra.mrb[0].mxu0 %v4104
      %v4219 = vpop.f32.mrb[0].mxu0
      %v4220 = vadd.f32 0.0, %v4219
      %v4221 = vpop.f32.mrb[0].mxu0
      %v4222 = vpop.f32.mrb[0].mxu0
      %v4223 = vadd.f32 0.0, %v4222
      %v4224 = vpop.f32.mrb[0].mxu0
      %4225 = vmatprep.mubr.bf16.mxu0 0
      %4226 = vmatmul.mubr.bf16.gmra.mrb[0].mxu0 %v4107
      %v4227 = vpop.f32.mrb[0].mxu0
      %v4228 = vadd.f32 0.0, %v4227
      %v4229 = vpop.f32.mrb[0].mxu0
      %v4230 = vpop.f32.mrb[0].mxu0
      %v4231 = vadd.f32 0.0, %v4230
      %v4232 = vpop.f32.mrb[0].mxu0
      %4233 = vmatprep.mubr.bf16.mxu0 0
      %4234 = vmatmul.mubr.bf16.gmra.mrb[0].mxu0 %v4110
      %v4235 = vpop.f32.mrb[0].mxu0
      %v4236 = vadd.f32 0.0, %v4235
      %v4237 = vpop.f32.mrb[0].mxu0
      %v4238 = vpop.f32.mrb[0].mxu0
      %v4239 = vadd.f32 0.0, %v4238
      %v4240 = vpop.f32.mrb[0].mxu0
      %4241 = vmatprep.mubr.bf16.mxu0 0
      %4242 = vmatmul.mubr.bf16.gmra.mrb[0].mxu0 %v4113
      %v4243 = vpop.f32.mrb[0].mxu0
      %v4244 = vadd.f32 0.0, %v4243
      %v4245 = vpop.f32.mrb[0].mxu0
      %v4246 = vpop.f32.mrb[0].mxu0
      %v4247 = vadd.f32 0.0, %v4246
      %v4248 = vpop.f32.mrb[0].mxu0
      %4249 = vmatprep.mubr.bf16.mxu0 0
      %4250 = vmatmul.mubr.bf16.gmra.mrb[0].mxu0 %v4116
      %v4251 = vpop.f32.mrb[0].mxu0
      %v4252 = vadd.f32 0.0, %v4251
      %v4253 = vpop.f32.mrb[0].mxu0
      %v4254 = vpop.f32.mrb[0].mxu0
      %v4255 = vadd.f32 0.0, %v4254
      %v4256 = vpop.f32.mrb[0].mxu0
      %4257 = vmatprep.mubr.bf16.mxu0 0
      %4258 = vmatmul.mubr.bf16.gmra.mrb[0].mxu0 %v4119
      %v4259 = vpop.f32.mrb[0].mxu0
      %v4260 = vadd.f32 0.0, %v4259
      %v4261 = vpop.f32.mrb[0].mxu0
      %v4262 = vpop.f32.mrb[0].mxu0
      %v4263 = vadd.f32 0.0, %v4262
      %v4264 = vpop.f32.mrb[0].mxu0
      %4265 = vmatprep.mubr.bf16.mxu0 0
      %4266 = vmatmul.mubr.bf16.gmra.mrb[0].mxu0 %v4122
      %v4267 = vpop.f32.mrb[0].mxu0
      %v4268 = vadd.f32 0.0, %v4267
      %v4269 = vpop.f32.mrb[0].mxu0
      %v4270 = vpop.f32.mrb[0].mxu0
      %v4271 = vadd.f32 0.0, %v4270
      %v4272 = vpop.f32.mrb[0].mxu0
      %4273 = vmatprep.mubr.bf16.mxu0 0
      %4274 = vmatmul.mubr.bf16.gmra.mrb[0].mxu0 %v4125
      %v4275 = vpop.f32.mrb[0].mxu0
      %v4276 = vadd.f32 0.0, %v4275
      %v4277 = vpop.f32.mrb[0].mxu0
      %v4278 = vpop.f32.mrb[0].mxu0
      %v4279 = vadd.f32 0.0, %v4278
      %v4280 = vpop.f32.mrb[0].mxu0
      %4281 = vmatprep.mubr.bf16.mxu0 0
      %4282 = vmatmul.mubr.bf16.gmra.mrb[0].mxu0 %v4128
      %v4283 = vpop.f32.mrb[0].mxu0
      %v4284 = vadd.f32 0.0, %v4283
      %v4285 = vpop.f32.mrb[0].mxu0
      %v4286 = vpop.f32.mrb[0].mxu0
      %v4287 = vadd.f32 0.0, %v4286
      %v4288 = vpop.f32.mrb[0].mxu0
      %4289 = vmatprep.mubr.bf16.mxu0 0
      %4290 = vmatmul.mubr.bf16.gmra.mrb[0].mxu0 %v4131
      %v4291 = vpop.f32.mrb[0].mxu0
      %v4292 = vadd.f32 0.0, %v4291
      %v4293 = vpop.f32.mrb[0].mxu0
      %v4294 = vpop.f32.mrb[0].mxu0
      %v4295 = vadd.f32 0.0, %v4294
      %v4296 = vpop.f32.mrb[0].mxu0
      %4297 = vdwg.mxu0
      %v4298 = vld [vmem:[%s5] sm:$0x1]
      %v4300 = vlaneseq
      %v4301 = vshrl.u32 %v4300, 7
      %v4302 = vsub.s32 0, %v4301
      %v4303 = vrot.slane %v4298, %v4302
      %v4305 = vmul.f32 %v4172, %v4303
      %v4306 = vmul.f32 %v4175, %v4303
      %v4307 = vmul.f32 %v4180, %v4303
      %v4308 = vmul.f32 %v4183, %v4303
      %v4309 = vmul.f32 %v4188, %v4303
      %v4310 = vmul.f32 %v4191, %v4303
      %v4311 = vmul.f32 %v4196, %v4303
      %v4312 = vmul.f32 %v4199, %v4303
      %v4313 = vmul.f32 %v4204, %v4303
      %v4314 = vmul.f32 %v4207, %v4303
      %v4315 = vmul.f32 %v4212, %v4303
      %v4316 = vmul.f32 %v4215, %v4303
      %v4317 = vmul.f32 %v4220, %v4303
      %v4318 = vmul.f32 %v4223, %v4303
      %v4319 = vmul.f32 %v4228, %v4303
      %v4320 = vmul.f32 %v4231, %v4303
      %v4321 = vmul.f32 %v4236, %v4303
      %v4322 = vmul.f32 %v4239, %v4303
      %v4323 = vmul.f32 %v4244, %v4303
      %v4324 = vmul.f32 %v4247, %v4303
      %v4325 = vmul.f32 %v4252, %v4303
      %v4326 = vmul.f32 %v4255, %v4303
      %v4327 = vmul.f32 %v4260, %v4303
      %v4328 = vmul.f32 %v4263, %v4303
      %v4329 = vmul.f32 %v4268, %v4303
      %v4330 = vmul.f32 %v4271, %v4303
      %v4331 = vmul.f32 %v4276, %v4303
      %v4332 = vmul.f32 %v4279, %v4303
      %v4333 = vmul.f32 %v4284, %v4303
      %v4334 = vmul.f32 %v4287, %v4303
      %v4335 = vmul.f32 %v4292, %v4303
      %v4336 = vmul.f32 %v4295, %v4303
      %v4337 = vld [vmem:[%s6] sm:$0x1]
      %v4339 = vlaneseq
      %v4340 = vshrl.u32 %v4339, 7
      %v4341 = vsub.s32 0, %v4340
      %v4342 = vrot.slane %v4337, %v4341
      %v4344 = vadd.f32 %v4305, %v4342
      %v4345 = vadd.f32 %v4306, %v4342
      %v4346 = vadd.f32 %v4307, %v4342
      %v4347 = vadd.f32 %v4308, %v4342
      %v4348 = vadd.f32 %v4309, %v4342
      %v4349 = vadd.f32 %v4310, %v4342
      %v4350 = vadd.f32 %v4311, %v4342
      %v4351 = vadd.f32 %v4312, %v4342
      %v4352 = vadd.f32 %v4313, %v4342
      %v4353 = vadd.f32 %v4314, %v4342
      %v4354 = vadd.f32 %v4315, %v4342
      %v4355 = vadd.f32 %v4316, %v4342
      %v4356 = vadd.f32 %v4317, %v4342
      %v4357 = vadd.f32 %v4318, %v4342
      %v4358 = vadd.f32 %v4319, %v4342
      %v4359 = vadd.f32 %v4320, %v4342
      %v4360 = vadd.f32 %v4321, %v4342
      %v4361 = vadd.f32 %v4322, %v4342
      %v4362 = vadd.f32 %v4323, %v4342
      %v4363 = vadd.f32 %v4324, %v4342
      %v4364 = vadd.f32 %v4325, %v4342
      %v4365 = vadd.f32 %v4326, %v4342
      %v4366 = vadd.f32 %v4327, %v4342
      %v4367 = vadd.f32 %v4328, %v4342
      %v4368 = vadd.f32 %v4329, %v4342
      %v4369 = vadd.f32 %v4330, %v4342
      %v4370 = vadd.f32 %v4331, %v4342
      %v4371 = vadd.f32 %v4332, %v4342
      %v4372 = vadd.f32 %v4333, %v4342
      %v4373 = vadd.f32 %v4334, %v4342
      %v4374 = vadd.f32 %v4335, %v4342
      %v4375 = vadd.f32 %v4336, %v4342
      %v4376 = vmax.f32 %v4344, 0.0
      %v4377 = vmax.f32 %v4345, 0.0
      %v4378 = vmax.f32 %v4346, 0.0
      %v4379 = vmax.f32 %v4347, 0.0
      %v4380 = vmax.f32 %v4348, 0.0
      %v4381 = vmax.f32 %v4349, 0.0
      %v4382 = vmax.f32 %v4350, 0.0
      %v4383 = vmax.f32 %v4351, 0.0
      %v4384 = vmax.f32 %v4352, 0.0
      %v4385 = vmax.f32 %v4353, 0.0
      %v4386 = vmax.f32 %v4354, 0.0
      %v4387 = vmax.f32 %v4355, 0.0
      %v4388 = vmax.f32 %v4356, 0.0
      %v4389 = vmax.f32 %v4357, 0.0
      %v4390 = vmax.f32 %v4358, 0.0
      %v4391 = vmax.f32 %v4359, 0.0
      %v4392 = vmax.f32 %v4360, 0.0
      %v4393 = vmax.f32 %v4361, 0.0
      %v4394 = vmax.f32 %v4362, 0.0
      %v4395 = vmax.f32 %v4363, 0.0
      %v4396 = vmax.f32 %v4364, 0.0
      %v4397 = vmax.f32 %v4365, 0.0
      %v4398 = vmax.f32 %v4366, 0.0
      %v4399 = vmax.f32 %v4367, 0.0
      %v4400 = vmax.f32 %v4368, 0.0
      %v4401 = vmax.f32 %v4369, 0.0
      %v4402 = vmax.f32 %v4370, 0.0
      %v4403 = vmax.f32 %v4371, 0.0
      %v4404 = vmax.f32 %v4372, 0.0
      %v4405 = vmax.f32 %v4373, 0.0
      %v4406 = vmax.f32 %v4374, 0.0
      %v4407 = vmax.f32 %v4375, 0.0
      %4408 = vst.msk [vmem:[%s278] sm:$0xff] %vm1763, %v4376
      %4409 = vst.msk [vmem:[%s278 + $0x8] sm:$0xff] %vm1763, %v4377
      %4410 = vst.msk [vmem:[%s278 + $0x10] sm:$0xff] %vm1763, %v4378
      %4411 = vst.msk [vmem:[%s278 + $0x18] sm:$0xff] %vm1763, %v4379
      %4412 = vst.msk [vmem:[%s278 + $0x20] sm:$0xff] %vm1763, %v4380
      %4413 = vst.msk [vmem:[%s278 + $0x28] sm:$0xff] %vm1763, %v4381
      %4414 = vst.msk [vmem:[%s278 + $0x30] sm:$0xff] %vm1763, %v4382
      %4415 = vst.msk [vmem:[%s278 + $0x38] sm:$0xff] %vm1763, %v4383
      %4416 = vst.msk [vmem:[%s278 + $0x40] sm:$0xff] %vm1763, %v4384
      %4417 = vst.msk [vmem:[%s278 + $0x48] sm:$0xff] %vm1763, %v4385
      %4418 = vst.msk [vmem:[%s278 + $0x50] sm:$0xff] %vm1763, %v4386
      %4419 = vst.msk [vmem:[%s278 + $0x58] sm:$0xff] %vm1763, %v4387
      %4420 = vst.msk [vmem:[%s278 + $0x60] sm:$0xff] %vm1763, %v4388
      %4421 = vst.msk [vmem:[%s278 + $0x68] sm:$0xff] %vm1763, %v4389
      %4422 = vst.msk [vmem:[%s278 + $0x70] sm:$0xff] %vm1763, %v4390
      %4423 = vst.msk [vmem:[%s278 + $0x78] sm:$0xff] %vm1763, %v4391
      %4424 = vst.msk [vmem:[%s278 + $0x80] sm:$0xff] %vm1763, %v4392
      %4425 = vst.msk [vmem:[%s278 + $0x88] sm:$0xff] %vm1763, %v4393
      %4426 = vst.msk [vmem:[%s278 + $0x90] sm:$0xff] %vm1763, %v4394
      %4427 = vst.msk [vmem:[%s278 + $0x98] sm:$0xff] %vm1763, %v4395
      %4428 = vst.msk [vmem:[%s278 + $0xa0] sm:$0xff] %vm1763, %v4396
      %4429 = vst.msk [vmem:[%s278 + $0xa8] sm:$0xff] %vm1763, %v4397
      %4430 = vst.msk [vmem:[%s278 + $0xb0] sm:$0xff] %vm1763, %v4398
      %4431 = vst.msk [vmem:[%s278 + $0xb8] sm:$0xff] %vm1763, %v4399
      %4432 = vst.msk [vmem:[%s278 + $0xc0] sm:$0xff] %vm1763, %v4400
      %4433 = vst.msk [vmem:[%s278 + $0xc8] sm:$0xff] %vm1763, %v4401
      %4434 = vst.msk [vmem:[%s278 + $0xd0] sm:$0xff] %vm1763, %v4402
      %4435 = vst.msk [vmem:[%s278 + $0xd8] sm:$0xff] %vm1763, %v4403
      %4436 = vst.msk [vmem:[%s278 + $0xe0] sm:$0xff] %vm1763, %v4404
      %4437 = vst.msk [vmem:[%s278 + $0xe8] sm:$0xff] %vm1763, %v4405
      %4438 = vst.msk [vmem:[%s278 + $0xf0] sm:$0xff] %vm1763, %v4406
      %4439 = vst.msk [vmem:[%s278 + $0xf8] sm:$0xff] %vm1763, %v4407
      %p4440 = scmp.lt.s32.totalorder %s18, 1
      %s4441 = scalar_select %p4440, %s18, 1
      %s4442 = smul.addr %s4441, 32
      %s4443 = smul.addr %s4442, 8
      %s4444 = scalar_lea.vmem %s7, %s4443
      // Predicated region
      $region49: #{tpu_custom_call.1} parent=47 // pred_check
        %p4445 = pneg %p188
      $region50: #{tpu_custom_call.1} parent=47 // pred_check_branch
        %4447 = sbr.rel (%p4445) target = $region52
      $region51: #{tpu_custom_call.1} parent=47 // pred_region
        _
      $region52: #{tpu_custom_call.1} parent=47 // pred_fallthru
        _
    $region48: #{tpu_custom_call.1} parent=5 // pred_fallthru
      _
    %p4448 = scmp.le.s32.totalorder 2, %s13
    // Predicated region
    $region53: #{tpu_custom_call.1} parent=5 // pred_check
      %p4449 = pneg %p4448
    $region54: #{tpu_custom_call.1} parent=5 // pred_check_branch
      %4451 = sbr.rel (%p4449) target = $region56
    $region55: #{tpu_custom_call.1} parent=5 // pred_region
      %s4452 = ssub.s32 %s13, 2
      // Predicated region
      $region57: #{tpu_custom_call.1} parent=55 // pred_check
        %p4453 = pneg %p194
      $region58: #{tpu_custom_call.1} parent=55 // pred_check_branch
        %4455 = sbr.rel (%p4453) target = $region60
      $region59: #{tpu_custom_call.1} parent=55 // pred_region
        %p4456 = scmp.lt.s32.totalorder %s19, 1
        %s4457 = scalar_select %p4456, %s19, 1
        %s4458 = smul.addr %s4457, 32
        %s4459 = smul.addr %s4458, 8
        %s4460 = scalar_lea.vmem %s7, %s4459
      $region60: #{tpu_custom_call.1} parent=55 // pred_fallthru
        _
    $region56: #{tpu_custom_call.1} parent=5 // pred_fallthru
      _
  $region6: #{tpu_custom_call.1} parent=0 // loop_footer
    %s17 = sadd.s32 1, %s13
  $region7: #{tpu_custom_call.1} parent=0 // loop_footer_branch
    %12 = sbr.rel target = $region3
  $region8: #{tpu_custom_call.1} parent=0 // loop_exit
    _

</llo_original>
